<compile_context>
chip_gen: v5e
topology: v5e:2x2
jax: 0.10.0
libtpu: 0.0.40
codegen_flags: <defaults>
</compile_context>

<pallas_src>
import functools
import math

import jax
import jax.numpy as jnp
from jax import lax
from jax.experimental import pallas as pl
from jax.experimental.pallas import tpu as pltpu

# ----------------- config (small shapes consistent with the module's args) -----------------
D_PARTICIPANT = 8
D_TIME = 16
D_F0 = 8
D_TOTAL = D_PARTICIPANT + D_TIME + D_F0          # 32
NUM_PARTICIPANTS = 5
TIME_CUTOFF = 1.5
NUM_TIMES = int(round(round(TIME_CUTOFF, 1) * 10)) + 1   # dim_time(time_cutoff) = 16
NUM_F0 = 10                                       # cutoff[2]
CONTEXT_LENGTH = 8
PREDICTION_LENGTH = 4
NHEAD = 4
NUM_LAYERS = 2
DIM_FFN = 2048                                    # nn.TransformerEncoderLayer default
LN_EPS = 1e-5
TS = D_PARTICIPANT                                # self.ts
TF = TS + D_TIME                                  # self.tf
NEG = -1e9
HEAD_OUT = 128                                    # logit head output padded to lane-dense 128
PROJ_OUT = 256                                    # fused proj: [q(32)|k(32)|vproj(4x32)] pad->256
FFN_CHUNK = 1024                                  # review sweep: 1024 (was 512)


# ----------------- sinusoidal embedding helpers (match torch sin_embedding) -----------------
def sin_embedding_table(values, d_emb, L, scale_base=10000.0):
    vals = jnp.asarray(values, dtype=jnp.float32)
    i = jnp.arange(d_emb // 2, dtype=jnp.float32)
    wk = scale_base ** (-i / d_emb) * d_emb / L
    angle = vals[:, None] * wk                                     # (n, d_emb//2)
    # interleave: pe[0::2]=sin, pe[1::2]=cos
    return jnp.stack([jnp.sin(angle), jnp.cos(angle)], axis=-1).reshape(vals.shape[0], d_emb)


def sin_encoding(x, d_emb, L, scale_base=10000.0):
    # x: (B, S) float -> (B, S, d_emb)
    i = jnp.arange(d_emb // 2, dtype=jnp.float32)
    wk = scale_base ** (-i / d_emb) * d_emb / L
    angle = x.astype(jnp.float32)[..., None] * wk                  # (B, S, d_emb//2)
    return jnp.stack([jnp.sin(angle), jnp.cos(angle)], axis=-1).reshape(*x.shape, d_emb)


# ----------------- fused Pallas kernel: 2 encoder layers + tied-embedding logit head -----------------
def _fused_model_kernel(x_ref, mask_ref,
                        wproj_ref, bproj_ref, bo_ref, ln1w_ref, ln1b_ref,
                        w1_ref, b1_ref, w2_ref, b2_ref, ln2w_ref, ln2b_ref,
                        whead_ref, out_ref,
                        *, nhead, num_layers, ffn_chunk):
    x = x_ref[...]                                   # (BS, D) f32 residual stream (flat, lane-dense)
    mask = mask_ref[...]                             # (BS, BS) additive mask (causal+target+batch-block)
    BS, D = x.shape
    dh = D // nhead
    nt = (((1,), (1,)), ((), ()))                    # contract last dims: q @ k^T without a transpose op

    def layer_norm(v, w, b):                         # f32 throughout
        mu = jnp.mean(v, axis=-1, keepdims=True)
        var = jnp.mean((v - mu) ** 2, axis=-1, keepdims=True)
        return (v - mu) * lax.rsqrt(var + LN_EPS) * w + b

    for l in range(num_layers):                      # static: both layers fused in one kernel
        xb = x.astype(jnp.bfloat16)

        # ---- fused projection: one MXU matmul produces q (scale pre-folded), k, and the
        #      per-head out-projection-folded value vproj_h = x @ (Wv_h @ Wo_h) + bv_h @ Wo_h ----
        proj = jnp.dot(xb, wproj_ref[l], preferred_element_type=jnp.float32) + bproj_ref[l]

        # ---- flat multi-head self-attention: no reshapes, no concat, no separate out-proj ----
        attn = jnp.zeros((BS, D), jnp.float32)
        for h in range(nhead):                       # static; tiny lane slices of the proj tile
            qh = proj[:, h * dh:(h + 1) * dh].astype(jnp.bfloat16)               # (BS, dh)
            kh = proj[:, D + h * dh:D + (h + 1) * dh].astype(jnp.bfloat16)       # (BS, dh)
            vh = proj[:, 2 * D + h * D:2 * D + (h + 1) * D].astype(jnp.bfloat16)  # (BS, D) projected v
            s = lax.dot_general(qh, kh, nt, preferred_element_type=jnp.float32) + mask  # (BS, BS)
            s = s - jnp.max(s, axis=-1, keepdims=True)                           # f32 softmax
            p = jnp.exp(s)
            p = p * pl.reciprocal(jnp.sum(p, axis=-1, keepdims=True), approx=True)
            attn = attn + jnp.dot(p.astype(jnp.bfloat16), vh,
                                  preferred_element_type=jnp.float32)
        attn = attn + bo_ref[l]

        # ---- residual + LayerNorm1 (post-norm, torch default norm_first=False) ----
        y = layer_norm(x + attn, ln1w_ref[l], ln1b_ref[l])        # (BS, D) f32

        # ---- feed-forward (ReLU), streamed over the 2048 hidden dim ----
        yb = y.astype(jnp.bfloat16)
        ffn = jnp.zeros((BS, D), jnp.float32)
        for c in range(0, DIM_FFN, ffn_chunk):                    # static 2-chunk loop
            h1 = (jnp.dot(yb, w1_ref[l, :, c:c + ffn_chunk],
                          preferred_element_type=jnp.float32)
                  + b1_ref[l, :, c:c + ffn_chunk])
            h1 = jnp.maximum(h1, 0.0).astype(jnp.bfloat16)        # relu in f32, cast for MXU
            ffn = ffn + jnp.dot(h1, w2_ref[l, c:c + ffn_chunk, :],
                                preferred_element_type=jnp.float32)
        ffn = ffn + b2_ref[l]

        # ---- residual + LayerNorm2 ----
        x = layer_norm(y + ffn, ln2w_ref[l], ln2b_ref[l])

    # ---- tied-embedding logit head: block-diagonal (D, 128) weight, lane-dense output ----
    out_ref[...] = jnp.dot(x.astype(jnp.bfloat16), whead_ref[...],
                           preferred_element_type=jnp.float32)


def fused_forward_pallas(x_flat, mask, kernel_params):
    BS, _ = x_flat.shape
    vmem = pl.BlockSpec(memory_space=pltpu.MemorySpace.VMEM)
    kernel = functools.partial(_fused_model_kernel, nhead=NHEAD, num_layers=NUM_LAYERS,
                               ffn_chunk=FFN_CHUNK)
    return pl.pallas_call(
        kernel,
        out_shape=jax.ShapeDtypeStruct((BS, HEAD_OUT), jnp.float32),
        in_specs=[vmem] * (2 + len(kernel_params)),
        out_specs=vmem,
        compiler_params=pltpu.CompilerParams(vmem_limit_bytes=32 * 1024 * 1024),
    )(x_flat, mask, *kernel_params)


# ----------------- parameter construction (deterministic, synthetic, torch layouts) -----------------
def init_params(key):
    ks = jax.random.split(key, 2 + NUM_LAYERS)
    params = {}
    params['participant_weight'] = jax.random.normal(
        ks[0], (NUM_PARTICIPANTS, D_PARTICIPANT), jnp.float32)
    params['time_table'] = sin_embedding_table(jnp.arange(NUM_TIMES), D_TIME, NUM_TIMES)
    params['f0_table'] = sin_embedding_table(jnp.arange(NUM_F0), D_F0, NUM_F0)
    params['pad_embedding'] = jax.random.normal(ks[1], (D_TOTAL,), jnp.float32)

    layers = []
    D = D_TOTAL
    for l in range(NUM_LAYERS):
        kq, ko, k1, k2 = jax.random.split(ks[2 + l], 4)
        layers.append(dict(
            in_proj_weight=0.05 * jax.random.normal(kq, (3 * D, D), jnp.float32),
            in_proj_bias=jnp.zeros((3 * D,), jnp.float32),
            out_proj_weight=0.05 * jax.random.normal(ko, (D, D), jnp.float32),
            out_proj_bias=jnp.zeros((D,), jnp.float32),
            linear1_weight=0.05 * jax.random.normal(k1, (DIM_FFN, D), jnp.float32),
            linear1_bias=jnp.zeros((DIM_FFN,), jnp.float32),
            linear2_weight=0.05 * jax.random.normal(k2, (D, DIM_FFN), jnp.float32),
            linear2_bias=jnp.zeros((D,), jnp.float32),
            ln1_weight=jnp.ones((D,), jnp.float32), ln1_bias=jnp.zeros((D,), jnp.float32),
            ln2_weight=jnp.ones((D,), jnp.float32), ln2_bias=jnp.zeros((D,), jnp.float32),
        ))
    params['layers'] = layers
    params['kernel'] = prepare_kernel_params(params)
    return params


def prepare_kernel_params(params):
    """Stack/transpose/fold torch-layout weights into the kernel-ready bf16 layout (done once)."""
    D, H, dh = D_TOTAL, NHEAD, D_TOTAL // NHEAD
    scale = 1.0 / math.sqrt(dh)
    wproj, bproj, bo, ln1w, ln1b = [], [], [], [], []
    w1, b1, w2, b2, ln2w, ln2b = [], [], [], [], [], []
    for lp in params['layers']:
        w_in, b_in = lp['in_proj_weight'], lp['in_proj_bias']     # (3D, D), (3D,)
        wq_t = w_in[0:D].T * scale                                # (D, D), 1/sqrt(dh) folded in
        wk_t = w_in[D:2 * D].T                                    # (D, D)
        wv_t = w_in[2 * D:3 * D].T                                # (D, D)
        wo_t = lp['out_proj_weight'].T                            # (D, D): attn = ctx @ wo_t
        bq = b_in[0:D] * scale
        bk = b_in[D:2 * D]
        bv = b_in[2 * D:3 * D]
        # fold the out-projection into the value projection per head (associativity):
        #   vproj_h = x @ (Wv^T[:, hs] @ Wo^T[hs, :]) + bv[hs] @ Wo^T[hs, :]
        wvo = [wv_t[:, h * dh:(h + 1) * dh] @ wo_t[h * dh:(h + 1) * dh, :] for h in range(H)]
        bvo = [bv[h * dh:(h + 1) * dh] @ wo_t[h * dh:(h + 1) * dh, :] for h in range(H)]
        w_f = jnp.concatenate([wq_t, wk_t] + wvo, axis=1)         # (D, 2D + H*D) = (32, 192)
        b_f = jnp.concatenate([bq, bk] + bvo)                     # (192,)
        w_f = jnp.pad(w_f, ((0, 0), (0, PROJ_OUT - w_f.shape[1])))            # (32, 256)
        b_f = jnp.pad(b_f, (0, PROJ_OUT - b_f.shape[0])).reshape(1, PROJ_OUT)  # (1, 256)
        wproj.append(w_f)
        bproj.append(b_f)
        bo.append(lp['out_proj_bias'].reshape(1, D))
        ln1w.append(lp['ln1_weight'].reshape(1, D)); ln1b.append(lp['ln1_bias'].reshape(1, D))
        w1.append(lp['linear1_weight'].T)                         # (D, FFN)
        b1.append(lp['linear1_bias'].reshape(1, DIM_FFN))
        w2.append(lp['linear2_weight'].T)                         # (FFN, D)
        b2.append(lp['linear2_bias'].reshape(1, D))
        ln2w.append(lp['ln2_weight'].reshape(1, D)); ln2b.append(lp['ln2_bias'].reshape(1, D))

    sbf = lambda xs: jnp.stack(xs).astype(jnp.bfloat16)
    sf32 = lambda xs: jnp.stack(xs).astype(jnp.float32)

    # block-diagonal tied-embedding head, padded to a lane-dense 128-wide output
    whead = jnp.zeros((D, HEAD_OUT), jnp.float32)
    whead = whead.at[0:TS, 0:NUM_PARTICIPANTS].set(params['participant_weight'].T)
    whead = whead.at[TS:TF, NUM_PARTICIPANTS:NUM_PARTICIPANTS + NUM_TIMES].set(
        params['time_table'].T)
    whead = whead.at[TF:D, NUM_PARTICIPANTS + NUM_TIMES:NUM_PARTICIPANTS + NUM_TIMES + NUM_F0].set(
        params['f0_table'].T)

    return (sbf(wproj), sf32(bproj), sf32(bo), sf32(ln1w), sf32(ln1b),
            sbf(w1), sf32(b1), sbf(w2), sf32(b2), sf32(ln2w), sf32(ln2b),
            whead.astype(jnp.bfloat16))


def build_flat_mask(B, S, Lc):
    """(B*S, B*S) additive mask: causal + fully-masked target block, block-diagonal per batch."""
    m = jnp.where(jnp.triu(jnp.ones((S, S), dtype=bool), k=1), NEG, 0.0).astype(jnp.float32)
    m = m.at[Lc:, Lc:].set(NEG)                      # matches causal_mask[target_start:, target_start:] = -1e9
    big = jnp.full((B * S, B * S), NEG, jnp.float32)
    for b in range(B):                               # static small loop (B=2)
        big = big.at[b * S:(b + 1) * S, b * S:(b + 1) * S].set(m)
    return big


# ----------------- forward pass (matches SequenceModel.forward, eval mode) -----------------
def sequence_model_forward(params, context_participant, context_time, context_f0):
    # embed_tokens (tiny gathers + sinusoidal encoding stay in plain XLA)
    part_emb = params['participant_weight'][context_participant]          # (B, Lc, d_participant)
    time_emb = sin_encoding(context_time, D_TIME, NUM_TIMES)              # (B, Lc, d_time)
    f0_emb = params['f0_table'][context_f0]                               # (B, Lc, d_f0)
    ctx = jnp.concatenate([part_emb, time_emb, f0_emb], axis=-1)          # (B, Lc, d_total)

    B, Lc, _ = ctx.shape
    dummy = jnp.broadcast_to(params['pad_embedding'][None, None, :],
                             (B, PREDICTION_LENGTH, D_TOTAL))
    x = jnp.concatenate([ctx, dummy], axis=1).astype(jnp.float32)         # (B, S, d_total)
    S = x.shape[1]

    mask = build_flat_mask(B, S, Lc)                                      # (B*S, B*S)

    # TODO(synk): dropout (p=0.1 in nn.TransformerEncoderLayer) omitted — eval-mode semantics.
    x_flat = x.reshape(B * S, D_TOTAL)                # lane-dense (24, 32), 3 sublane tiles
    logits_all = fused_forward_pallas(x_flat, mask, params['kernel'])     # (B*S, 128)

    logits = logits_all.reshape(B, S, HEAD_OUT)[:, Lc:, :]
    c0, c1 = NUM_PARTICIPANTS, NUM_PARTICIPANTS + NUM_TIMES
    pred_cat_logits = logits[:, :, :c0]
    pred_time_logits = logits[:, :, c0:c1]
    pred_f0_logits = logits[:, :, c1:c1 + NUM_F0]
    return pred_cat_logits, pred_time_logits, pred_f0_logits


# ----------------- main -----------------
if __name__ == "__main__":
    key = jax.random.PRNGKey(0)
    k_params, k_p, k_t, k_f = jax.random.split(key, 4)

    params = init_params(k_params)

    B = 2
    context_participant = jax.random.randint(k_p, (B, CONTEXT_LENGTH), 0, NUM_PARTICIPANTS, jnp.int32)
    context_time = jax.random.uniform(k_t, (B, CONTEXT_LENGTH), jnp.float32, 0.0, TIME_CUTOFF)
    context_f0 = jax.random.randint(k_f, (B, CONTEXT_LENGTH), 0, NUM_F0, jnp.int32)

    fwd = jax.jit(sequence_model_forward)
    pred_cat_logits, pred_time_logits, pred_f0_logits = fwd(
        params, context_participant, context_time, context_f0)
    jax.block_until_ready((pred_cat_logits, pred_time_logits, pred_f0_logits))

    assert pred_cat_logits.shape == (B, PREDICTION_LENGTH, NUM_PARTICIPANTS)
    assert pred_time_logits.shape == (B, PREDICTION_LENGTH, NUM_TIMES)
    assert pred_f0_logits.shape == (B, PREDICTION_LENGTH, NUM_F0)
    print("KERNEL_OK")
</pallas_src>

<mosaic_0001>
module attributes {stable_mosaic.version = 11 : i64} {
  func.func @_fused_model_kernel(%arg0: memref<24x32xf32, #tpu.memory_space<vmem>>, %arg1: memref<24x24xf32, #tpu.memory_space<vmem>>, %arg2: memref<2x32x256xbf16, #tpu.memory_space<vmem>>, %arg3: memref<2x1x256xf32, #tpu.memory_space<vmem>>, %arg4: memref<2x1x32xf32, #tpu.memory_space<vmem>>, %arg5: memref<2x1x32xf32, #tpu.memory_space<vmem>>, %arg6: memref<2x1x32xf32, #tpu.memory_space<vmem>>, %arg7: memref<2x32x2048xbf16, #tpu.memory_space<vmem>>, %arg8: memref<2x1x2048xf32, #tpu.memory_space<vmem>>, %arg9: memref<2x2048x32xbf16, #tpu.memory_space<vmem>>, %arg10: memref<2x1x32xf32, #tpu.memory_space<vmem>>, %arg11: memref<2x1x32xf32, #tpu.memory_space<vmem>>, %arg12: memref<2x1x32xf32, #tpu.memory_space<vmem>>, %arg13: memref<32x128xbf16, #tpu.memory_space<vmem>>, %arg14: memref<24x128xf32, #tpu.memory_space<vmem>>) attributes {dimension_semantics = [], scalar_prefetch = 0 : i64, scratch_operands = 0 : i64, tpu.core_type = #tpu.core_type<tc>} {
    %c0 = arith.constant 0 : index
    %c0_0 = arith.constant 0 : index
    %0 = vector.load %arg0[%c0, %c0_0] : memref<24x32xf32, #tpu.memory_space<vmem>>, vector<24x32xf32>
    %c0_1 = arith.constant 0 : index
    %c0_2 = arith.constant 0 : index
    %1 = vector.load %arg1[%c0_1, %c0_2] : memref<24x24xf32, #tpu.memory_space<vmem>>, vector<24x24xf32>
    %2 = arith.truncf %0 : vector<24x32xf32> to vector<24x32xbf16>
    %c0_3 = arith.constant 0 : index
    %c0_4 = arith.constant 0 : index
    %c0_5 = arith.constant 0 : index
    %3 = vector.load %arg2[%c0_3, %c0_4, %c0_5] : memref<2x32x256xbf16, #tpu.memory_space<vmem>>, vector<1x32x256xbf16>
    %4 = vector.shape_cast %3 : vector<1x32x256xbf16> to vector<32x256xbf16>
    %cst = arith.constant dense<0.000000e+00> : vector<24x256xf32>
    %5 = tpu.matmul %2, %4, %cst {dimension_numbers = #tpu.dot_dimension_numbers<[1], [0], [0], [1], [0, 0, 1, 1], [], []>} : vector<24x32xbf16>, vector<32x256xbf16>, vector<24x256xf32> -> vector<24x256xf32>
    %c0_6 = arith.constant 0 : index
    %c0_7 = arith.constant 0 : index
    %c0_8 = arith.constant 0 : index
    %6 = vector.load %arg3[%c0_6, %c0_7, %c0_8] : memref<2x1x256xf32, #tpu.memory_space<vmem>>, vector<1x1x256xf32>
    %7 = vector.shape_cast %6 : vector<1x1x256xf32> to vector<1x256xf32>
    %8 = vector.broadcast %7 : vector<1x256xf32> to vector<24x256xf32>
    %9 = arith.addf %5, %8 : vector<24x256xf32>
    %cst_9 = arith.constant 0.000000e+00 : f32
    %10 = vector.broadcast %cst_9 : f32 to vector<24x32xf32>
    %11 = vector.extract_strided_slice %9 {offsets = [0, 0], sizes = [24, 8], strides = [1, 1]} : vector<24x256xf32> to vector<24x8xf32>
    %12 = arith.truncf %11 : vector<24x8xf32> to vector<24x8xbf16>
    %13 = vector.extract_strided_slice %9 {offsets = [0, 32], sizes = [24, 8], strides = [1, 1]} : vector<24x256xf32> to vector<24x8xf32>
    %14 = arith.truncf %13 : vector<24x8xf32> to vector<24x8xbf16>
    %15 = vector.extract_strided_slice %9 {offsets = [0, 64], sizes = [24, 32], strides = [1, 1]} : vector<24x256xf32> to vector<24x32xf32>
    %16 = arith.truncf %15 : vector<24x32xf32> to vector<24x32xbf16>
    %cst_10 = arith.constant dense<0.000000e+00> : vector<24x24xf32>
    %17 = tpu.matmul %12, %14, %cst_10 {dimension_numbers = #tpu.dot_dimension_numbers<[1], [1], [0], [0], [0, 0, 1, 0], [], []>} : vector<24x8xbf16>, vector<24x8xbf16>, vector<24x24xf32> -> vector<24x24xf32>
    %18 = arith.addf %17, %1 : vector<24x24xf32>
    %cst_11 = arith.constant dense<0xFF800000> : vector<24xf32>
    %19 = vector.multi_reduction <maximumf>, %18, %cst_11 [1] : vector<24x24xf32> to vector<24xf32>
    %20 = vector.shape_cast %19 : vector<24xf32> to vector<24x1xf32>
    %21 = vector.broadcast %20 : vector<24x1xf32> to vector<24x24xf32>
    %22 = arith.subf %18, %21 : vector<24x24xf32>
    %23 = math.exp %22 : vector<24x24xf32>
    %cst_12 = arith.constant dense<0.000000e+00> : vector<24xf32>
    %24 = vector.multi_reduction <add>, %23, %cst_12 [1] : vector<24x24xf32> to vector<24xf32>
    %25 = vector.shape_cast %24 : vector<24xf32> to vector<24x1xf32>
    %26 = tpu.reciprocal %25 {approx = true} : vector<24x1xf32> -> vector<24x1xf32>
    %27 = vector.broadcast %26 : vector<24x1xf32> to vector<24x24xf32>
    %28 = arith.mulf %23, %27 : vector<24x24xf32>
    %29 = arith.truncf %28 : vector<24x24xf32> to vector<24x24xbf16>
    %cst_13 = arith.constant dense<0.000000e+00> : vector<24x32xf32>
    %30 = tpu.matmul %29, %16, %cst_13 {dimension_numbers = #tpu.dot_dimension_numbers<[1], [0], [0], [1], [0, 0, 1, 1], [], []>} : vector<24x24xbf16>, vector<24x32xbf16>, vector<24x32xf32> -> vector<24x32xf32>
    %31 = arith.addf %10, %30 : vector<24x32xf32>
    %32 = vector.extract_strided_slice %9 {offsets = [0, 8], sizes = [24, 8], strides = [1, 1]} : vector<24x256xf32> to vector<24x8xf32>
    %33 = arith.truncf %32 : vector<24x8xf32> to vector<24x8xbf16>
    %34 = vector.extract_strided_slice %9 {offsets = [0, 40], sizes = [24, 8], strides = [1, 1]} : vector<24x256xf32> to vector<24x8xf32>
    %35 = arith.truncf %34 : vector<24x8xf32> to vector<24x8xbf16>
    %36 = vector.extract_strided_slice %9 {offsets = [0, 96], sizes = [24, 32], strides = [1, 1]} : vector<24x256xf32> to vector<24x32xf32>
    %37 = arith.truncf %36 : vector<24x32xf32> to vector<24x32xbf16>
    %cst_14 = arith.constant dense<0.000000e+00> : vector<24x24xf32>
    %38 = tpu.matmul %33, %35, %cst_14 {dimension_numbers = #tpu.dot_dimension_numbers<[1], [1], [0], [0], [0, 0, 1, 0], [], []>} : vector<24x8xbf16>, vector<24x8xbf16>, vector<24x24xf32> -> vector<24x24xf32>
    %39 = arith.addf %38, %1 : vector<24x24xf32>
    %cst_15 = arith.constant dense<0xFF800000> : vector<24xf32>
    %40 = vector.multi_reduction <maximumf>, %39, %cst_15 [1] : vector<24x24xf32> to vector<24xf32>
    %41 = vector.shape_cast %40 : vector<24xf32> to vector<24x1xf32>
    %42 = vector.broadcast %41 : vector<24x1xf32> to vector<24x24xf32>
    %43 = arith.subf %39, %42 : vector<24x24xf32>
    %44 = math.exp %43 : vector<24x24xf32>
    %cst_16 = arith.constant dense<0.000000e+00> : vector<24xf32>
    %45 = vector.multi_reduction <add>, %44, %cst_16 [1] : vector<24x24xf32> to vector<24xf32>
    %46 = vector.shape_cast %45 : vector<24xf32> to vector<24x1xf32>
    %47 = tpu.reciprocal %46 {approx = true} : vector<24x1xf32> -> vector<24x1xf32>
    %48 = vector.broadcast %47 : vector<24x1xf32> to vector<24x24xf32>
    %49 = arith.mulf %44, %48 : vector<24x24xf32>
    %50 = arith.truncf %49 : vector<24x24xf32> to vector<24x24xbf16>
    %cst_17 = arith.constant dense<0.000000e+00> : vector<24x32xf32>
    %51 = tpu.matmul %50, %37, %cst_17 {dimension_numbers = #tpu.dot_dimension_numbers<[1], [0], [0], [1], [0, 0, 1, 1], [], []>} : vector<24x24xbf16>, vector<24x32xbf16>, vector<24x32xf32> -> vector<24x32xf32>
    %52 = arith.addf %31, %51 : vector<24x32xf32>
    %53 = vector.extract_strided_slice %9 {offsets = [0, 16], sizes = [24, 8], strides = [1, 1]} : vector<24x256xf32> to vector<24x8xf32>
    %54 = arith.truncf %53 : vector<24x8xf32> to vector<24x8xbf16>
    %55 = vector.extract_strided_slice %9 {offsets = [0, 48], sizes = [24, 8], strides = [1, 1]} : vector<24x256xf32> to vector<24x8xf32>
    %56 = arith.truncf %55 : vector<24x8xf32> to vector<24x8xbf16>
    %57 = vector.extract_strided_slice %9 {offsets = [0, 128], sizes = [24, 32], strides = [1, 1]} : vector<24x256xf32> to vector<24x32xf32>
    %58 = arith.truncf %57 : vector<24x32xf32> to vector<24x32xbf16>
    %cst_18 = arith.constant dense<0.000000e+00> : vector<24x24xf32>
    %59 = tpu.matmul %54, %56, %cst_18 {dimension_numbers = #tpu.dot_dimension_numbers<[1], [1], [0], [0], [0, 0, 1, 0], [], []>} : vector<24x8xbf16>, vector<24x8xbf16>, vector<24x24xf32> -> vector<24x24xf32>
    %60 = arith.addf %59, %1 : vector<24x24xf32>
    %cst_19 = arith.constant dense<0xFF800000> : vector<24xf32>
    %61 = vector.multi_reduction <maximumf>, %60, %cst_19 [1] : vector<24x24xf32> to vector<24xf32>
    %62 = vector.shape_cast %61 : vector<24xf32> to vector<24x1xf32>
    %63 = vector.broadcast %62 : vector<24x1xf32> to vector<24x24xf32>
    %64 = arith.subf %60, %63 : vector<24x24xf32>
    %65 = math.exp %64 : vector<24x24xf32>
    %cst_20 = arith.constant dense<0.000000e+00> : vector<24xf32>
    %66 = vector.multi_reduction <add>, %65, %cst_20 [1] : vector<24x24xf32> to vector<24xf32>
    %67 = vector.shape_cast %66 : vector<24xf32> to vector<24x1xf32>
    %68 = tpu.reciprocal %67 {approx = true} : vector<24x1xf32> -> vector<24x1xf32>
    %69 = vector.broadcast %68 : vector<24x1xf32> to vector<24x24xf32>
    %70 = arith.mulf %65, %69 : vector<24x24xf32>
    %71 = arith.truncf %70 : vector<24x24xf32> to vector<24x24xbf16>
    %cst_21 = arith.constant dense<0.000000e+00> : vector<24x32xf32>
    %72 = tpu.matmul %71, %58, %cst_21 {dimension_numbers = #tpu.dot_dimension_numbers<[1], [0], [0], [1], [0, 0, 1, 1], [], []>} : vector<24x24xbf16>, vector<24x32xbf16>, vector<24x32xf32> -> vector<24x32xf32>
    %73 = arith.addf %52, %72 : vector<24x32xf32>
    %74 = vector.extract_strided_slice %9 {offsets = [0, 24], sizes = [24, 8], strides = [1, 1]} : vector<24x256xf32> to vector<24x8xf32>
    %75 = arith.truncf %74 : vector<24x8xf32> to vector<24x8xbf16>
    %76 = vector.extract_strided_slice %9 {offsets = [0, 56], sizes = [24, 8], strides = [1, 1]} : vector<24x256xf32> to vector<24x8xf32>
    %77 = arith.truncf %76 : vector<24x8xf32> to vector<24x8xbf16>
    %78 = vector.extract_strided_slice %9 {offsets = [0, 160], sizes = [24, 32], strides = [1, 1]} : vector<24x256xf32> to vector<24x32xf32>
    %79 = arith.truncf %78 : vector<24x32xf32> to vector<24x32xbf16>
    %cst_22 = arith.constant dense<0.000000e+00> : vector<24x24xf32>
    %80 = tpu.matmul %75, %77, %cst_22 {dimension_numbers = #tpu.dot_dimension_numbers<[1], [1], [0], [0], [0, 0, 1, 0], [], []>} : vector<24x8xbf16>, vector<24x8xbf16>, vector<24x24xf32> -> vector<24x24xf32>
    %81 = arith.addf %80, %1 : vector<24x24xf32>
    %cst_23 = arith.constant dense<0xFF800000> : vector<24xf32>
    %82 = vector.multi_reduction <maximumf>, %81, %cst_23 [1] : vector<24x24xf32> to vector<24xf32>
    %83 = vector.shape_cast %82 : vector<24xf32> to vector<24x1xf32>
    %84 = vector.broadcast %83 : vector<24x1xf32> to vector<24x24xf32>
    %85 = arith.subf %81, %84 : vector<24x24xf32>
    %86 = math.exp %85 : vector<24x24xf32>
    %cst_24 = arith.constant dense<0.000000e+00> : vector<24xf32>
    %87 = vector.multi_reduction <add>, %86, %cst_24 [1] : vector<24x24xf32> to vector<24xf32>
    %88 = vector.shape_cast %87 : vector<24xf32> to vector<24x1xf32>
    %89 = tpu.reciprocal %88 {approx = true} : vector<24x1xf32> -> vector<24x1xf32>
    %90 = vector.broadcast %89 : vector<24x1xf32> to vector<24x24xf32>
    %91 = arith.mulf %86, %90 : vector<24x24xf32>
    %92 = arith.truncf %91 : vector<24x24xf32> to vector<24x24xbf16>
    %cst_25 = arith.constant dense<0.000000e+00> : vector<24x32xf32>
    %93 = tpu.matmul %92, %79, %cst_25 {dimension_numbers = #tpu.dot_dimension_numbers<[1], [0], [0], [1], [0, 0, 1, 1], [], []>} : vector<24x24xbf16>, vector<24x32xbf16>, vector<24x32xf32> -> vector<24x32xf32>
    %94 = arith.addf %73, %93 : vector<24x32xf32>
    %c0_26 = arith.constant 0 : index
    %c0_27 = arith.constant 0 : index
    %c0_28 = arith.constant 0 : index
    %95 = vector.load %arg4[%c0_26, %c0_27, %c0_28] : memref<2x1x32xf32, #tpu.memory_space<vmem>>, vector<1x1x32xf32>
    %96 = vector.shape_cast %95 : vector<1x1x32xf32> to vector<1x32xf32>
    %97 = vector.broadcast %96 : vector<1x32xf32> to vector<24x32xf32>
    %98 = arith.addf %94, %97 : vector<24x32xf32>
    %99 = arith.addf %0, %98 : vector<24x32xf32>
    %c0_29 = arith.constant 0 : index
    %c0_30 = arith.constant 0 : index
    %c0_31 = arith.constant 0 : index
    %100 = vector.load %arg5[%c0_29, %c0_30, %c0_31] : memref<2x1x32xf32, #tpu.memory_space<vmem>>, vector<1x1x32xf32>
    %101 = vector.shape_cast %100 : vector<1x1x32xf32> to vector<1x32xf32>
    %c0_32 = arith.constant 0 : index
    %c0_33 = arith.constant 0 : index
    %c0_34 = arith.constant 0 : index
    %102 = vector.load %arg6[%c0_32, %c0_33, %c0_34] : memref<2x1x32xf32, #tpu.memory_space<vmem>>, vector<1x1x32xf32>
    %103 = vector.shape_cast %102 : vector<1x1x32xf32> to vector<1x32xf32>
    %cst_35 = arith.constant dense<0.000000e+00> : vector<24xf32>
    %104 = vector.multi_reduction <add>, %99, %cst_35 [1] : vector<24x32xf32> to vector<24xf32>
    %105 = vector.shape_cast %104 : vector<24xf32> to vector<24x1xf32>
    %cst_36 = arith.constant 3.200000e+01 : f32
    %106 = vector.broadcast %cst_36 : f32 to vector<24x1xf32>
    %107 = arith.divf %105, %106 : vector<24x1xf32>
    %108 = vector.broadcast %107 : vector<24x1xf32> to vector<24x32xf32>
    %109 = arith.subf %99, %108 : vector<24x32xf32>
    %110 = arith.mulf %109, %109 : vector<24x32xf32>
    %cst_37 = arith.constant dense<0.000000e+00> : vector<24xf32>
    %111 = vector.multi_reduction <add>, %110, %cst_37 [1] : vector<24x32xf32> to vector<24xf32>
    %112 = vector.shape_cast %111 : vector<24xf32> to vector<24x1xf32>
    %cst_38 = arith.constant 3.200000e+01 : f32
    %113 = vector.broadcast %cst_38 : f32 to vector<24x1xf32>
    %114 = arith.divf %112, %113 : vector<24x1xf32>
    %115 = vector.broadcast %107 : vector<24x1xf32> to vector<24x32xf32>
    %116 = arith.subf %99, %115 : vector<24x32xf32>
    %cst_39 = arith.constant 9.99999974E-6 : f32
    %117 = vector.broadcast %cst_39 : f32 to vector<24x1xf32>
    %118 = arith.addf %114, %117 : vector<24x1xf32>
    %119 = math.rsqrt %118 : vector<24x1xf32>
    %120 = vector.broadcast %119 : vector<24x1xf32> to vector<24x32xf32>
    %121 = arith.mulf %116, %120 : vector<24x32xf32>
    %122 = vector.broadcast %101 : vector<1x32xf32> to vector<24x32xf32>
    %123 = arith.mulf %121, %122 : vector<24x32xf32>
    %124 = vector.broadcast %103 : vector<1x32xf32> to vector<24x32xf32>
    %125 = arith.addf %123, %124 : vector<24x32xf32>
    %126 = arith.truncf %125 : vector<24x32xf32> to vector<24x32xbf16>
    %cst_40 = arith.constant 0.000000e+00 : f32
    %127 = vector.broadcast %cst_40 : f32 to vector<24x32xf32>
    %c0_41 = arith.constant 0 : index
    %c0_42 = arith.constant 0 : index
    %c0_43 = arith.constant 0 : index
    %128 = vector.load %arg7[%c0_41, %c0_42, %c0_43] : memref<2x32x2048xbf16, #tpu.memory_space<vmem>>, vector<1x32x1024xbf16>
    %129 = vector.shape_cast %128 : vector<1x32x1024xbf16> to vector<32x1024xbf16>
    %cst_44 = arith.constant dense<0.000000e+00> : vector<24x1024xf32>
    %130 = tpu.matmul %126, %129, %cst_44 {dimension_numbers = #tpu.dot_dimension_numbers<[1], [0], [0], [1], [0, 0, 1, 1], [], []>} : vector<24x32xbf16>, vector<32x1024xbf16>, vector<24x1024xf32> -> vector<24x1024xf32>
    %c0_45 = arith.constant 0 : index
    %c0_46 = arith.constant 0 : index
    %c0_47 = arith.constant 0 : index
    %131 = vector.load %arg8[%c0_45, %c0_46, %c0_47] : memref<2x1x2048xf32, #tpu.memory_space<vmem>>, vector<1x1x1024xf32>
    %132 = vector.shape_cast %131 : vector<1x1x1024xf32> to vector<1x1024xf32>
    %133 = vector.broadcast %132 : vector<1x1024xf32> to vector<24x1024xf32>
    %134 = arith.addf %130, %133 : vector<24x1024xf32>
    %cst_48 = arith.constant 0.000000e+00 : f32
    %135 = vector.broadcast %cst_48 : f32 to vector<24x1024xf32>
    %136 = arith.maximumf %134, %135 : vector<24x1024xf32>
    %137 = arith.truncf %136 : vector<24x1024xf32> to vector<24x1024xbf16>
    %c0_49 = arith.constant 0 : index
    %c0_50 = arith.constant 0 : index
    %c0_51 = arith.constant 0 : index
    %138 = vector.load %arg9[%c0_49, %c0_50, %c0_51] : memref<2x2048x32xbf16, #tpu.memory_space<vmem>>, vector<1x1024x32xbf16>
    %139 = vector.shape_cast %138 : vector<1x1024x32xbf16> to vector<1024x32xbf16>
    %cst_52 = arith.constant dense<0.000000e+00> : vector<24x32xf32>
    %140 = tpu.matmul %137, %139, %cst_52 {dimension_numbers = #tpu.dot_dimension_numbers<[1], [0], [0], [1], [0, 0, 1, 1], [], []>} : vector<24x1024xbf16>, vector<1024x32xbf16>, vector<24x32xf32> -> vector<24x32xf32>
    %141 = arith.addf %127, %140 : vector<24x32xf32>
    %c0_53 = arith.constant 0 : index
    %c0_54 = arith.constant 0 : index
    %c1024 = arith.constant 1024 : index
    %142 = vector.load %arg7[%c0_53, %c0_54, %c1024] : memref<2x32x2048xbf16, #tpu.memory_space<vmem>>, vector<1x32x1024xbf16>
    %143 = vector.shape_cast %142 : vector<1x32x1024xbf16> to vector<32x1024xbf16>
    %cst_55 = arith.constant dense<0.000000e+00> : vector<24x1024xf32>
    %144 = tpu.matmul %126, %143, %cst_55 {dimension_numbers = #tpu.dot_dimension_numbers<[1], [0], [0], [1], [0, 0, 1, 1], [], []>} : vector<24x32xbf16>, vector<32x1024xbf16>, vector<24x1024xf32> -> vector<24x1024xf32>
    %c0_56 = arith.constant 0 : index
    %c0_57 = arith.constant 0 : index
    %c1024_58 = arith.constant 1024 : index
    %145 = vector.load %arg8[%c0_56, %c0_57, %c1024_58] : memref<2x1x2048xf32, #tpu.memory_space<vmem>>, vector<1x1x1024xf32>
    %146 = vector.shape_cast %145 : vector<1x1x1024xf32> to vector<1x1024xf32>
    %147 = vector.broadcast %146 : vector<1x1024xf32> to vector<24x1024xf32>
    %148 = arith.addf %144, %147 : vector<24x1024xf32>
    %cst_59 = arith.constant 0.000000e+00 : f32
    %149 = vector.broadcast %cst_59 : f32 to vector<24x1024xf32>
    %150 = arith.maximumf %148, %149 : vector<24x1024xf32>
    %151 = arith.truncf %150 : vector<24x1024xf32> to vector<24x1024xbf16>
    %c0_60 = arith.constant 0 : index
    %c1024_61 = arith.constant 1024 : index
    %c0_62 = arith.constant 0 : index
    %152 = vector.load %arg9[%c0_60, %c1024_61, %c0_62] : memref<2x2048x32xbf16, #tpu.memory_space<vmem>>, vector<1x1024x32xbf16>
    %153 = vector.shape_cast %152 : vector<1x1024x32xbf16> to vector<1024x32xbf16>
    %cst_63 = arith.constant dense<0.000000e+00> : vector<24x32xf32>
    %154 = tpu.matmul %151, %153, %cst_63 {dimension_numbers = #tpu.dot_dimension_numbers<[1], [0], [0], [1], [0, 0, 1, 1], [], []>} : vector<24x1024xbf16>, vector<1024x32xbf16>, vector<24x32xf32> -> vector<24x32xf32>
    %155 = arith.addf %141, %154 : vector<24x32xf32>
    %c0_64 = arith.constant 0 : index
    %c0_65 = arith.constant 0 : index
    %c0_66 = arith.constant 0 : index
    %156 = vector.load %arg10[%c0_64, %c0_65, %c0_66] : memref<2x1x32xf32, #tpu.memory_space<vmem>>, vector<1x1x32xf32>
    %157 = vector.shape_cast %156 : vector<1x1x32xf32> to vector<1x32xf32>
    %158 = vector.broadcast %157 : vector<1x32xf32> to vector<24x32xf32>
    %159 = arith.addf %155, %158 : vector<24x32xf32>
    %160 = arith.addf %125, %159 : vector<24x32xf32>
    %c0_67 = arith.constant 0 : index
    %c0_68 = arith.constant 0 : index
    %c0_69 = arith.constant 0 : index
    %161 = vector.load %arg11[%c0_67, %c0_68, %c0_69] : memref<2x1x32xf32, #tpu.memory_space<vmem>>, vector<1x1x32xf32>
    %162 = vector.shape_cast %161 : vector<1x1x32xf32> to vector<1x32xf32>
    %c0_70 = arith.constant 0 : index
    %c0_71 = arith.constant 0 : index
    %c0_72 = arith.constant 0 : index
    %163 = vector.load %arg12[%c0_70, %c0_71, %c0_72] : memref<2x1x32xf32, #tpu.memory_space<vmem>>, vector<1x1x32xf32>
    %164 = vector.shape_cast %163 : vector<1x1x32xf32> to vector<1x32xf32>
    %cst_73 = arith.constant dense<0.000000e+00> : vector<24xf32>
    %165 = vector.multi_reduction <add>, %160, %cst_73 [1] : vector<24x32xf32> to vector<24xf32>
    %166 = vector.shape_cast %165 : vector<24xf32> to vector<24x1xf32>
    %cst_74 = arith.constant 3.200000e+01 : f32
    %167 = vector.broadcast %cst_74 : f32 to vector<24x1xf32>
    %168 = arith.divf %166, %167 : vector<24x1xf32>
    %169 = vector.broadcast %168 : vector<24x1xf32> to vector<24x32xf32>
    %170 = arith.subf %160, %169 : vector<24x32xf32>
    %171 = arith.mulf %170, %170 : vector<24x32xf32>
    %cst_75 = arith.constant dense<0.000000e+00> : vector<24xf32>
    %172 = vector.multi_reduction <add>, %171, %cst_75 [1] : vector<24x32xf32> to vector<24xf32>
    %173 = vector.shape_cast %172 : vector<24xf32> to vector<24x1xf32>
    %cst_76 = arith.constant 3.200000e+01 : f32
    %174 = vector.broadcast %cst_76 : f32 to vector<24x1xf32>
    %175 = arith.divf %173, %174 : vector<24x1xf32>
    %176 = vector.broadcast %168 : vector<24x1xf32> to vector<24x32xf32>
    %177 = arith.subf %160, %176 : vector<24x32xf32>
    %cst_77 = arith.constant 9.99999974E-6 : f32
    %178 = vector.broadcast %cst_77 : f32 to vector<24x1xf32>
    %179 = arith.addf %175, %178 : vector<24x1xf32>
    %180 = math.rsqrt %179 : vector<24x1xf32>
    %181 = vector.broadcast %180 : vector<24x1xf32> to vector<24x32xf32>
    %182 = arith.mulf %177, %181 : vector<24x32xf32>
    %183 = vector.broadcast %162 : vector<1x32xf32> to vector<24x32xf32>
    %184 = arith.mulf %182, %183 : vector<24x32xf32>
    %185 = vector.broadcast %164 : vector<1x32xf32> to vector<24x32xf32>
    %186 = arith.addf %184, %185 : vector<24x32xf32>
    %187 = arith.truncf %186 : vector<24x32xf32> to vector<24x32xbf16>
    %c1 = arith.constant 1 : index
    %c0_78 = arith.constant 0 : index
    %c0_79 = arith.constant 0 : index
    %188 = vector.load %arg2[%c1, %c0_78, %c0_79] : memref<2x32x256xbf16, #tpu.memory_space<vmem>>, vector<1x32x256xbf16>
    %189 = vector.shape_cast %188 : vector<1x32x256xbf16> to vector<32x256xbf16>
    %cst_80 = arith.constant dense<0.000000e+00> : vector<24x256xf32>
    %190 = tpu.matmul %187, %189, %cst_80 {dimension_numbers = #tpu.dot_dimension_numbers<[1], [0], [0], [1], [0, 0, 1, 1], [], []>} : vector<24x32xbf16>, vector<32x256xbf16>, vector<24x256xf32> -> vector<24x256xf32>
    %c1_81 = arith.constant 1 : index
    %c0_82 = arith.constant 0 : index
    %c0_83 = arith.constant 0 : index
    %191 = vector.load %arg3[%c1_81, %c0_82, %c0_83] : memref<2x1x256xf32, #tpu.memory_space<vmem>>, vector<1x1x256xf32>
    %192 = vector.shape_cast %191 : vector<1x1x256xf32> to vector<1x256xf32>
    %193 = vector.broadcast %192 : vector<1x256xf32> to vector<24x256xf32>
    %194 = arith.addf %190, %193 : vector<24x256xf32>
    %cst_84 = arith.constant 0.000000e+00 : f32
    %195 = vector.broadcast %cst_84 : f32 to vector<24x32xf32>
    %196 = vector.extract_strided_slice %194 {offsets = [0, 0], sizes = [24, 8], strides = [1, 1]} : vector<24x256xf32> to vector<24x8xf32>
    %197 = arith.truncf %196 : vector<24x8xf32> to vector<24x8xbf16>
    %198 = vector.extract_strided_slice %194 {offsets = [0, 32], sizes = [24, 8], strides = [1, 1]} : vector<24x256xf32> to vector<24x8xf32>
    %199 = arith.truncf %198 : vector<24x8xf32> to vector<24x8xbf16>
    %200 = vector.extract_strided_slice %194 {offsets = [0, 64], sizes = [24, 32], strides = [1, 1]} : vector<24x256xf32> to vector<24x32xf32>
    %201 = arith.truncf %200 : vector<24x32xf32> to vector<24x32xbf16>
    %cst_85 = arith.constant dense<0.000000e+00> : vector<24x24xf32>
    %202 = tpu.matmul %197, %199, %cst_85 {dimension_numbers = #tpu.dot_dimension_numbers<[1], [1], [0], [0], [0, 0, 1, 0], [], []>} : vector<24x8xbf16>, vector<24x8xbf16>, vector<24x24xf32> -> vector<24x24xf32>
    %203 = arith.addf %202, %1 : vector<24x24xf32>
    %cst_86 = arith.constant dense<0xFF800000> : vector<24xf32>
    %204 = vector.multi_reduction <maximumf>, %203, %cst_86 [1] : vector<24x24xf32> to vector<24xf32>
    %205 = vector.shape_cast %204 : vector<24xf32> to vector<24x1xf32>
    %206 = vector.broadcast %205 : vector<24x1xf32> to vector<24x24xf32>
    %207 = arith.subf %203, %206 : vector<24x24xf32>
    %208 = math.exp %207 : vector<24x24xf32>
    %cst_87 = arith.constant dense<0.000000e+00> : vector<24xf32>
    %209 = vector.multi_reduction <add>, %208, %cst_87 [1] : vector<24x24xf32> to vector<24xf32>
    %210 = vector.shape_cast %209 : vector<24xf32> to vector<24x1xf32>
    %211 = tpu.reciprocal %210 {approx = true} : vector<24x1xf32> -> vector<24x1xf32>
    %212 = vector.broadcast %211 : vector<24x1xf32> to vector<24x24xf32>
    %213 = arith.mulf %208, %212 : vector<24x24xf32>
    %214 = arith.truncf %213 : vector<24x24xf32> to vector<24x24xbf16>
    %cst_88 = arith.constant dense<0.000000e+00> : vector<24x32xf32>
    %215 = tpu.matmul %214, %201, %cst_88 {dimension_numbers = #tpu.dot_dimension_numbers<[1], [0], [0], [1], [0, 0, 1, 1], [], []>} : vector<24x24xbf16>, vector<24x32xbf16>, vector<24x32xf32> -> vector<24x32xf32>
    %216 = arith.addf %195, %215 : vector<24x32xf32>
    %217 = vector.extract_strided_slice %194 {offsets = [0, 8], sizes = [24, 8], strides = [1, 1]} : vector<24x256xf32> to vector<24x8xf32>
    %218 = arith.truncf %217 : vector<24x8xf32> to vector<24x8xbf16>
    %219 = vector.extract_strided_slice %194 {offsets = [0, 40], sizes = [24, 8], strides = [1, 1]} : vector<24x256xf32> to vector<24x8xf32>
    %220 = arith.truncf %219 : vector<24x8xf32> to vector<24x8xbf16>
    %221 = vector.extract_strided_slice %194 {offsets = [0, 96], sizes = [24, 32], strides = [1, 1]} : vector<24x256xf32> to vector<24x32xf32>
    %222 = arith.truncf %221 : vector<24x32xf32> to vector<24x32xbf16>
    %cst_89 = arith.constant dense<0.000000e+00> : vector<24x24xf32>
    %223 = tpu.matmul %218, %220, %cst_89 {dimension_numbers = #tpu.dot_dimension_numbers<[1], [1], [0], [0], [0, 0, 1, 0], [], []>} : vector<24x8xbf16>, vector<24x8xbf16>, vector<24x24xf32> -> vector<24x24xf32>
    %224 = arith.addf %223, %1 : vector<24x24xf32>
    %cst_90 = arith.constant dense<0xFF800000> : vector<24xf32>
    %225 = vector.multi_reduction <maximumf>, %224, %cst_90 [1] : vector<24x24xf32> to vector<24xf32>
    %226 = vector.shape_cast %225 : vector<24xf32> to vector<24x1xf32>
    %227 = vector.broadcast %226 : vector<24x1xf32> to vector<24x24xf32>
    %228 = arith.subf %224, %227 : vector<24x24xf32>
    %229 = math.exp %228 : vector<24x24xf32>
    %cst_91 = arith.constant dense<0.000000e+00> : vector<24xf32>
    %230 = vector.multi_reduction <add>, %229, %cst_91 [1] : vector<24x24xf32> to vector<24xf32>
    %231 = vector.shape_cast %230 : vector<24xf32> to vector<24x1xf32>
    %232 = tpu.reciprocal %231 {approx = true} : vector<24x1xf32> -> vector<24x1xf32>
    %233 = vector.broadcast %232 : vector<24x1xf32> to vector<24x24xf32>
    %234 = arith.mulf %229, %233 : vector<24x24xf32>
    %235 = arith.truncf %234 : vector<24x24xf32> to vector<24x24xbf16>
    %cst_92 = arith.constant dense<0.000000e+00> : vector<24x32xf32>
    %236 = tpu.matmul %235, %222, %cst_92 {dimension_numbers = #tpu.dot_dimension_numbers<[1], [0], [0], [1], [0, 0, 1, 1], [], []>} : vector<24x24xbf16>, vector<24x32xbf16>, vector<24x32xf32> -> vector<24x32xf32>
    %237 = arith.addf %216, %236 : vector<24x32xf32>
    %238 = vector.extract_strided_slice %194 {offsets = [0, 16], sizes = [24, 8], strides = [1, 1]} : vector<24x256xf32> to vector<24x8xf32>
    %239 = arith.truncf %238 : vector<24x8xf32> to vector<24x8xbf16>
    %240 = vector.extract_strided_slice %194 {offsets = [0, 48], sizes = [24, 8], strides = [1, 1]} : vector<24x256xf32> to vector<24x8xf32>
    %241 = arith.truncf %240 : vector<24x8xf32> to vector<24x8xbf16>
    %242 = vector.extract_strided_slice %194 {offsets = [0, 128], sizes = [24, 32], strides = [1, 1]} : vector<24x256xf32> to vector<24x32xf32>
    %243 = arith.truncf %242 : vector<24x32xf32> to vector<24x32xbf16>
    %cst_93 = arith.constant dense<0.000000e+00> : vector<24x24xf32>
    %244 = tpu.matmul %239, %241, %cst_93 {dimension_numbers = #tpu.dot_dimension_numbers<[1], [1], [0], [0], [0, 0, 1, 0], [], []>} : vector<24x8xbf16>, vector<24x8xbf16>, vector<24x24xf32> -> vector<24x24xf32>
    %245 = arith.addf %244, %1 : vector<24x24xf32>
    %cst_94 = arith.constant dense<0xFF800000> : vector<24xf32>
    %246 = vector.multi_reduction <maximumf>, %245, %cst_94 [1] : vector<24x24xf32> to vector<24xf32>
    %247 = vector.shape_cast %246 : vector<24xf32> to vector<24x1xf32>
    %248 = vector.broadcast %247 : vector<24x1xf32> to vector<24x24xf32>
    %249 = arith.subf %245, %248 : vector<24x24xf32>
    %250 = math.exp %249 : vector<24x24xf32>
    %cst_95 = arith.constant dense<0.000000e+00> : vector<24xf32>
    %251 = vector.multi_reduction <add>, %250, %cst_95 [1] : vector<24x24xf32> to vector<24xf32>
    %252 = vector.shape_cast %251 : vector<24xf32> to vector<24x1xf32>
    %253 = tpu.reciprocal %252 {approx = true} : vector<24x1xf32> -> vector<24x1xf32>
    %254 = vector.broadcast %253 : vector<24x1xf32> to vector<24x24xf32>
    %255 = arith.mulf %250, %254 : vector<24x24xf32>
    %256 = arith.truncf %255 : vector<24x24xf32> to vector<24x24xbf16>
    %cst_96 = arith.constant dense<0.000000e+00> : vector<24x32xf32>
    %257 = tpu.matmul %256, %243, %cst_96 {dimension_numbers = #tpu.dot_dimension_numbers<[1], [0], [0], [1], [0, 0, 1, 1], [], []>} : vector<24x24xbf16>, vector<24x32xbf16>, vector<24x32xf32> -> vector<24x32xf32>
    %258 = arith.addf %237, %257 : vector<24x32xf32>
    %259 = vector.extract_strided_slice %194 {offsets = [0, 24], sizes = [24, 8], strides = [1, 1]} : vector<24x256xf32> to vector<24x8xf32>
    %260 = arith.truncf %259 : vector<24x8xf32> to vector<24x8xbf16>
    %261 = vector.extract_strided_slice %194 {offsets = [0, 56], sizes = [24, 8], strides = [1, 1]} : vector<24x256xf32> to vector<24x8xf32>
    %262 = arith.truncf %261 : vector<24x8xf32> to vector<24x8xbf16>
    %263 = vector.extract_strided_slice %194 {offsets = [0, 160], sizes = [24, 32], strides = [1, 1]} : vector<24x256xf32> to vector<24x32xf32>
    %264 = arith.truncf %263 : vector<24x32xf32> to vector<24x32xbf16>
    %cst_97 = arith.constant dense<0.000000e+00> : vector<24x24xf32>
    %265 = tpu.matmul %260, %262, %cst_97 {dimension_numbers = #tpu.dot_dimension_numbers<[1], [1], [0], [0], [0, 0, 1, 0], [], []>} : vector<24x8xbf16>, vector<24x8xbf16>, vector<24x24xf32> -> vector<24x24xf32>
    %266 = arith.addf %265, %1 : vector<24x24xf32>
    %cst_98 = arith.constant dense<0xFF800000> : vector<24xf32>
    %267 = vector.multi_reduction <maximumf>, %266, %cst_98 [1] : vector<24x24xf32> to vector<24xf32>
    %268 = vector.shape_cast %267 : vector<24xf32> to vector<24x1xf32>
    %269 = vector.broadcast %268 : vector<24x1xf32> to vector<24x24xf32>
    %270 = arith.subf %266, %269 : vector<24x24xf32>
    %271 = math.exp %270 : vector<24x24xf32>
    %cst_99 = arith.constant dense<0.000000e+00> : vector<24xf32>
    %272 = vector.multi_reduction <add>, %271, %cst_99 [1] : vector<24x24xf32> to vector<24xf32>
    %273 = vector.shape_cast %272 : vector<24xf32> to vector<24x1xf32>
    %274 = tpu.reciprocal %273 {approx = true} : vector<24x1xf32> -> vector<24x1xf32>
    %275 = vector.broadcast %274 : vector<24x1xf32> to vector<24x24xf32>
    %276 = arith.mulf %271, %275 : vector<24x24xf32>
    %277 = arith.truncf %276 : vector<24x24xf32> to vector<24x24xbf16>
    %cst_100 = arith.constant dense<0.000000e+00> : vector<24x32xf32>
    %278 = tpu.matmul %277, %264, %cst_100 {dimension_numbers = #tpu.dot_dimension_numbers<[1], [0], [0], [1], [0, 0, 1, 1], [], []>} : vector<24x24xbf16>, vector<24x32xbf16>, vector<24x32xf32> -> vector<24x32xf32>
    %279 = arith.addf %258, %278 : vector<24x32xf32>
    %c1_101 = arith.constant 1 : index
    %c0_102 = arith.constant 0 : index
    %c0_103 = arith.constant 0 : index
    %280 = vector.load %arg4[%c1_101, %c0_102, %c0_103] : memref<2x1x32xf32, #tpu.memory_space<vmem>>, vector<1x1x32xf32>
    %281 = vector.shape_cast %280 : vector<1x1x32xf32> to vector<1x32xf32>
    %282 = vector.broadcast %281 : vector<1x32xf32> to vector<24x32xf32>
    %283 = arith.addf %279, %282 : vector<24x32xf32>
    %284 = arith.addf %186, %283 : vector<24x32xf32>
    %c1_104 = arith.constant 1 : index
    %c0_105 = arith.constant 0 : index
    %c0_106 = arith.constant 0 : index
    %285 = vector.load %arg5[%c1_104, %c0_105, %c0_106] : memref<2x1x32xf32, #tpu.memory_space<vmem>>, vector<1x1x32xf32>
    %286 = vector.shape_cast %285 : vector<1x1x32xf32> to vector<1x32xf32>
    %c1_107 = arith.constant 1 : index
    %c0_108 = arith.constant 0 : index
    %c0_109 = arith.constant 0 : index
    %287 = vector.load %arg6[%c1_107, %c0_108, %c0_109] : memref<2x1x32xf32, #tpu.memory_space<vmem>>, vector<1x1x32xf32>
    %288 = vector.shape_cast %287 : vector<1x1x32xf32> to vector<1x32xf32>
    %cst_110 = arith.constant dense<0.000000e+00> : vector<24xf32>
    %289 = vector.multi_reduction <add>, %284, %cst_110 [1] : vector<24x32xf32> to vector<24xf32>
    %290 = vector.shape_cast %289 : vector<24xf32> to vector<24x1xf32>
    %cst_111 = arith.constant 3.200000e+01 : f32
    %291 = vector.broadcast %cst_111 : f32 to vector<24x1xf32>
    %292 = arith.divf %290, %291 : vector<24x1xf32>
    %293 = vector.broadcast %292 : vector<24x1xf32> to vector<24x32xf32>
    %294 = arith.subf %284, %293 : vector<24x32xf32>
    %295 = arith.mulf %294, %294 : vector<24x32xf32>
    %cst_112 = arith.constant dense<0.000000e+00> : vector<24xf32>
    %296 = vector.multi_reduction <add>, %295, %cst_112 [1] : vector<24x32xf32> to vector<24xf32>
    %297 = vector.shape_cast %296 : vector<24xf32> to vector<24x1xf32>
    %cst_113 = arith.constant 3.200000e+01 : f32
    %298 = vector.broadcast %cst_113 : f32 to vector<24x1xf32>
    %299 = arith.divf %297, %298 : vector<24x1xf32>
    %300 = vector.broadcast %292 : vector<24x1xf32> to vector<24x32xf32>
    %301 = arith.subf %284, %300 : vector<24x32xf32>
    %cst_114 = arith.constant 9.99999974E-6 : f32
    %302 = vector.broadcast %cst_114 : f32 to vector<24x1xf32>
    %303 = arith.addf %299, %302 : vector<24x1xf32>
    %304 = math.rsqrt %303 : vector<24x1xf32>
    %305 = vector.broadcast %304 : vector<24x1xf32> to vector<24x32xf32>
    %306 = arith.mulf %301, %305 : vector<24x32xf32>
    %307 = vector.broadcast %286 : vector<1x32xf32> to vector<24x32xf32>
    %308 = arith.mulf %306, %307 : vector<24x32xf32>
    %309 = vector.broadcast %288 : vector<1x32xf32> to vector<24x32xf32>
    %310 = arith.addf %308, %309 : vector<24x32xf32>
    %311 = arith.truncf %310 : vector<24x32xf32> to vector<24x32xbf16>
    %cst_115 = arith.constant 0.000000e+00 : f32
    %312 = vector.broadcast %cst_115 : f32 to vector<24x32xf32>
    %c1_116 = arith.constant 1 : index
    %c0_117 = arith.constant 0 : index
    %c0_118 = arith.constant 0 : index
    %313 = vector.load %arg7[%c1_116, %c0_117, %c0_118] : memref<2x32x2048xbf16, #tpu.memory_space<vmem>>, vector<1x32x1024xbf16>
    %314 = vector.shape_cast %313 : vector<1x32x1024xbf16> to vector<32x1024xbf16>
    %cst_119 = arith.constant dense<0.000000e+00> : vector<24x1024xf32>
    %315 = tpu.matmul %311, %314, %cst_119 {dimension_numbers = #tpu.dot_dimension_numbers<[1], [0], [0], [1], [0, 0, 1, 1], [], []>} : vector<24x32xbf16>, vector<32x1024xbf16>, vector<24x1024xf32> -> vector<24x1024xf32>
    %c1_120 = arith.constant 1 : index
    %c0_121 = arith.constant 0 : index
    %c0_122 = arith.constant 0 : index
    %316 = vector.load %arg8[%c1_120, %c0_121, %c0_122] : memref<2x1x2048xf32, #tpu.memory_space<vmem>>, vector<1x1x1024xf32>
    %317 = vector.shape_cast %316 : vector<1x1x1024xf32> to vector<1x1024xf32>
    %318 = vector.broadcast %317 : vector<1x1024xf32> to vector<24x1024xf32>
    %319 = arith.addf %315, %318 : vector<24x1024xf32>
    %cst_123 = arith.constant 0.000000e+00 : f32
    %320 = vector.broadcast %cst_123 : f32 to vector<24x1024xf32>
    %321 = arith.maximumf %319, %320 : vector<24x1024xf32>
    %322 = arith.truncf %321 : vector<24x1024xf32> to vector<24x1024xbf16>
    %c1_124 = arith.constant 1 : index
    %c0_125 = arith.constant 0 : index
    %c0_126 = arith.constant 0 : index
    %323 = vector.load %arg9[%c1_124, %c0_125, %c0_126] : memref<2x2048x32xbf16, #tpu.memory_space<vmem>>, vector<1x1024x32xbf16>
    %324 = vector.shape_cast %323 : vector<1x1024x32xbf16> to vector<1024x32xbf16>
    %cst_127 = arith.constant dense<0.000000e+00> : vector<24x32xf32>
    %325 = tpu.matmul %322, %324, %cst_127 {dimension_numbers = #tpu.dot_dimension_numbers<[1], [0], [0], [1], [0, 0, 1, 1], [], []>} : vector<24x1024xbf16>, vector<1024x32xbf16>, vector<24x32xf32> -> vector<24x32xf32>
    %326 = arith.addf %312, %325 : vector<24x32xf32>
    %c1_128 = arith.constant 1 : index
    %c0_129 = arith.constant 0 : index
    %c1024_130 = arith.constant 1024 : index
    %327 = vector.load %arg7[%c1_128, %c0_129, %c1024_130] : memref<2x32x2048xbf16, #tpu.memory_space<vmem>>, vector<1x32x1024xbf16>
    %328 = vector.shape_cast %327 : vector<1x32x1024xbf16> to vector<32x1024xbf16>
    %cst_131 = arith.constant dense<0.000000e+00> : vector<24x1024xf32>
    %329 = tpu.matmul %311, %328, %cst_131 {dimension_numbers = #tpu.dot_dimension_numbers<[1], [0], [0], [1], [0, 0, 1, 1], [], []>} : vector<24x32xbf16>, vector<32x1024xbf16>, vector<24x1024xf32> -> vector<24x1024xf32>
    %c1_132 = arith.constant 1 : index
    %c0_133 = arith.constant 0 : index
    %c1024_134 = arith.constant 1024 : index
    %330 = vector.load %arg8[%c1_132, %c0_133, %c1024_134] : memref<2x1x2048xf32, #tpu.memory_space<vmem>>, vector<1x1x1024xf32>
    %331 = vector.shape_cast %330 : vector<1x1x1024xf32> to vector<1x1024xf32>
    %332 = vector.broadcast %331 : vector<1x1024xf32> to vector<24x1024xf32>
    %333 = arith.addf %329, %332 : vector<24x1024xf32>
    %cst_135 = arith.constant 0.000000e+00 : f32
    %334 = vector.broadcast %cst_135 : f32 to vector<24x1024xf32>
    %335 = arith.maximumf %333, %334 : vector<24x1024xf32>
    %336 = arith.truncf %335 : vector<24x1024xf32> to vector<24x1024xbf16>
    %c1_136 = arith.constant 1 : index
    %c1024_137 = arith.constant 1024 : index
    %c0_138 = arith.constant 0 : index
    %337 = vector.load %arg9[%c1_136, %c1024_137, %c0_138] : memref<2x2048x32xbf16, #tpu.memory_space<vmem>>, vector<1x1024x32xbf16>
    %338 = vector.shape_cast %337 : vector<1x1024x32xbf16> to vector<1024x32xbf16>
    %cst_139 = arith.constant dense<0.000000e+00> : vector<24x32xf32>
    %339 = tpu.matmul %336, %338, %cst_139 {dimension_numbers = #tpu.dot_dimension_numbers<[1], [0], [0], [1], [0, 0, 1, 1], [], []>} : vector<24x1024xbf16>, vector<1024x32xbf16>, vector<24x32xf32> -> vector<24x32xf32>
    %340 = arith.addf %326, %339 : vector<24x32xf32>
    %c1_140 = arith.constant 1 : index
    %c0_141 = arith.constant 0 : index
    %c0_142 = arith.constant 0 : index
    %341 = vector.load %arg10[%c1_140, %c0_141, %c0_142] : memref<2x1x32xf32, #tpu.memory_space<vmem>>, vector<1x1x32xf32>
    %342 = vector.shape_cast %341 : vector<1x1x32xf32> to vector<1x32xf32>
    %343 = vector.broadcast %342 : vector<1x32xf32> to vector<24x32xf32>
    %344 = arith.addf %340, %343 : vector<24x32xf32>
    %345 = arith.addf %310, %344 : vector<24x32xf32>
    %c1_143 = arith.constant 1 : index
    %c0_144 = arith.constant 0 : index
    %c0_145 = arith.constant 0 : index
    %346 = vector.load %arg11[%c1_143, %c0_144, %c0_145] : memref<2x1x32xf32, #tpu.memory_space<vmem>>, vector<1x1x32xf32>
    %347 = vector.shape_cast %346 : vector<1x1x32xf32> to vector<1x32xf32>
    %c1_146 = arith.constant 1 : index
    %c0_147 = arith.constant 0 : index
    %c0_148 = arith.constant 0 : index
    %348 = vector.load %arg12[%c1_146, %c0_147, %c0_148] : memref<2x1x32xf32, #tpu.memory_space<vmem>>, vector<1x1x32xf32>
    %349 = vector.shape_cast %348 : vector<1x1x32xf32> to vector<1x32xf32>
    %cst_149 = arith.constant dense<0.000000e+00> : vector<24xf32>
    %350 = vector.multi_reduction <add>, %345, %cst_149 [1] : vector<24x32xf32> to vector<24xf32>
    %351 = vector.shape_cast %350 : vector<24xf32> to vector<24x1xf32>
    %cst_150 = arith.constant 3.200000e+01 : f32
    %352 = vector.broadcast %cst_150 : f32 to vector<24x1xf32>
    %353 = arith.divf %351, %352 : vector<24x1xf32>
    %354 = vector.broadcast %353 : vector<24x1xf32> to vector<24x32xf32>
    %355 = arith.subf %345, %354 : vector<24x32xf32>
    %356 = arith.mulf %355, %355 : vector<24x32xf32>
    %cst_151 = arith.constant dense<0.000000e+00> : vector<24xf32>
    %357 = vector.multi_reduction <add>, %356, %cst_151 [1] : vector<24x32xf32> to vector<24xf32>
    %358 = vector.shape_cast %357 : vector<24xf32> to vector<24x1xf32>
    %cst_152 = arith.constant 3.200000e+01 : f32
    %359 = vector.broadcast %cst_152 : f32 to vector<24x1xf32>
    %360 = arith.divf %358, %359 : vector<24x1xf32>
    %361 = vector.broadcast %353 : vector<24x1xf32> to vector<24x32xf32>
    %362 = arith.subf %345, %361 : vector<24x32xf32>
    %cst_153 = arith.constant 9.99999974E-6 : f32
    %363 = vector.broadcast %cst_153 : f32 to vector<24x1xf32>
    %364 = arith.addf %360, %363 : vector<24x1xf32>
    %365 = math.rsqrt %364 : vector<24x1xf32>
    %366 = vector.broadcast %365 : vector<24x1xf32> to vector<24x32xf32>
    %367 = arith.mulf %362, %366 : vector<24x32xf32>
    %368 = vector.broadcast %347 : vector<1x32xf32> to vector<24x32xf32>
    %369 = arith.mulf %367, %368 : vector<24x32xf32>
    %370 = vector.broadcast %349 : vector<1x32xf32> to vector<24x32xf32>
    %371 = arith.addf %369, %370 : vector<24x32xf32>
    %372 = arith.truncf %371 : vector<24x32xf32> to vector<24x32xbf16>
    %c0_154 = arith.constant 0 : index
    %c0_155 = arith.constant 0 : index
    %373 = vector.load %arg13[%c0_154, %c0_155] : memref<32x128xbf16, #tpu.memory_space<vmem>>, vector<32x128xbf16>
    %cst_156 = arith.constant dense<0.000000e+00> : vector<24x128xf32>
    %374 = tpu.matmul %372, %373, %cst_156 {dimension_numbers = #tpu.dot_dimension_numbers<[1], [0], [0], [1], [0, 0, 1, 1], [], []>} : vector<24x32xbf16>, vector<32x128xbf16>, vector<24x128xf32> -> vector<24x128xf32>
    %c0_157 = arith.constant 0 : index
    %c0_158 = arith.constant 0 : index
    %375 = vector.load %arg14[%c0_157, %c0_158] : memref<24x128xf32, #tpu.memory_space<vmem>>, vector<24x128xf32>
    tpu.vector_store %arg14[%c0_157, %c0_158], %374 {strides = array<i32>} : memref<24x128xf32, #tpu.memory_space<vmem>>, vector<24x128xf32>,
    return
  }
}

</mosaic_0001>

<llo_original>
// kernel: sequence_model_forward.1
$region0: #{sequence_model_forward.1}
  #allocation0 [shape = 'u32[]', space=smem, size = 0x4, offset = 0x4, fixed_abs, tag = 'smem constant byte address 0x4 - core index']
  #allocation1 [shape = 'u32[72,128]{1,0:T(1,128)}', space=vmem, size = 0x9000, scoped, tag = 'internal scratch']
  %s0 = inlined_call_operand.vmem [shape: f32[24,32], index: 0, kind: input, shape index: {}]
  %s1 = inlined_call_operand.vmem [shape: f32[24,24], index: 1, kind: input, shape index: {}]
  %s2 = inlined_call_operand.vmem [shape: bf16[2,32,256], index: 2, kind: input, shape index: {}]
  %s3 = inlined_call_operand.vmem [shape: f32[2,1,256], index: 3, kind: input, shape index: {}]
  %s4 = inlined_call_operand.vmem [shape: f32[2,1,32], index: 4, kind: input, shape index: {}]
  %s5 = inlined_call_operand.vmem [shape: f32[2,1,32], index: 5, kind: input, shape index: {}]
  %s6 = inlined_call_operand.vmem [shape: f32[2,1,32], index: 6, kind: input, shape index: {}]
  %s7 = inlined_call_operand.vmem [shape: bf16[2,32,2048], index: 7, kind: input, shape index: {}]
  %s8 = inlined_call_operand.vmem [shape: f32[2,1,2048], index: 8, kind: input, shape index: {}]
  %s9 = inlined_call_operand.vmem [shape: bf16[2,2048,32], index: 9, kind: input, shape index: {}]
  %s10 = inlined_call_operand.vmem [shape: f32[2,1,32], index: 10, kind: input, shape index: {}]
  %s11 = inlined_call_operand.vmem [shape: f32[2,1,32], index: 11, kind: input, shape index: {}]
  %s12 = inlined_call_operand.vmem [shape: f32[2,1,32], index: 12, kind: input, shape index: {}]
  %s13 = inlined_call_operand.vmem [shape: bf16[32,128], index: 13, kind: input, shape index: {}]
  %s14 = inlined_call_operand.vmem [shape: f32[24,128], index: 14, kind: output, shape index: {}]
  %s15 = sld [smem:[#allocation0]]
  $region66: #{sequence_model_forward.1} parent=0
    _
  %s17 = ssub.s32 1, %s15
  %s18 = scalar_select 0, %s17, %s15
  // Predicated region
  $region2: #{sequence_model_forward.1} parent=0 // pred_check
    _
  $region3: #{sequence_model_forward.1} parent=0 // pred_check_branch
    %20 = sbr.rel (0) target = $region5
  $region4: #{sequence_model_forward.1} parent=0 // pred_region
    _
  $region5: #{sequence_model_forward.1} parent=0 // pred_fallthru
    _
  // Predicated region
  $region6: #{sequence_model_forward.1} parent=0 // pred_check
    _
  $region7: #{sequence_model_forward.1} parent=0 // pred_check_branch
    %22 = sbr.rel (0) target = $region9
  $region8: #{sequence_model_forward.1} parent=0 // pred_region
    _
  $region9: #{sequence_model_forward.1} parent=0 // pred_fallthru
    _
  // Predicated region
  $region10: #{sequence_model_forward.1} parent=0 // pred_check
    _
  $region11: #{sequence_model_forward.1} parent=0 // pred_check_branch
    %24 = sbr.rel (0) target = $region13
  $region12: #{sequence_model_forward.1} parent=0 // pred_region
    _
  $region13: #{sequence_model_forward.1} parent=0 // pred_fallthru
    _
  // Predicated region
  $region14: #{sequence_model_forward.1} parent=0 // pred_check
    _
  $region15: #{sequence_model_forward.1} parent=0 // pred_check_branch
    %26 = sbr.rel (0) target = $region17
  $region16: #{sequence_model_forward.1} parent=0 // pred_region
    _
  $region17: #{sequence_model_forward.1} parent=0 // pred_fallthru
    _
  // Predicated region
  $region18: #{sequence_model_forward.1} parent=0 // pred_check
    _
  $region19: #{sequence_model_forward.1} parent=0 // pred_check_branch
    %28 = sbr.rel (0) target = $region21
  $region20: #{sequence_model_forward.1} parent=0 // pred_region
    _
  $region21: #{sequence_model_forward.1} parent=0 // pred_fallthru
    _
  // Predicated region
  $region22: #{sequence_model_forward.1} parent=0 // pred_check
    _
  $region23: #{sequence_model_forward.1} parent=0 // pred_check_branch
    %30 = sbr.rel (0) target = $region25
  $region24: #{sequence_model_forward.1} parent=0 // pred_region
    _
  $region25: #{sequence_model_forward.1} parent=0 // pred_fallthru
    _
  // Predicated region
  $region26: #{sequence_model_forward.1} parent=0 // pred_check
    _
  $region27: #{sequence_model_forward.1} parent=0 // pred_check_branch
    %32 = sbr.rel (0) target = $region29
  $region28: #{sequence_model_forward.1} parent=0 // pred_region
    _
  $region29: #{sequence_model_forward.1} parent=0 // pred_fallthru
    _
  // Predicated region
  $region30: #{sequence_model_forward.1} parent=0 // pred_check
    _
  $region31: #{sequence_model_forward.1} parent=0 // pred_check_branch
    %34 = sbr.rel (0) target = $region33
  $region32: #{sequence_model_forward.1} parent=0 // pred_region
    _
  $region33: #{sequence_model_forward.1} parent=0 // pred_fallthru
    _
  // Predicated region
  $region34: #{sequence_model_forward.1} parent=0 // pred_check
    _
  $region35: #{sequence_model_forward.1} parent=0 // pred_check_branch
    %36 = sbr.rel (0) target = $region37
  $region36: #{sequence_model_forward.1} parent=0 // pred_region
    _
  $region37: #{sequence_model_forward.1} parent=0 // pred_fallthru
    _
  // Predicated region
  $region38: #{sequence_model_forward.1} parent=0 // pred_check
    _
  $region39: #{sequence_model_forward.1} parent=0 // pred_check_branch
    %38 = sbr.rel (0) target = $region41
  $region40: #{sequence_model_forward.1} parent=0 // pred_region
    _
  $region41: #{sequence_model_forward.1} parent=0 // pred_fallthru
    _
  // Predicated region
  $region42: #{sequence_model_forward.1} parent=0 // pred_check
    _
  $region43: #{sequence_model_forward.1} parent=0 // pred_check_branch
    %40 = sbr.rel (0) target = $region45
  $region44: #{sequence_model_forward.1} parent=0 // pred_region
    _
  $region45: #{sequence_model_forward.1} parent=0 // pred_fallthru
    _
  // Predicated region
  $region46: #{sequence_model_forward.1} parent=0 // pred_check
    _
  $region47: #{sequence_model_forward.1} parent=0 // pred_check_branch
    %42 = sbr.rel (0) target = $region49
  $region48: #{sequence_model_forward.1} parent=0 // pred_region
    _
  $region49: #{sequence_model_forward.1} parent=0 // pred_fallthru
    _
  // Predicated region
  $region50: #{sequence_model_forward.1} parent=0 // pred_check
    _
  $region51: #{sequence_model_forward.1} parent=0 // pred_check_branch
    %44 = sbr.rel (0) target = $region53
  $region52: #{sequence_model_forward.1} parent=0 // pred_region
    _
  $region53: #{sequence_model_forward.1} parent=0 // pred_fallthru
    _
  // Predicated region
  $region54: #{sequence_model_forward.1} parent=0 // pred_check
    _
  $region55: #{sequence_model_forward.1} parent=0 // pred_check_branch
    %46 = sbr.rel (0) target = $region57
  $region56: #{sequence_model_forward.1} parent=0 // pred_region
    _
  $region57: #{sequence_model_forward.1} parent=0 // pred_fallthru
    _
  %v48 = vld [vmem:[%s0] sm:$0xff]
  %v49 = vld [vmem:[%s0 + $0x8] sm:$0xff]
  %v50 = vld [vmem:[%s0 + $0x10] sm:$0xff]
  %v51 = vld [vmem:[%s1] sm:$0xff]
  %v52 = vld [vmem:[%s1 + $0x8] sm:$0xff]
  %v53 = vld [vmem:[%s1 + $0x10] sm:$0xff]
  %v54 = vpack.c.bf16 %v49, %v48
  %v55 = vpack.c.bf16 %v50, %v50
  %v56 = vld [vmem:[%s2] sm:$0xff]
  %v57 = vld [vmem:[%s2 + $0x8] sm:$0xff]
  %v58 = vld [vmem:[%s2 + $0x10] sm:$0xff]
  %v59 = vld [vmem:[%s2 + $0x18] sm:$0xff]
  %v60 = vld [vmem:[%s3] sm:$0x3]
  %v62 = vperm.slane %v60, 0
  %v63 = vperm.slane %v60, 1
  %v70 = vunpack.c.l.b16 %v56
  %v71 = vunpack.c.h.b16 %v56
  %v72 = vunpack.c.l.b16 %v57
  %v73 = vunpack.c.h.b16 %v57
  %v74 = vunpack.c.l.b16 %v58
  %v75 = vunpack.c.h.b16 %v58
  %v76 = vunpack.c.l.b16 %v59
  %v77 = vunpack.c.h.b16 %v59
  %v78 = vpack.c.b16 %v72, %v70
  %v79 = vpack.c.b16 %v73, %v71
  %v80 = vpack.c.b16 %v76, %v74
  %v81 = vpack.c.b16 %v77, %v75
  %vm86 = vcmask 261120
  %v88 = vsel %vm86, %v54, 0
  %v91 = vsel %vm86, %v55, 0
  %93 = vmatpush.bf16.msra.mxu0 0
  %94 = vmatpush.bf16.msra.mxu0 0
  %95 = vmatpush.bf16.msra.mxu0 0
  %96 = vmatpush.bf16.msra.mxu0 0
  %97 = vmatpush.bf16.msra.mxu0 0
  %98 = vmatpush.bf16.msra.mxu0 0
  %99 = vmatpush.bf16.msra.mxu0 %v80
  %100 = vmatpush.bf16.msra.mxu0 %v78
  %101 = vmatmul.bf16.gmra.mxu0 %v88
  %v102 = vpop.f32.mrf.mxu0
  %v103 = vadd.f32 %v62, %v102
  %v104 = vpop.f32.mrf.mxu0
  %v105 = vadd.f32 %v62, %v104
  %106 = vmatmul.bf16.gmra.mxu0 %v91
  %v107 = vpop.f32.mrf.mxu0
  %v108 = vadd.f32 %v62, %v107
  %v109 = vpop.f32.mrf.mxu0
  %110 = vdwg.mxu0
  %111 = vmatpush.bf16.msra.mxu0 0
  %112 = vmatpush.bf16.msra.mxu0 0
  %113 = vmatpush.bf16.msra.mxu0 0
  %114 = vmatpush.bf16.msra.mxu0 0
  %115 = vmatpush.bf16.msra.mxu0 0
  %116 = vmatpush.bf16.msra.mxu0 0
  %117 = vmatpush.bf16.msra.mxu0 %v81
  %118 = vmatpush.bf16.msra.mxu0 %v79
  %119 = vmatmul.bf16.gmra.mxu0 %v88
  %v120 = vpop.f32.mrf.mxu0
  %v121 = vadd.f32 %v63, %v120
  %v122 = vpop.f32.mrf.mxu0
  %v123 = vadd.f32 %v63, %v122
  %124 = vmatmul.bf16.gmra.mxu0 %v91
  %v125 = vpop.f32.mrf.mxu0
  %v126 = vadd.f32 %v63, %v125
  %v127 = vpop.f32.mrf.mxu0
  %128 = vdwg.mxu0
  %v129 = vpack.c.bf16 %v105, %v103
  %v130 = vpack.c.bf16 %v108, %v108
  %133 = vrot.lane.b32.xlu0 %v129, 96
  %v134 = vpop.permute.xlu0 %133
  %135 = vrot.lane.b32.xlu0 %v130, 96
  %v136 = vpop.permute.xlu0 %135
  %vm137 = vcmask 64512
  %v139 = vsel %vm137, %v129, 0
  %v142 = vsel %vm137, %v130, 0
  %v145 = vsel %vm137, %v134, 0
  %v148 = vsel %vm137, %v136, 0
  %150 = vmatpush.bf16.xpose.msra.mxu0 0
  %151 = vmatpush.bf16.xpose.msra.mxu0 0
  %152 = vmatpush.bf16.xpose.msra.mxu0 0
  %153 = vmatpush.bf16.xpose.msra.mxu0 0
  %154 = vmatpush.bf16.xpose.msra.mxu0 0
  %155 = vmatpush.bf16.xpose.msra.mxu0 0
  %156 = vmatpush.bf16.xpose.msra.mxu0 %v148
  %157 = vmatpush.bf16.xpose.msra.mxu0 %v145
  %158 = vmatmul.bf16.gmra.mxu0 %v139
  %v159 = vpop.f32.mrf.mxu0
  %v160 = vadd.f32 %v51, %v159
  %v161 = vpop.f32.mrf.mxu0
  %v162 = vadd.f32 %v52, %v161
  %163 = vmatmul.bf16.gmra.mxu0 %v142
  %v164 = vpop.f32.mrf.mxu0
  %v165 = vadd.f32 %v53, %v164
  %v166 = vpop.f32.mrf.mxu0
  %167 = vdwg.mxu0
  %vm168 = vcmask 195584
  %v169 = vsel %vm168, %v160, -inf
  %170 = vmax.xlane.f32.xlu0 %v169
  %v171 = vpop.xlane.xlu0 %170
  %v172 = vsel %vm168, %v162, -inf
  %173 = vmax.xlane.f32.xlu0 %v172
  %v174 = vpop.xlane.xlu0 %173
  %v175 = vsel %vm168, %v165, -inf
  %176 = vmax.xlane.f32.xlu0 %v175
  %v177 = vpop.xlane.xlu0 %176
  %v178 = vsub.f32 %v160, %v171
  %v179 = vsub.f32 %v162, %v174
  %v180 = vsub.f32 %v165, %v177
  %v181 = vmul.f32 %v178, 1.442695
  %v182 = vpow.pop %v181
  %v183 = vmul.f32 %v179, 1.442695
  %v184 = vpow.pop %v183
  %v185 = vmul.f32 %v180, 1.442695
  %v186 = vpow.pop %v185
  %v187 = vsel %vm168, %v182, 0.0
  %188 = vadd.xlane.f32.xlu0 %v187
  %v189 = vpop.xlane.xlu0 %188
  %v190 = vsel %vm168, %v184, 0.0
  %191 = vadd.xlane.f32.xlu0 %v190
  %v192 = vpop.xlane.xlu0 %191
  %v193 = vsel %vm168, %v186, 0.0
  %194 = vadd.xlane.f32.xlu0 %v193
  %v195 = vpop.xlane.xlu0 %194
  %v196 = vrcp.pop %v189
  %v197 = vrcp.pop %v192
  %v198 = vrcp.pop %v195
  %v199 = vmul.f32 %v182, %v196
  %v200 = vmul.f32 %v184, %v197
  %v201 = vmul.f32 %v186, %v198
  %v202 = vpack.c.bf16 %v200, %v199
  %v203 = vpack.c.bf16 %v201, %v201
  %204 = vrot.lane.b32.xlu0 %v129, 120
  %v205 = vpop.permute.xlu0 %204
  %206 = vrot.lane.b32.xlu0 %v130, 120
  %v207 = vpop.permute.xlu0 %206
  %208 = vrot.lane.b32.xlu0 %v129, 88
  %v209 = vpop.permute.xlu0 %208
  %210 = vrot.lane.b32.xlu0 %v130, 88
  %v211 = vpop.permute.xlu0 %210
  %v213 = vsel %vm137, %v205, 0
  %v216 = vsel %vm137, %v207, 0
  %v219 = vsel %vm137, %v209, 0
  %v222 = vsel %vm137, %v211, 0
  %224 = vmatpush.bf16.xpose.msra.mxu0 0
  %225 = vmatpush.bf16.xpose.msra.mxu0 0
  %226 = vmatpush.bf16.xpose.msra.mxu0 0
  %227 = vmatpush.bf16.xpose.msra.mxu0 0
  %228 = vmatpush.bf16.xpose.msra.mxu0 0
  %229 = vmatpush.bf16.xpose.msra.mxu0 0
  %230 = vmatpush.bf16.xpose.msra.mxu0 %v222
  %231 = vmatpush.bf16.xpose.msra.mxu0 %v219
  %232 = vmatmul.bf16.gmra.mxu0 %v213
  %v233 = vpop.f32.mrf.mxu0
  %v234 = vadd.f32 %v51, %v233
  %v235 = vpop.f32.mrf.mxu0
  %v236 = vadd.f32 %v52, %v235
  %237 = vmatmul.bf16.gmra.mxu0 %v216
  %v238 = vpop.f32.mrf.mxu0
  %v239 = vadd.f32 %v53, %v238
  %v240 = vpop.f32.mrf.mxu0
  %241 = vdwg.mxu0
  %v242 = vsel %vm168, %v234, -inf
  %243 = vmax.xlane.f32.xlu0 %v242
  %v244 = vpop.xlane.xlu0 %243
  %v245 = vsel %vm168, %v236, -inf
  %246 = vmax.xlane.f32.xlu0 %v245
  %v247 = vpop.xlane.xlu0 %246
  %v248 = vsel %vm168, %v239, -inf
  %249 = vmax.xlane.f32.xlu0 %v248
  %v250 = vpop.xlane.xlu0 %249
  %v251 = vsub.f32 %v234, %v244
  %v252 = vsub.f32 %v236, %v247
  %v253 = vsub.f32 %v239, %v250
  %v254 = vmul.f32 %v251, 1.442695
  %v255 = vpow.pop %v254
  %v256 = vmul.f32 %v252, 1.442695
  %v257 = vpow.pop %v256
  %v258 = vmul.f32 %v253, 1.442695
  %v259 = vpow.pop %v258
  %v260 = vsel %vm168, %v255, 0.0
  %261 = vadd.xlane.f32.xlu0 %v260
  %v262 = vpop.xlane.xlu0 %261
  %v263 = vsel %vm168, %v257, 0.0
  %264 = vadd.xlane.f32.xlu0 %v263
  %v265 = vpop.xlane.xlu0 %264
  %v266 = vsel %vm168, %v259, 0.0
  %267 = vadd.xlane.f32.xlu0 %v266
  %v268 = vpop.xlane.xlu0 %267
  %v269 = vrcp.pop %v262
  %v270 = vrcp.pop %v265
  %v271 = vrcp.pop %v268
  %v272 = vmul.f32 %v255, %v269
  %v273 = vmul.f32 %v257, %v270
  %v274 = vmul.f32 %v259, %v271
  %v275 = vpack.c.bf16 %v273, %v272
  %v276 = vpack.c.bf16 %v274, %v274
  %277 = vrot.lane.b32.xlu0 %v129, 32
  %v278 = vpop.permute.xlu0 %277
  %279 = vrot.lane.b32.xlu0 %v130, 32
  %v280 = vpop.permute.xlu0 %279
  %v283 = vsel %vm168, %v275, 0
  %v286 = vsel %vm168, %v276, 0
  %vm288 = vcmask 1043456
  %v290 = vsel %vm288, %v280, 0
  %292 = vmatpush.bf16.msra.mxu0 0
  %293 = vmatpush.bf16.msra.mxu0 0
  %294 = vmatpush.bf16.msra.mxu0 0
  %295 = vmatpush.bf16.msra.mxu0 0
  %296 = vmatpush.bf16.msra.mxu0 0
  %297 = vmatpush.bf16.msra.mxu0 0
  %298 = vmatpush.bf16.msra.mxu0 %v290
  %299 = vmatpush.bf16.msra.mxu0 %v278
  %300 = vmatmul.bf16.gmra.mxu0 %v283
  %v301 = vpop.f32.mrf.mxu0
  %v302 = vadd.f32 0.0, %v301
  %v303 = vpop.f32.mrf.mxu0
  %v304 = vadd.f32 0.0, %v303
  %305 = vmatmul.bf16.gmra.mxu0 %v286
  %v306 = vpop.f32.mrf.mxu0
  %v307 = vadd.f32 0.0, %v306
  %v308 = vpop.f32.mrf.mxu0
  %309 = vdwg.mxu0
  %310 = vrot.lane.b32.xlu0 %v129, 64
  %v311 = vpop.permute.xlu0 %310
  %312 = vrot.lane.b32.xlu0 %v130, 64
  %v313 = vpop.permute.xlu0 %312
  %v316 = vsel %vm168, %v202, 0
  %v319 = vsel %vm168, %v203, 0
  %v322 = vsel %vm288, %v313, 0
  %324 = vmatpush.bf16.msra.mxu0 0
  %325 = vmatpush.bf16.msra.mxu0 0
  %326 = vmatpush.bf16.msra.mxu0 0
  %327 = vmatpush.bf16.msra.mxu0 0
  %328 = vmatpush.bf16.msra.mxu0 0
  %329 = vmatpush.bf16.msra.mxu0 0
  %330 = vmatpush.bf16.msra.mxu0 %v322
  %331 = vmatpush.bf16.msra.mxu0 %v311
  %332 = vmatmul.bf16.gmra.mxu0 %v316
  %v333 = vpop.f32.mrf.mxu0
  %v334 = vadd.f32 %v302, %v333
  %v335 = vpop.f32.mrf.mxu0
  %v336 = vadd.f32 %v304, %v335
  %337 = vmatmul.bf16.gmra.mxu0 %v319
  %v338 = vpop.f32.mrf.mxu0
  %v339 = vadd.f32 %v307, %v338
  %v340 = vpop.f32.mrf.mxu0
  %341 = vdwg.mxu0
  %v342 = vpack.c.bf16 %v123, %v121
  %v343 = vpack.c.bf16 %v126, %v126
  %344 = vrot.lane.b32.xlu0 %v129, 112
  %v345 = vpop.permute.xlu0 %344
  %346 = vrot.lane.b32.xlu0 %v130, 112
  %v347 = vpop.permute.xlu0 %346
  %348 = vrot.lane.b32.xlu0 %v129, 80
  %v349 = vpop.permute.xlu0 %348
  %350 = vrot.lane.b32.xlu0 %v130, 80
  %v351 = vpop.permute.xlu0 %350
  %v353 = vsel %vm137, %v345, 0
  %v356 = vsel %vm137, %v347, 0
  %v359 = vsel %vm137, %v349, 0
  %v362 = vsel %vm137, %v351, 0
  %364 = vmatpush.bf16.xpose.msra.mxu0 0
  %365 = vmatpush.bf16.xpose.msra.mxu0 0
  %366 = vmatpush.bf16.xpose.msra.mxu0 0
  %367 = vmatpush.bf16.xpose.msra.mxu0 0
  %368 = vmatpush.bf16.xpose.msra.mxu0 0
  %369 = vmatpush.bf16.xpose.msra.mxu0 0
  %370 = vmatpush.bf16.xpose.msra.mxu0 %v362
  %371 = vmatpush.bf16.xpose.msra.mxu0 %v359
  %372 = vmatmul.bf16.gmra.mxu0 %v353
  %v373 = vpop.f32.mrf.mxu0
  %v374 = vadd.f32 %v51, %v373
  %v375 = vpop.f32.mrf.mxu0
  %v376 = vadd.f32 %v52, %v375
  %377 = vmatmul.bf16.gmra.mxu0 %v356
  %v378 = vpop.f32.mrf.mxu0
  %v379 = vadd.f32 %v53, %v378
  %v380 = vpop.f32.mrf.mxu0
  %381 = vdwg.mxu0
  %v382 = vsel %vm168, %v374, -inf
  %383 = vmax.xlane.f32.xlu0 %v382
  %v384 = vpop.xlane.xlu0 %383
  %v385 = vsel %vm168, %v376, -inf
  %386 = vmax.xlane.f32.xlu0 %v385
  %v387 = vpop.xlane.xlu0 %386
  %v388 = vsel %vm168, %v379, -inf
  %389 = vmax.xlane.f32.xlu0 %v388
  %v390 = vpop.xlane.xlu0 %389
  %v391 = vsub.f32 %v374, %v384
  %v392 = vsub.f32 %v376, %v387
  %v393 = vsub.f32 %v379, %v390
  %v394 = vmul.f32 %v391, 1.442695
  %v395 = vpow.pop %v394
  %v396 = vmul.f32 %v392, 1.442695
  %v397 = vpow.pop %v396
  %v398 = vmul.f32 %v393, 1.442695
  %v399 = vpow.pop %v398
  %v400 = vsel %vm168, %v395, 0.0
  %401 = vadd.xlane.f32.xlu0 %v400
  %v402 = vpop.xlane.xlu0 %401
  %v403 = vsel %vm168, %v397, 0.0
  %404 = vadd.xlane.f32.xlu0 %v403
  %v405 = vpop.xlane.xlu0 %404
  %v406 = vsel %vm168, %v399, 0.0
  %407 = vadd.xlane.f32.xlu0 %v406
  %v408 = vpop.xlane.xlu0 %407
  %v409 = vrcp.pop %v402
  %v410 = vrcp.pop %v405
  %v411 = vrcp.pop %v408
  %v412 = vmul.f32 %v395, %v409
  %v413 = vmul.f32 %v397, %v410
  %v414 = vmul.f32 %v399, %v411
  %v415 = vpack.c.bf16 %v413, %v412
  %v416 = vpack.c.bf16 %v414, %v414
  %v418 = vsel %vm168, %v415, 0
  %v421 = vsel %vm168, %v416, 0
  %v424 = vsel %vm288, %v343, 0
  %426 = vmatpush.bf16.msra.mxu0 0
  %427 = vmatpush.bf16.msra.mxu0 0
  %428 = vmatpush.bf16.msra.mxu0 0
  %429 = vmatpush.bf16.msra.mxu0 0
  %430 = vmatpush.bf16.msra.mxu0 0
  %431 = vmatpush.bf16.msra.mxu0 0
  %432 = vmatpush.bf16.msra.mxu0 %v424
  %433 = vmatpush.bf16.msra.mxu0 %v342
  %434 = vmatmul.bf16.gmra.mxu0 %v418
  %v435 = vpop.f32.mrf.mxu0
  %v436 = vadd.f32 0.0, %v435
  %v437 = vpop.f32.mrf.mxu0
  %v438 = vadd.f32 0.0, %v437
  %439 = vmatmul.bf16.gmra.mxu0 %v421
  %v440 = vpop.f32.mrf.mxu0
  %v441 = vadd.f32 0.0, %v440
  %v442 = vpop.f32.mrf.mxu0
  %443 = vdwg.mxu0
  %v444 = vadd.f32 %v334, %v436
  %v445 = vadd.f32 %v336, %v438
  %v446 = vadd.f32 %v339, %v441
  %447 = vrot.lane.b32.xlu0 %v129, 104
  %v448 = vpop.permute.xlu0 %447
  %449 = vrot.lane.b32.xlu0 %v130, 104
  %v450 = vpop.permute.xlu0 %449
  %451 = vrot.lane.b32.xlu0 %v129, 72
  %v452 = vpop.permute.xlu0 %451
  %453 = vrot.lane.b32.xlu0 %v130, 72
  %v454 = vpop.permute.xlu0 %453
  %v456 = vsel %vm137, %v448, 0
  %v459 = vsel %vm137, %v450, 0
  %v462 = vsel %vm137, %v452, 0
  %v465 = vsel %vm137, %v454, 0
  %467 = vmatpush.bf16.xpose.msra.mxu0 0
  %468 = vmatpush.bf16.xpose.msra.mxu0 0
  %469 = vmatpush.bf16.xpose.msra.mxu0 0
  %470 = vmatpush.bf16.xpose.msra.mxu0 0
  %471 = vmatpush.bf16.xpose.msra.mxu0 0
  %472 = vmatpush.bf16.xpose.msra.mxu0 0
  %473 = vmatpush.bf16.xpose.msra.mxu0 %v465
  %474 = vmatpush.bf16.xpose.msra.mxu0 %v462
  %475 = vmatmul.bf16.gmra.mxu0 %v456
  %v476 = vpop.f32.mrf.mxu0
  %v477 = vadd.f32 %v51, %v476
  %v478 = vpop.f32.mrf.mxu0
  %v479 = vadd.f32 %v52, %v478
  %480 = vmatmul.bf16.gmra.mxu0 %v459
  %v481 = vpop.f32.mrf.mxu0
  %v482 = vadd.f32 %v53, %v481
  %v483 = vpop.f32.mrf.mxu0
  %484 = vdwg.mxu0
  %v485 = vsel %vm168, %v477, -inf
  %486 = vmax.xlane.f32.xlu0 %v485
  %v487 = vpop.xlane.xlu0 %486
  %v488 = vsel %vm168, %v479, -inf
  %489 = vmax.xlane.f32.xlu0 %v488
  %v490 = vpop.xlane.xlu0 %489
  %v491 = vsel %vm168, %v482, -inf
  %492 = vmax.xlane.f32.xlu0 %v491
  %v493 = vpop.xlane.xlu0 %492
  %v494 = vsub.f32 %v477, %v487
  %v495 = vsub.f32 %v479, %v490
  %v496 = vsub.f32 %v482, %v493
  %v497 = vmul.f32 %v494, 1.442695
  %v498 = vpow.pop %v497
  %v499 = vmul.f32 %v495, 1.442695
  %v500 = vpow.pop %v499
  %v501 = vmul.f32 %v496, 1.442695
  %v502 = vpow.pop %v501
  %v503 = vsel %vm168, %v498, 0.0
  %504 = vadd.xlane.f32.xlu0 %v503
  %v505 = vpop.xlane.xlu0 %504
  %v506 = vsel %vm168, %v500, 0.0
  %507 = vadd.xlane.f32.xlu0 %v506
  %v508 = vpop.xlane.xlu0 %507
  %v509 = vsel %vm168, %v502, 0.0
  %510 = vadd.xlane.f32.xlu0 %v509
  %v511 = vpop.xlane.xlu0 %510
  %v512 = vrcp.pop %v505
  %v513 = vrcp.pop %v508
  %v514 = vrcp.pop %v511
  %v515 = vmul.f32 %v498, %v512
  %v516 = vmul.f32 %v500, %v513
  %v517 = vmul.f32 %v502, %v514
  %v518 = vpack.c.bf16 %v516, %v515
  %v519 = vpack.c.bf16 %v517, %v517
  %522 = vrot.lane.b32.xlu0 %v342, 96
  %v523 = vpop.permute.xlu0 %522
  %524 = vrot.lane.b32.xlu0 %v343, 96
  %v525 = vpop.permute.xlu0 %524
  %v528 = vsel %vm168, %v518, 0
  %v531 = vsel %vm168, %v519, 0
  %v534 = vsel %vm288, %v525, 0
  %536 = vmatpush.bf16.msra.mxu0 0
  %537 = vmatpush.bf16.msra.mxu0 0
  %538 = vmatpush.bf16.msra.mxu0 0
  %539 = vmatpush.bf16.msra.mxu0 0
  %540 = vmatpush.bf16.msra.mxu0 0
  %541 = vmatpush.bf16.msra.mxu0 0
  %542 = vmatpush.bf16.msra.mxu0 %v534
  %543 = vmatpush.bf16.msra.mxu0 %v523
  %544 = vmatmul.bf16.gmra.mxu0 %v528
  %v545 = vpop.f32.mrf.mxu0
  %v546 = vadd.f32 0.0, %v545
  %v547 = vpop.f32.mrf.mxu0
  %v548 = vadd.f32 0.0, %v547
  %549 = vmatmul.bf16.gmra.mxu0 %v531
  %v550 = vpop.f32.mrf.mxu0
  %v551 = vadd.f32 0.0, %v550
  %v552 = vpop.f32.mrf.mxu0
  %553 = vdwg.mxu0
  %v554 = vadd.f32 %v444, %v546
  %v555 = vadd.f32 %v445, %v548
  %v556 = vadd.f32 %v446, %v551
  %v557 = vld [vmem:[%s4] sm:$0x1]
  %v559 = vperm.slane %v557, 0
  %v561 = vadd.f32 %v554, %v559
  %v562 = vadd.f32 %v555, %v559
  %v563 = vadd.f32 %v556, %v559
  %v564 = vadd.f32 %v48, %v561
  %v565 = vadd.f32 %v49, %v562
  %v566 = vadd.f32 %v50, %v563
  %v567 = vld [vmem:[%s5] sm:$0x1]
  %v568 = vld [vmem:[%s6] sm:$0x1]
  %v569 = vsel %vm86, %v564, 0.0
  %570 = vadd.xlane.f32.xlu0 %v569
  %v571 = vpop.xlane.xlu0 %570
  %v572 = vsel %vm86, %v565, 0.0
  %573 = vadd.xlane.f32.xlu0 %v572
  %v574 = vpop.xlane.xlu0 %573
  %v575 = vsel %vm86, %v566, 0.0
  %576 = vadd.xlane.f32.xlu0 %v575
  %v577 = vpop.xlane.xlu0 %576
  %v578 = vrcp.pop 32.0
  %v579 = vmul.f32 32.0, %v578
  %v580 = vsub.f32 1.0, %v579
  %v581 = vmul.f32 %v578, %v580
  %v582 = vadd.f32 %v578, %v581
  %vm583 = vweird.f32 %v578
  %v584 = vsel %vm583, %v578, %v582
  %v585 = vmul.f32 %v571, %v584
  %v586 = vmul.f32 %v574, %v584
  %v587 = vmul.f32 %v577, %v584
  %v588 = vsub.f32 %v564, %v585
  %v589 = vsub.f32 %v565, %v586
  %v590 = vsub.f32 %v566, %v587
  %v591 = vmul.f32 %v588, %v588
  %v592 = vmul.f32 %v589, %v589
  %v593 = vmul.f32 %v590, %v590
  %v594 = vsel %vm86, %v591, 0.0
  %595 = vadd.xlane.f32.xlu0 %v594
  %v596 = vpop.xlane.xlu0 %595
  %v597 = vsel %vm86, %v592, 0.0
  %598 = vadd.xlane.f32.xlu0 %v597
  %v599 = vpop.xlane.xlu0 %598
  %v600 = vsel %vm86, %v593, 0.0
  %601 = vadd.xlane.f32.xlu0 %v600
  %v602 = vpop.xlane.xlu0 %601
  %v603 = vmul.f32 %v596, %v584
  %v604 = vmul.f32 %v599, %v584
  %v605 = vmul.f32 %v602, %v584
  %v606 = vadd.f32 %v603, 1e-05
  %v607 = vadd.f32 %v604, 1e-05
  %v608 = vadd.f32 %v605, 1e-05
  %v609 = vrsqrt.pop %v606
  %v610 = vmul.f32 %v609, %v606
  %v611 = vmul.f32 %v610, %v609
  %v612 = vmul.f32 0.5, %v611
  %v613 = vsub.f32 1.5, %v612
  %v614 = vmul.f32 %v609, %v613
  %vm615 = vweird.f32 %v606
  %vm616 = vweird.f32 %v609
  %vm617 = vmor %vm615, %vm616
  %v618 = vsel %vm617, %v609, %v614
  %v619 = vrsqrt.pop %v607
  %v620 = vmul.f32 %v619, %v607
  %v621 = vmul.f32 %v620, %v619
  %v622 = vmul.f32 0.5, %v621
  %v623 = vsub.f32 1.5, %v622
  %v624 = vmul.f32 %v619, %v623
  %vm625 = vweird.f32 %v607
  %vm626 = vweird.f32 %v619
  %vm627 = vmor %vm625, %vm626
  %v628 = vsel %vm627, %v619, %v624
  %v629 = vrsqrt.pop %v608
  %v630 = vmul.f32 %v629, %v608
  %v631 = vmul.f32 %v630, %v629
  %v632 = vmul.f32 0.5, %v631
  %v633 = vsub.f32 1.5, %v632
  %v634 = vmul.f32 %v629, %v633
  %vm635 = vweird.f32 %v608
  %vm636 = vweird.f32 %v629
  %vm637 = vmor %vm635, %vm636
  %v638 = vsel %vm637, %v629, %v634
  %v639 = vmul.f32 %v588, %v618
  %v640 = vmul.f32 %v589, %v628
  %v641 = vmul.f32 %v590, %v638
  %v643 = vperm.slane %v567, 0
  %v645 = vmul.f32 %v639, %v643
  %v646 = vmul.f32 %v640, %v643
  %v647 = vmul.f32 %v641, %v643
  %v649 = vperm.slane %v568, 0
  %v651 = vadd.f32 %v645, %v649
  %v652 = vadd.f32 %v646, %v649
  %v653 = vadd.f32 %v647, %v649
  %v654 = vpack.c.bf16 %v652, %v651
  %v655 = vpack.c.bf16 %v653, %v653
  %v656 = vld [vmem:[%s7] sm:$0xff]
  %v657 = vld [vmem:[%s7 + $0x8] sm:$0xff]
  %v658 = vld [vmem:[%s7 + $0x10] sm:$0xff]
  %v659 = vld [vmem:[%s7 + $0x18] sm:$0xff]
  %v660 = vld [vmem:[%s7 + $0x40] sm:$0xff]
  %v661 = vld [vmem:[%s7 + $0x48] sm:$0xff]
  %v662 = vld [vmem:[%s7 + $0x50] sm:$0xff]
  %v663 = vld [vmem:[%s7 + $0x58] sm:$0xff]
  %v664 = vld [vmem:[%s7 + $0x80] sm:$0xff]
  %v665 = vld [vmem:[%s7 + $0x88] sm:$0xff]
  %v666 = vld [vmem:[%s7 + $0x90] sm:$0xff]
  %v667 = vld [vmem:[%s7 + $0x98] sm:$0xff]
  %v668 = vld [vmem:[%s7 + $0xc0] sm:$0xff]
  %v669 = vld [vmem:[%s7 + $0xc8] sm:$0xff]
  %v670 = vld [vmem:[%s7 + $0xd0] sm:$0xff]
  %v671 = vld [vmem:[%s7 + $0xd8] sm:$0xff]
  %v672 = vld [vmem:[%s8] sm:$0xff]
  %v674 = vperm.slane %v672, 0
  %v675 = vperm.slane %v672, 1
  %v676 = vperm.slane %v672, 2
  %v677 = vperm.slane %v672, 3
  %v678 = vperm.slane %v672, 4
  %v679 = vperm.slane %v672, 5
  %v680 = vperm.slane %v672, 6
  %v681 = vperm.slane %v672, 7
  %v706 = vunpack.c.l.b16 %v656
  %v707 = vunpack.c.h.b16 %v656
  %v708 = vunpack.c.l.b16 %v657
  %v709 = vunpack.c.h.b16 %v657
  %v710 = vunpack.c.l.b16 %v658
  %v711 = vunpack.c.h.b16 %v658
  %v712 = vunpack.c.l.b16 %v659
  %v713 = vunpack.c.h.b16 %v659
  %v714 = vunpack.c.l.b16 %v660
  %v715 = vunpack.c.h.b16 %v660
  %v716 = vunpack.c.l.b16 %v661
  %v717 = vunpack.c.h.b16 %v661
  %v718 = vunpack.c.l.b16 %v662
  %v719 = vunpack.c.h.b16 %v662
  %v720 = vunpack.c.l.b16 %v663
  %v721 = vunpack.c.h.b16 %v663
  %v722 = vunpack.c.l.b16 %v664
  %v723 = vunpack.c.h.b16 %v664
  %v724 = vunpack.c.l.b16 %v665
  %v725 = vunpack.c.h.b16 %v665
  %v726 = vunpack.c.l.b16 %v666
  %v727 = vunpack.c.h.b16 %v666
  %v728 = vunpack.c.l.b16 %v667
  %v729 = vunpack.c.h.b16 %v667
  %v730 = vunpack.c.l.b16 %v668
  %v731 = vunpack.c.h.b16 %v668
  %v732 = vunpack.c.l.b16 %v669
  %v733 = vunpack.c.h.b16 %v669
  %v734 = vunpack.c.l.b16 %v670
  %v735 = vunpack.c.h.b16 %v670
  %v736 = vunpack.c.l.b16 %v671
  %v737 = vunpack.c.h.b16 %v671
  %v738 = vpack.c.b16 %v714, %v706
  %v739 = vpack.c.b16 %v715, %v707
  %v740 = vpack.c.b16 %v716, %v708
  %v741 = vpack.c.b16 %v717, %v709
  %v742 = vpack.c.b16 %v718, %v710
  %v743 = vpack.c.b16 %v719, %v711
  %v744 = vpack.c.b16 %v720, %v712
  %v745 = vpack.c.b16 %v721, %v713
  %v746 = vpack.c.b16 %v730, %v722
  %v747 = vpack.c.b16 %v731, %v723
  %v748 = vpack.c.b16 %v732, %v724
  %v749 = vpack.c.b16 %v733, %v725
  %v750 = vpack.c.b16 %v734, %v726
  %v751 = vpack.c.b16 %v735, %v727
  %v752 = vpack.c.b16 %v736, %v728
  %v753 = vpack.c.b16 %v737, %v729
  %v771 = vsel %vm86, %v654, 0
  %v774 = vsel %vm86, %v655, 0
  %776 = vmatpush.bf16.msra.mxu0 0
  %777 = vmatpush.bf16.msra.mxu0 0
  %778 = vmatpush.bf16.msra.mxu0 0
  %779 = vmatpush.bf16.msra.mxu0 0
  %780 = vmatpush.bf16.msra.mxu0 0
  %781 = vmatpush.bf16.msra.mxu0 0
  %782 = vmatpush.bf16.msra.mxu0 %v746
  %783 = vmatpush.bf16.msra.mxu0 %v738
  %784 = vmatmul.bf16.gmra.mxu0 %v771
  %v785 = vpop.f32.mrf.mxu0
  %v786 = vadd.f32 %v674, %v785
  %v787 = vpop.f32.mrf.mxu0
  %v788 = vadd.f32 %v674, %v787
  %789 = vmatmul.bf16.gmra.mxu0 %v774
  %v790 = vpop.f32.mrf.mxu0
  %v791 = vadd.f32 %v674, %v790
  %v792 = vpop.f32.mrf.mxu0
  %793 = vdwg.mxu0
  %794 = vmatpush.bf16.msra.mxu0 0
  %795 = vmatpush.bf16.msra.mxu0 0
  %796 = vmatpush.bf16.msra.mxu0 0
  %797 = vmatpush.bf16.msra.mxu0 0
  %798 = vmatpush.bf16.msra.mxu0 0
  %799 = vmatpush.bf16.msra.mxu0 0
  %800 = vmatpush.bf16.msra.mxu0 %v747
  %801 = vmatpush.bf16.msra.mxu0 %v739
  %802 = vmatmul.bf16.gmra.mxu0 %v771
  %v803 = vpop.f32.mrf.mxu0
  %v804 = vadd.f32 %v675, %v803
  %v805 = vpop.f32.mrf.mxu0
  %v806 = vadd.f32 %v675, %v805
  %807 = vmatmul.bf16.gmra.mxu0 %v774
  %v808 = vpop.f32.mrf.mxu0
  %v809 = vadd.f32 %v675, %v808
  %v810 = vpop.f32.mrf.mxu0
  %811 = vdwg.mxu0
  %812 = vmatpush.bf16.msra.mxu0 0
  %813 = vmatpush.bf16.msra.mxu0 0
  %814 = vmatpush.bf16.msra.mxu0 0
  %815 = vmatpush.bf16.msra.mxu0 0
  %816 = vmatpush.bf16.msra.mxu0 0
  %817 = vmatpush.bf16.msra.mxu0 0
  %818 = vmatpush.bf16.msra.mxu0 %v748
  %819 = vmatpush.bf16.msra.mxu0 %v740
  %820 = vmatmul.bf16.gmra.mxu0 %v771
  %v821 = vpop.f32.mrf.mxu0
  %v822 = vadd.f32 %v676, %v821
  %v823 = vpop.f32.mrf.mxu0
  %v824 = vadd.f32 %v676, %v823
  %825 = vmatmul.bf16.gmra.mxu0 %v774
  %v826 = vpop.f32.mrf.mxu0
  %v827 = vadd.f32 %v676, %v826
  %v828 = vpop.f32.mrf.mxu0
  %829 = vdwg.mxu0
  %830 = vmatpush.bf16.msra.mxu0 0
  %831 = vmatpush.bf16.msra.mxu0 0
  %832 = vmatpush.bf16.msra.mxu0 0
  %833 = vmatpush.bf16.msra.mxu0 0
  %834 = vmatpush.bf16.msra.mxu0 0
  %835 = vmatpush.bf16.msra.mxu0 0
  %836 = vmatpush.bf16.msra.mxu0 %v749
  %837 = vmatpush.bf16.msra.mxu0 %v741
  %838 = vmatmul.bf16.gmra.mxu0 %v771
  %v839 = vpop.f32.mrf.mxu0
  %v840 = vadd.f32 %v677, %v839
  %v841 = vpop.f32.mrf.mxu0
  %v842 = vadd.f32 %v677, %v841
  %843 = vmatmul.bf16.gmra.mxu0 %v774
  %v844 = vpop.f32.mrf.mxu0
  %v845 = vadd.f32 %v677, %v844
  %v846 = vpop.f32.mrf.mxu0
  %847 = vdwg.mxu0
  %848 = vmatpush.bf16.msra.mxu0 0
  %849 = vmatpush.bf16.msra.mxu0 0
  %850 = vmatpush.bf16.msra.mxu0 0
  %851 = vmatpush.bf16.msra.mxu0 0
  %852 = vmatpush.bf16.msra.mxu0 0
  %853 = vmatpush.bf16.msra.mxu0 0
  %854 = vmatpush.bf16.msra.mxu0 %v750
  %855 = vmatpush.bf16.msra.mxu0 %v742
  %856 = vmatmul.bf16.gmra.mxu0 %v771
  %v857 = vpop.f32.mrf.mxu0
  %v858 = vadd.f32 %v678, %v857
  %v859 = vpop.f32.mrf.mxu0
  %v860 = vadd.f32 %v678, %v859
  %861 = vmatmul.bf16.gmra.mxu0 %v774
  %v862 = vpop.f32.mrf.mxu0
  %v863 = vadd.f32 %v678, %v862
  %v864 = vpop.f32.mrf.mxu0
  %865 = vdwg.mxu0
  %866 = vmatpush.bf16.msra.mxu0 0
  %867 = vmatpush.bf16.msra.mxu0 0
  %868 = vmatpush.bf16.msra.mxu0 0
  %869 = vmatpush.bf16.msra.mxu0 0
  %870 = vmatpush.bf16.msra.mxu0 0
  %871 = vmatpush.bf16.msra.mxu0 0
  %872 = vmatpush.bf16.msra.mxu0 %v751
  %873 = vmatpush.bf16.msra.mxu0 %v743
  %874 = vmatmul.bf16.gmra.mxu0 %v771
  %v875 = vpop.f32.mrf.mxu0
  %v876 = vadd.f32 %v679, %v875
  %v877 = vpop.f32.mrf.mxu0
  %v878 = vadd.f32 %v679, %v877
  %879 = vmatmul.bf16.gmra.mxu0 %v774
  %v880 = vpop.f32.mrf.mxu0
  %v881 = vadd.f32 %v679, %v880
  %v882 = vpop.f32.mrf.mxu0
  %883 = vdwg.mxu0
  %884 = vmatpush.bf16.msra.mxu0 0
  %885 = vmatpush.bf16.msra.mxu0 0
  %886 = vmatpush.bf16.msra.mxu0 0
  %887 = vmatpush.bf16.msra.mxu0 0
  %888 = vmatpush.bf16.msra.mxu0 0
  %889 = vmatpush.bf16.msra.mxu0 0
  %890 = vmatpush.bf16.msra.mxu0 %v752
  %891 = vmatpush.bf16.msra.mxu0 %v744
  %892 = vmatmul.bf16.gmra.mxu0 %v771
  %v893 = vpop.f32.mrf.mxu0
  %v894 = vadd.f32 %v680, %v893
  %v895 = vpop.f32.mrf.mxu0
  %v896 = vadd.f32 %v680, %v895
  %897 = vmatmul.bf16.gmra.mxu0 %v774
  %v898 = vpop.f32.mrf.mxu0
  %v899 = vadd.f32 %v680, %v898
  %v900 = vpop.f32.mrf.mxu0
  %901 = vdwg.mxu0
  %902 = vmatpush.bf16.msra.mxu0 0
  %903 = vmatpush.bf16.msra.mxu0 0
  %904 = vmatpush.bf16.msra.mxu0 0
  %905 = vmatpush.bf16.msra.mxu0 0
  %906 = vmatpush.bf16.msra.mxu0 0
  %907 = vmatpush.bf16.msra.mxu0 0
  %908 = vmatpush.bf16.msra.mxu0 %v753
  %909 = vmatpush.bf16.msra.mxu0 %v745
  %910 = vmatmul.bf16.gmra.mxu0 %v771
  %v911 = vpop.f32.mrf.mxu0
  %v912 = vadd.f32 %v681, %v911
  %v913 = vpop.f32.mrf.mxu0
  %v914 = vadd.f32 %v681, %v913
  %915 = vmatmul.bf16.gmra.mxu0 %v774
  %v916 = vpop.f32.mrf.mxu0
  %v917 = vadd.f32 %v681, %v916
  %v918 = vpop.f32.mrf.mxu0
  %919 = vdwg.mxu0
  %v920 = vmax.f32 %v786, 0.0
  %v921 = vmax.f32 %v804, 0.0
  %v922 = vmax.f32 %v822, 0.0
  %v923 = vmax.f32 %v840, 0.0
  %v924 = vmax.f32 %v858, 0.0
  %v925 = vmax.f32 %v876, 0.0
  %v926 = vmax.f32 %v894, 0.0
  %v927 = vmax.f32 %v912, 0.0
  %v928 = vmax.f32 %v788, 0.0
  %v929 = vmax.f32 %v806, 0.0
  %v930 = vmax.f32 %v824, 0.0
  %v931 = vmax.f32 %v842, 0.0
  %v932 = vmax.f32 %v860, 0.0
  %v933 = vmax.f32 %v878, 0.0
  %v934 = vmax.f32 %v896, 0.0
  %v935 = vmax.f32 %v914, 0.0
  %v936 = vmax.f32 %v791, 0.0
  %v937 = vmax.f32 %v809, 0.0
  %v938 = vmax.f32 %v827, 0.0
  %v939 = vmax.f32 %v845, 0.0
  %v940 = vmax.f32 %v863, 0.0
  %v941 = vmax.f32 %v881, 0.0
  %v942 = vmax.f32 %v899, 0.0
  %v943 = vmax.f32 %v917, 0.0
  %v944 = vpack.c.bf16 %v928, %v920
  %v945 = vpack.c.bf16 %v929, %v921
  %v946 = vpack.c.bf16 %v930, %v922
  %v947 = vpack.c.bf16 %v931, %v923
  %v948 = vpack.c.bf16 %v932, %v924
  %v949 = vpack.c.bf16 %v933, %v925
  %v950 = vpack.c.bf16 %v934, %v926
  %v951 = vpack.c.bf16 %v935, %v927
  %v952 = vpack.c.bf16 %v936, %v936
  %v953 = vpack.c.bf16 %v937, %v937
  %v954 = vpack.c.bf16 %v938, %v938
  %v955 = vpack.c.bf16 %v939, %v939
  %v956 = vpack.c.bf16 %v940, %v940
  %v957 = vpack.c.bf16 %v941, %v941
  %v958 = vpack.c.bf16 %v942, %v942
  %v959 = vpack.c.bf16 %v943, %v943
  %v960 = vld [vmem:[%s9] sm:$0xf]
  %v961 = vld [vmem:[%s9 + $0x4] sm:$0xf]
  %v962 = vld [vmem:[%s9 + $0x8] sm:$0xf]
  %v963 = vld [vmem:[%s9 + $0xc] sm:$0xf]
  %v964 = vld [vmem:[%s9 + $0x10] sm:$0xf]
  %v965 = vld [vmem:[%s9 + $0x14] sm:$0xf]
  %v966 = vld [vmem:[%s9 + $0x18] sm:$0xf]
  %v967 = vld [vmem:[%s9 + $0x1c] sm:$0xf]
  %v968 = vld [vmem:[%s9 + $0x20] sm:$0xf]
  %v969 = vld [vmem:[%s9 + $0x24] sm:$0xf]
  %v970 = vld [vmem:[%s9 + $0x28] sm:$0xf]
  %v971 = vld [vmem:[%s9 + $0x2c] sm:$0xf]
  %v972 = vld [vmem:[%s9 + $0x30] sm:$0xf]
  %v973 = vld [vmem:[%s9 + $0x34] sm:$0xf]
  %v974 = vld [vmem:[%s9 + $0x38] sm:$0xf]
  %v975 = vld [vmem:[%s9 + $0x3c] sm:$0xf]
  %v976 = vld [vmem:[%s9 + $0x40] sm:$0xf]
  %v977 = vld [vmem:[%s9 + $0x44] sm:$0xf]
  %v978 = vld [vmem:[%s9 + $0x48] sm:$0xf]
  %v979 = vld [vmem:[%s9 + $0x4c] sm:$0xf]
  %v980 = vld [vmem:[%s9 + $0x50] sm:$0xf]
  %v981 = vld [vmem:[%s9 + $0x54] sm:$0xf]
  %v982 = vld [vmem:[%s9 + $0x58] sm:$0xf]
  %v983 = vld [vmem:[%s9 + $0x5c] sm:$0xf]
  %v984 = vld [vmem:[%s9 + $0x60] sm:$0xf]
  %v985 = vld [vmem:[%s9 + $0x64] sm:$0xf]
  %v986 = vld [vmem:[%s9 + $0x68] sm:$0xf]
  %v987 = vld [vmem:[%s9 + $0x6c] sm:$0xf]
  %v988 = vld [vmem:[%s9 + $0x70] sm:$0xf]
  %v989 = vld [vmem:[%s9 + $0x74] sm:$0xf]
  %v990 = vld [vmem:[%s9 + $0x78] sm:$0xf]
  %v991 = vld [vmem:[%s9 + $0x7c] sm:$0xf]
  %v992 = vld [vmem:[%s9 + $0x80] sm:$0xf]
  %v993 = vld [vmem:[%s9 + $0x84] sm:$0xf]
  %v994 = vld [vmem:[%s9 + $0x88] sm:$0xf]
  %v995 = vld [vmem:[%s9 + $0x8c] sm:$0xf]
  %v996 = vld [vmem:[%s9 + $0x90] sm:$0xf]
  %v997 = vld [vmem:[%s9 + $0x94] sm:$0xf]
  %v998 = vld [vmem:[%s9 + $0x98] sm:$0xf]
  %v999 = vld [vmem:[%s9 + $0x9c] sm:$0xf]
  %v1000 = vld [vmem:[%s9 + $0xa0] sm:$0xf]
  %v1001 = vld [vmem:[%s9 + $0xa4] sm:$0xf]
  %v1002 = vld [vmem:[%s9 + $0xa8] sm:$0xf]
  %v1003 = vld [vmem:[%s9 + $0xac] sm:$0xf]
  %v1004 = vld [vmem:[%s9 + $0xb0] sm:$0xf]
  %v1005 = vld [vmem:[%s9 + $0xb4] sm:$0xf]
  %v1006 = vld [vmem:[%s9 + $0xb8] sm:$0xf]
  %v1007 = vld [vmem:[%s9 + $0xbc] sm:$0xf]
  %v1008 = vld [vmem:[%s9 + $0xc0] sm:$0xf]
  %v1009 = vld [vmem:[%s9 + $0xc4] sm:$0xf]
  %v1010 = vld [vmem:[%s9 + $0xc8] sm:$0xf]
  %v1011 = vld [vmem:[%s9 + $0xcc] sm:$0xf]
  %v1012 = vld [vmem:[%s9 + $0xd0] sm:$0xf]
  %v1013 = vld [vmem:[%s9 + $0xd4] sm:$0xf]
  %v1014 = vld [vmem:[%s9 + $0xd8] sm:$0xf]
  %v1015 = vld [vmem:[%s9 + $0xdc] sm:$0xf]
  %v1016 = vld [vmem:[%s9 + $0xe0] sm:$0xf]
  %v1017 = vld [vmem:[%s9 + $0xe4] sm:$0xf]
  %v1018 = vld [vmem:[%s9 + $0xe8] sm:$0xf]
  %v1019 = vld [vmem:[%s9 + $0xec] sm:$0xf]
  %v1020 = vld [vmem:[%s9 + $0xf0] sm:$0xf]
  %v1021 = vld [vmem:[%s9 + $0xf4] sm:$0xf]
  %v1022 = vld [vmem:[%s9 + $0xf8] sm:$0xf]
  %v1023 = vld [vmem:[%s9 + $0xfc] sm:$0xf]
  %v1024 = vld [vmem:[%s9 + $0x100] sm:$0xf]
  %v1025 = vld [vmem:[%s9 + $0x104] sm:$0xf]
  %v1026 = vld [vmem:[%s9 + $0x108] sm:$0xf]
  %v1027 = vld [vmem:[%s9 + $0x10c] sm:$0xf]
  %v1028 = vld [vmem:[%s9 + $0x110] sm:$0xf]
  %v1029 = vld [vmem:[%s9 + $0x114] sm:$0xf]
  %v1030 = vld [vmem:[%s9 + $0x118] sm:$0xf]
  %v1031 = vld [vmem:[%s9 + $0x11c] sm:$0xf]
  %v1032 = vld [vmem:[%s9 + $0x120] sm:$0xf]
  %v1033 = vld [vmem:[%s9 + $0x124] sm:$0xf]
  %v1034 = vld [vmem:[%s9 + $0x128] sm:$0xf]
  %v1035 = vld [vmem:[%s9 + $0x12c] sm:$0xf]
  %v1036 = vld [vmem:[%s9 + $0x130] sm:$0xf]
  %v1037 = vld [vmem:[%s9 + $0x134] sm:$0xf]
  %v1038 = vld [vmem:[%s9 + $0x138] sm:$0xf]
  %v1039 = vld [vmem:[%s9 + $0x13c] sm:$0xf]
  %v1040 = vld [vmem:[%s9 + $0x140] sm:$0xf]
  %v1041 = vld [vmem:[%s9 + $0x144] sm:$0xf]
  %v1042 = vld [vmem:[%s9 + $0x148] sm:$0xf]
  %v1043 = vld [vmem:[%s9 + $0x14c] sm:$0xf]
  %v1044 = vld [vmem:[%s9 + $0x150] sm:$0xf]
  %v1045 = vld [vmem:[%s9 + $0x154] sm:$0xf]
  %v1046 = vld [vmem:[%s9 + $0x158] sm:$0xf]
  %v1047 = vld [vmem:[%s9 + $0x15c] sm:$0xf]
  %v1048 = vld [vmem:[%s9 + $0x160] sm:$0xf]
  %v1049 = vld [vmem:[%s9 + $0x164] sm:$0xf]
  %v1050 = vld [vmem:[%s9 + $0x168] sm:$0xf]
  %v1051 = vld [vmem:[%s9 + $0x16c] sm:$0xf]
  %v1052 = vld [vmem:[%s9 + $0x170] sm:$0xf]
  %v1053 = vld [vmem:[%s9 + $0x174] sm:$0xf]
  %v1054 = vld [vmem:[%s9 + $0x178] sm:$0xf]
  %v1055 = vld [vmem:[%s9 + $0x17c] sm:$0xf]
  %v1056 = vld [vmem:[%s9 + $0x180] sm:$0xf]
  %v1057 = vld [vmem:[%s9 + $0x184] sm:$0xf]
  %v1058 = vld [vmem:[%s9 + $0x188] sm:$0xf]
  %v1059 = vld [vmem:[%s9 + $0x18c] sm:$0xf]
  %v1060 = vld [vmem:[%s9 + $0x190] sm:$0xf]
  %v1061 = vld [vmem:[%s9 + $0x194] sm:$0xf]
  %v1062 = vld [vmem:[%s9 + $0x198] sm:$0xf]
  %v1063 = vld [vmem:[%s9 + $0x19c] sm:$0xf]
  %v1064 = vld [vmem:[%s9 + $0x1a0] sm:$0xf]
  %v1065 = vld [vmem:[%s9 + $0x1a4] sm:$0xf]
  %v1066 = vld [vmem:[%s9 + $0x1a8] sm:$0xf]
  %v1067 = vld [vmem:[%s9 + $0x1ac] sm:$0xf]
  %v1068 = vld [vmem:[%s9 + $0x1b0] sm:$0xf]
  %v1069 = vld [vmem:[%s9 + $0x1b4] sm:$0xf]
  %v1070 = vld [vmem:[%s9 + $0x1b8] sm:$0xf]
  %v1071 = vld [vmem:[%s9 + $0x1bc] sm:$0xf]
  %v1072 = vld [vmem:[%s9 + $0x1c0] sm:$0xf]
  %v1073 = vld [vmem:[%s9 + $0x1c4] sm:$0xf]
  %v1074 = vld [vmem:[%s9 + $0x1c8] sm:$0xf]
  %v1075 = vld [vmem:[%s9 + $0x1cc] sm:$0xf]
  %v1076 = vld [vmem:[%s9 + $0x1d0] sm:$0xf]
  %v1077 = vld [vmem:[%s9 + $0x1d4] sm:$0xf]
  %v1078 = vld [vmem:[%s9 + $0x1d8] sm:$0xf]
  %v1079 = vld [vmem:[%s9 + $0x1dc] sm:$0xf]
  %v1080 = vld [vmem:[%s9 + $0x1e0] sm:$0xf]
  %v1081 = vld [vmem:[%s9 + $0x1e4] sm:$0xf]
  %v1082 = vld [vmem:[%s9 + $0x1e8] sm:$0xf]
  %v1083 = vld [vmem:[%s9 + $0x1ec] sm:$0xf]
  %v1084 = vld [vmem:[%s9 + $0x1f0] sm:$0xf]
  %v1085 = vld [vmem:[%s9 + $0x1f4] sm:$0xf]
  %v1086 = vld [vmem:[%s9 + $0x1f8] sm:$0xf]
  %v1087 = vld [vmem:[%s9 + $0x1fc] sm:$0xf]
  %v1088 = vld [vmem:[%s7 + $0x20] sm:$0xff]
  %v1089 = vld [vmem:[%s7 + $0x28] sm:$0xff]
  %v1090 = vld [vmem:[%s7 + $0x30] sm:$0xff]
  %v1091 = vld [vmem:[%s7 + $0x38] sm:$0xff]
  %v1092 = vld [vmem:[%s7 + $0x60] sm:$0xff]
  %v1093 = vld [vmem:[%s7 + $0x68] sm:$0xff]
  %v1094 = vld [vmem:[%s7 + $0x70] sm:$0xff]
  %v1095 = vld [vmem:[%s7 + $0x78] sm:$0xff]
  %v1096 = vld [vmem:[%s7 + $0xa0] sm:$0xff]
  %v1097 = vld [vmem:[%s7 + $0xa8] sm:$0xff]
  %v1098 = vld [vmem:[%s7 + $0xb0] sm:$0xff]
  %v1099 = vld [vmem:[%s7 + $0xb8] sm:$0xff]
  %v1100 = vld [vmem:[%s7 + $0xe0] sm:$0xff]
  %v1101 = vld [vmem:[%s7 + $0xe8] sm:$0xff]
  %v1102 = vld [vmem:[%s7 + $0xf0] sm:$0xff]
  %v1103 = vld [vmem:[%s7 + $0xf8] sm:$0xff]
  %v1104 = vld [vmem:[%s8 + $0x8] sm:$0xff]
  %v1106 = vperm.slane %v1104, 0
  %v1107 = vperm.slane %v1104, 1
  %v1108 = vperm.slane %v1104, 2
  %v1109 = vperm.slane %v1104, 3
  %v1110 = vperm.slane %v1104, 4
  %v1111 = vperm.slane %v1104, 5
  %v1112 = vperm.slane %v1104, 6
  %v1113 = vperm.slane %v1104, 7
  %v1138 = vunpack.c.l.b16 %v1088
  %v1139 = vunpack.c.h.b16 %v1088
  %v1140 = vunpack.c.l.b16 %v1089
  %v1141 = vunpack.c.h.b16 %v1089
  %v1142 = vunpack.c.l.b16 %v1090
  %v1143 = vunpack.c.h.b16 %v1090
  %v1144 = vunpack.c.l.b16 %v1091
  %v1145 = vunpack.c.h.b16 %v1091
  %v1146 = vunpack.c.l.b16 %v1092
  %v1147 = vunpack.c.h.b16 %v1092
  %v1148 = vunpack.c.l.b16 %v1093
  %v1149 = vunpack.c.h.b16 %v1093
  %v1150 = vunpack.c.l.b16 %v1094
  %v1151 = vunpack.c.h.b16 %v1094
  %v1152 = vunpack.c.l.b16 %v1095
  %v1153 = vunpack.c.h.b16 %v1095
  %v1154 = vunpack.c.l.b16 %v1096
  %v1155 = vunpack.c.h.b16 %v1096
  %v1156 = vunpack.c.l.b16 %v1097
  %v1157 = vunpack.c.h.b16 %v1097
  %v1158 = vunpack.c.l.b16 %v1098
  %v1159 = vunpack.c.h.b16 %v1098
  %v1160 = vunpack.c.l.b16 %v1099
  %v1161 = vunpack.c.h.b16 %v1099
  %v1162 = vunpack.c.l.b16 %v1100
  %v1163 = vunpack.c.h.b16 %v1100
  %v1164 = vunpack.c.l.b16 %v1101
  %v1165 = vunpack.c.h.b16 %v1101
  %v1166 = vunpack.c.l.b16 %v1102
  %v1167 = vunpack.c.h.b16 %v1102
  %v1168 = vunpack.c.l.b16 %v1103
  %v1169 = vunpack.c.h.b16 %v1103
  %v1170 = vpack.c.b16 %v1146, %v1138
  %v1171 = vpack.c.b16 %v1147, %v1139
  %v1172 = vpack.c.b16 %v1148, %v1140
  %v1173 = vpack.c.b16 %v1149, %v1141
  %v1174 = vpack.c.b16 %v1150, %v1142
  %v1175 = vpack.c.b16 %v1151, %v1143
  %v1176 = vpack.c.b16 %v1152, %v1144
  %v1177 = vpack.c.b16 %v1153, %v1145
  %v1178 = vpack.c.b16 %v1162, %v1154
  %v1179 = vpack.c.b16 %v1163, %v1155
  %v1180 = vpack.c.b16 %v1164, %v1156
  %v1181 = vpack.c.b16 %v1165, %v1157
  %v1182 = vpack.c.b16 %v1166, %v1158
  %v1183 = vpack.c.b16 %v1167, %v1159
  %v1184 = vpack.c.b16 %v1168, %v1160
  %v1185 = vpack.c.b16 %v1169, %v1161
  %1202 = vmatpush.bf16.msra.mxu0 0
  %1203 = vmatpush.bf16.msra.mxu0 0
  %1204 = vmatpush.bf16.msra.mxu0 0
  %1205 = vmatpush.bf16.msra.mxu0 0
  %1206 = vmatpush.bf16.msra.mxu0 0
  %1207 = vmatpush.bf16.msra.mxu0 0
  %1208 = vmatpush.bf16.msra.mxu0 %v1178
  %1209 = vmatpush.bf16.msra.mxu0 %v1170
  %1210 = vmatmul.bf16.gmra.mxu0 %v771
  %v1211 = vpop.f32.mrf.mxu0
  %v1212 = vadd.f32 %v1106, %v1211
  %v1213 = vpop.f32.mrf.mxu0
  %v1214 = vadd.f32 %v1106, %v1213
  %1215 = vmatmul.bf16.gmra.mxu0 %v774
  %v1216 = vpop.f32.mrf.mxu0
  %v1217 = vadd.f32 %v1106, %v1216
  %v1218 = vpop.f32.mrf.mxu0
  %1219 = vdwg.mxu0
  %1220 = vmatpush.bf16.msra.mxu0 0
  %1221 = vmatpush.bf16.msra.mxu0 0
  %1222 = vmatpush.bf16.msra.mxu0 0
  %1223 = vmatpush.bf16.msra.mxu0 0
  %1224 = vmatpush.bf16.msra.mxu0 0
  %1225 = vmatpush.bf16.msra.mxu0 0
  %1226 = vmatpush.bf16.msra.mxu0 %v1179
  %1227 = vmatpush.bf16.msra.mxu0 %v1171
  %1228 = vmatmul.bf16.gmra.mxu0 %v771
  %v1229 = vpop.f32.mrf.mxu0
  %v1230 = vadd.f32 %v1107, %v1229
  %v1231 = vpop.f32.mrf.mxu0
  %v1232 = vadd.f32 %v1107, %v1231
  %1233 = vmatmul.bf16.gmra.mxu0 %v774
  %v1234 = vpop.f32.mrf.mxu0
  %v1235 = vadd.f32 %v1107, %v1234
  %v1236 = vpop.f32.mrf.mxu0
  %1237 = vdwg.mxu0
  %1238 = vmatpush.bf16.msra.mxu0 0
  %1239 = vmatpush.bf16.msra.mxu0 0
  %1240 = vmatpush.bf16.msra.mxu0 0
  %1241 = vmatpush.bf16.msra.mxu0 0
  %1242 = vmatpush.bf16.msra.mxu0 0
  %1243 = vmatpush.bf16.msra.mxu0 0
  %1244 = vmatpush.bf16.msra.mxu0 %v1180
  %1245 = vmatpush.bf16.msra.mxu0 %v1172
  %1246 = vmatmul.bf16.gmra.mxu0 %v771
  %v1247 = vpop.f32.mrf.mxu0
  %v1248 = vadd.f32 %v1108, %v1247
  %v1249 = vpop.f32.mrf.mxu0
  %v1250 = vadd.f32 %v1108, %v1249
  %1251 = vmatmul.bf16.gmra.mxu0 %v774
  %v1252 = vpop.f32.mrf.mxu0
  %v1253 = vadd.f32 %v1108, %v1252
  %v1254 = vpop.f32.mrf.mxu0
  %1255 = vdwg.mxu0
  %1256 = vmatpush.bf16.msra.mxu0 0
  %1257 = vmatpush.bf16.msra.mxu0 0
  %1258 = vmatpush.bf16.msra.mxu0 0
  %1259 = vmatpush.bf16.msra.mxu0 0
  %1260 = vmatpush.bf16.msra.mxu0 0
  %1261 = vmatpush.bf16.msra.mxu0 0
  %1262 = vmatpush.bf16.msra.mxu0 %v1181
  %1263 = vmatpush.bf16.msra.mxu0 %v1173
  %1264 = vmatmul.bf16.gmra.mxu0 %v771
  %v1265 = vpop.f32.mrf.mxu0
  %v1266 = vadd.f32 %v1109, %v1265
  %v1267 = vpop.f32.mrf.mxu0
  %v1268 = vadd.f32 %v1109, %v1267
  %1269 = vmatmul.bf16.gmra.mxu0 %v774
  %v1270 = vpop.f32.mrf.mxu0
  %v1271 = vadd.f32 %v1109, %v1270
  %v1272 = vpop.f32.mrf.mxu0
  %1273 = vdwg.mxu0
  %1274 = vmatpush.bf16.msra.mxu0 0
  %1275 = vmatpush.bf16.msra.mxu0 0
  %1276 = vmatpush.bf16.msra.mxu0 0
  %1277 = vmatpush.bf16.msra.mxu0 0
  %1278 = vmatpush.bf16.msra.mxu0 0
  %1279 = vmatpush.bf16.msra.mxu0 0
  %1280 = vmatpush.bf16.msra.mxu0 %v1182
  %1281 = vmatpush.bf16.msra.mxu0 %v1174
  %1282 = vmatmul.bf16.gmra.mxu0 %v771
  %v1283 = vpop.f32.mrf.mxu0
  %v1284 = vadd.f32 %v1110, %v1283
  %v1285 = vpop.f32.mrf.mxu0
  %v1286 = vadd.f32 %v1110, %v1285
  %1287 = vmatmul.bf16.gmra.mxu0 %v774
  %v1288 = vpop.f32.mrf.mxu0
  %v1289 = vadd.f32 %v1110, %v1288
  %v1290 = vpop.f32.mrf.mxu0
  %1291 = vdwg.mxu0
  %1292 = vmatpush.bf16.msra.mxu0 0
  %1293 = vmatpush.bf16.msra.mxu0 0
  %1294 = vmatpush.bf16.msra.mxu0 0
  %1295 = vmatpush.bf16.msra.mxu0 0
  %1296 = vmatpush.bf16.msra.mxu0 0
  %1297 = vmatpush.bf16.msra.mxu0 0
  %1298 = vmatpush.bf16.msra.mxu0 %v1183
  %1299 = vmatpush.bf16.msra.mxu0 %v1175
  %1300 = vmatmul.bf16.gmra.mxu0 %v771
  %v1301 = vpop.f32.mrf.mxu0
  %v1302 = vadd.f32 %v1111, %v1301
  %v1303 = vpop.f32.mrf.mxu0
  %v1304 = vadd.f32 %v1111, %v1303
  %1305 = vmatmul.bf16.gmra.mxu0 %v774
  %v1306 = vpop.f32.mrf.mxu0
  %v1307 = vadd.f32 %v1111, %v1306
  %v1308 = vpop.f32.mrf.mxu0
  %1309 = vdwg.mxu0
  %1310 = vmatpush.bf16.msra.mxu0 0
  %1311 = vmatpush.bf16.msra.mxu0 0
  %1312 = vmatpush.bf16.msra.mxu0 0
  %1313 = vmatpush.bf16.msra.mxu0 0
  %1314 = vmatpush.bf16.msra.mxu0 0
  %1315 = vmatpush.bf16.msra.mxu0 0
  %1316 = vmatpush.bf16.msra.mxu0 %v1184
  %1317 = vmatpush.bf16.msra.mxu0 %v1176
  %1318 = vmatmul.bf16.gmra.mxu0 %v771
  %v1319 = vpop.f32.mrf.mxu0
  %v1320 = vadd.f32 %v1112, %v1319
  %v1321 = vpop.f32.mrf.mxu0
  %v1322 = vadd.f32 %v1112, %v1321
  %1323 = vmatmul.bf16.gmra.mxu0 %v774
  %v1324 = vpop.f32.mrf.mxu0
  %v1325 = vadd.f32 %v1112, %v1324
  %v1326 = vpop.f32.mrf.mxu0
  %1327 = vdwg.mxu0
  %1328 = vmatpush.bf16.msra.mxu0 0
  %1329 = vmatpush.bf16.msra.mxu0 0
  %1330 = vmatpush.bf16.msra.mxu0 0
  %1331 = vmatpush.bf16.msra.mxu0 0
  %1332 = vmatpush.bf16.msra.mxu0 0
  %1333 = vmatpush.bf16.msra.mxu0 0
  %1334 = vmatpush.bf16.msra.mxu0 %v1185
  %1335 = vmatpush.bf16.msra.mxu0 %v1177
  %1336 = vmatmul.bf16.gmra.mxu0 %v771
  %v1337 = vpop.f32.mrf.mxu0
  %v1338 = vadd.f32 %v1113, %v1337
  %v1339 = vpop.f32.mrf.mxu0
  %v1340 = vadd.f32 %v1113, %v1339
  %1341 = vmatmul.bf16.gmra.mxu0 %v774
  %v1342 = vpop.f32.mrf.mxu0
  %v1343 = vadd.f32 %v1113, %v1342
  %v1344 = vpop.f32.mrf.mxu0
  %1345 = vdwg.mxu0
  %v1346 = vmax.f32 %v1212, 0.0
  %v1347 = vmax.f32 %v1230, 0.0
  %v1348 = vmax.f32 %v1248, 0.0
  %v1349 = vmax.f32 %v1266, 0.0
  %v1350 = vmax.f32 %v1284, 0.0
  %v1351 = vmax.f32 %v1302, 0.0
  %v1352 = vmax.f32 %v1320, 0.0
  %v1353 = vmax.f32 %v1338, 0.0
  %v1354 = vmax.f32 %v1214, 0.0
  %v1355 = vmax.f32 %v1232, 0.0
  %v1356 = vmax.f32 %v1250, 0.0
  %v1357 = vmax.f32 %v1268, 0.0
  %v1358 = vmax.f32 %v1286, 0.0
  %v1359 = vmax.f32 %v1304, 0.0
  %v1360 = vmax.f32 %v1322, 0.0
  %v1361 = vmax.f32 %v1340, 0.0
  %v1362 = vmax.f32 %v1217, 0.0
  %v1363 = vmax.f32 %v1235, 0.0
  %v1364 = vmax.f32 %v1253, 0.0
  %v1365 = vmax.f32 %v1271, 0.0
  %v1366 = vmax.f32 %v1289, 0.0
  %v1367 = vmax.f32 %v1307, 0.0
  %v1368 = vmax.f32 %v1325, 0.0
  %v1369 = vmax.f32 %v1343, 0.0
  %v1370 = vpack.c.bf16 %v1354, %v1346
  %v1371 = vpack.c.bf16 %v1355, %v1347
  %v1372 = vpack.c.bf16 %v1356, %v1348
  %v1373 = vpack.c.bf16 %v1357, %v1349
  %v1374 = vpack.c.bf16 %v1358, %v1350
  %v1375 = vpack.c.bf16 %v1359, %v1351
  %v1376 = vpack.c.bf16 %v1360, %v1352
  %v1377 = vpack.c.bf16 %v1361, %v1353
  %v1378 = vpack.c.bf16 %v1362, %v1362
  %v1379 = vpack.c.bf16 %v1363, %v1363
  %v1380 = vpack.c.bf16 %v1364, %v1364
  %v1381 = vpack.c.bf16 %v1365, %v1365
  %v1382 = vpack.c.bf16 %v1366, %v1366
  %v1383 = vpack.c.bf16 %v1367, %v1367
  %v1384 = vpack.c.bf16 %v1368, %v1368
  %v1385 = vpack.c.bf16 %v1369, %v1369
  %v1386 = vld [vmem:[%s9 + $0x200] sm:$0xf]
  %v1387 = vld [vmem:[%s9 + $0x204] sm:$0xf]
  %v1388 = vld [vmem:[%s9 + $0x208] sm:$0xf]
  %v1389 = vld [vmem:[%s9 + $0x20c] sm:$0xf]
  %v1390 = vld [vmem:[%s9 + $0x210] sm:$0xf]
  %v1391 = vld [vmem:[%s9 + $0x214] sm:$0xf]
  %v1392 = vld [vmem:[%s9 + $0x218] sm:$0xf]
  %v1393 = vld [vmem:[%s9 + $0x21c] sm:$0xf]
  %v1394 = vld [vmem:[%s9 + $0x220] sm:$0xf]
  %v1395 = vld [vmem:[%s9 + $0x224] sm:$0xf]
  %v1396 = vld [vmem:[%s9 + $0x228] sm:$0xf]
  %v1397 = vld [vmem:[%s9 + $0x22c] sm:$0xf]
  %v1398 = vld [vmem:[%s9 + $0x230] sm:$0xf]
  %v1399 = vld [vmem:[%s9 + $0x234] sm:$0xf]
  %v1400 = vld [vmem:[%s9 + $0x238] sm:$0xf]
  %v1401 = vld [vmem:[%s9 + $0x23c] sm:$0xf]
  %v1402 = vld [vmem:[%s9 + $0x240] sm:$0xf]
  %v1403 = vld [vmem:[%s9 + $0x244] sm:$0xf]
  %v1404 = vld [vmem:[%s9 + $0x248] sm:$0xf]
  %v1405 = vld [vmem:[%s9 + $0x24c] sm:$0xf]
  %v1406 = vld [vmem:[%s9 + $0x250] sm:$0xf]
  %v1407 = vld [vmem:[%s9 + $0x254] sm:$0xf]
  %v1408 = vld [vmem:[%s9 + $0x258] sm:$0xf]
  %v1409 = vld [vmem:[%s9 + $0x25c] sm:$0xf]
  %v1410 = vld [vmem:[%s9 + $0x260] sm:$0xf]
  %v1411 = vld [vmem:[%s9 + $0x264] sm:$0xf]
  %v1412 = vld [vmem:[%s9 + $0x268] sm:$0xf]
  %v1413 = vld [vmem:[%s9 + $0x26c] sm:$0xf]
  %v1414 = vld [vmem:[%s9 + $0x270] sm:$0xf]
  %v1415 = vld [vmem:[%s9 + $0x274] sm:$0xf]
  %v1416 = vld [vmem:[%s9 + $0x278] sm:$0xf]
  %v1417 = vld [vmem:[%s9 + $0x27c] sm:$0xf]
  %v1418 = vld [vmem:[%s9 + $0x280] sm:$0xf]
  %v1419 = vld [vmem:[%s9 + $0x284] sm:$0xf]
  %v1420 = vld [vmem:[%s9 + $0x288] sm:$0xf]
  %v1421 = vld [vmem:[%s9 + $0x28c] sm:$0xf]
  %v1422 = vld [vmem:[%s9 + $0x290] sm:$0xf]
  %v1423 = vld [vmem:[%s9 + $0x294] sm:$0xf]
  %v1424 = vld [vmem:[%s9 + $0x298] sm:$0xf]
  %v1425 = vld [vmem:[%s9 + $0x29c] sm:$0xf]
  %v1426 = vld [vmem:[%s9 + $0x2a0] sm:$0xf]
  %v1427 = vld [vmem:[%s9 + $0x2a4] sm:$0xf]
  %v1428 = vld [vmem:[%s9 + $0x2a8] sm:$0xf]
  %v1429 = vld [vmem:[%s9 + $0x2ac] sm:$0xf]
  %v1430 = vld [vmem:[%s9 + $0x2b0] sm:$0xf]
  %v1431 = vld [vmem:[%s9 + $0x2b4] sm:$0xf]
  %v1432 = vld [vmem:[%s9 + $0x2b8] sm:$0xf]
  %v1433 = vld [vmem:[%s9 + $0x2bc] sm:$0xf]
  %v1434 = vld [vmem:[%s9 + $0x2c0] sm:$0xf]
  %v1435 = vld [vmem:[%s9 + $0x2c4] sm:$0xf]
  %v1436 = vld [vmem:[%s9 + $0x2c8] sm:$0xf]
  %v1437 = vld [vmem:[%s9 + $0x2cc] sm:$0xf]
  %v1438 = vld [vmem:[%s9 + $0x2d0] sm:$0xf]
  %v1439 = vld [vmem:[%s9 + $0x2d4] sm:$0xf]
  %v1440 = vld [vmem:[%s9 + $0x2d8] sm:$0xf]
  %v1441 = vld [vmem:[%s9 + $0x2dc] sm:$0xf]
  %v1442 = vld [vmem:[%s9 + $0x2e0] sm:$0xf]
  %v1443 = vld [vmem:[%s9 + $0x2e4] sm:$0xf]
  %v1444 = vld [vmem:[%s9 + $0x2e8] sm:$0xf]
  %v1445 = vld [vmem:[%s9 + $0x2ec] sm:$0xf]
  %v1446 = vld [vmem:[%s9 + $0x2f0] sm:$0xf]
  %v1447 = vld [vmem:[%s9 + $0x2f4] sm:$0xf]
  %v1448 = vld [vmem:[%s9 + $0x2f8] sm:$0xf]
  %v1449 = vld [vmem:[%s9 + $0x2fc] sm:$0xf]
  %v1450 = vld [vmem:[%s9 + $0x300] sm:$0xf]
  %v1451 = vld [vmem:[%s9 + $0x304] sm:$0xf]
  %v1452 = vld [vmem:[%s9 + $0x308] sm:$0xf]
  %v1453 = vld [vmem:[%s9 + $0x30c] sm:$0xf]
  %v1454 = vld [vmem:[%s9 + $0x310] sm:$0xf]
  %v1455 = vld [vmem:[%s9 + $0x314] sm:$0xf]
  %v1456 = vld [vmem:[%s9 + $0x318] sm:$0xf]
  %v1457 = vld [vmem:[%s9 + $0x31c] sm:$0xf]
  %v1458 = vld [vmem:[%s9 + $0x320] sm:$0xf]
  %v1459 = vld [vmem:[%s9 + $0x324] sm:$0xf]
  %v1460 = vld [vmem:[%s9 + $0x328] sm:$0xf]
  %v1461 = vld [vmem:[%s9 + $0x32c] sm:$0xf]
  %v1462 = vld [vmem:[%s9 + $0x330] sm:$0xf]
  %v1463 = vld [vmem:[%s9 + $0x334] sm:$0xf]
  %v1464 = vld [vmem:[%s9 + $0x338] sm:$0xf]
  %v1465 = vld [vmem:[%s9 + $0x33c] sm:$0xf]
  %v1466 = vld [vmem:[%s9 + $0x340] sm:$0xf]
  %v1467 = vld [vmem:[%s9 + $0x344] sm:$0xf]
  %v1468 = vld [vmem:[%s9 + $0x348] sm:$0xf]
  %v1469 = vld [vmem:[%s9 + $0x34c] sm:$0xf]
  %v1470 = vld [vmem:[%s9 + $0x350] sm:$0xf]
  %v1471 = vld [vmem:[%s9 + $0x354] sm:$0xf]
  %v1472 = vld [vmem:[%s9 + $0x358] sm:$0xf]
  %v1473 = vld [vmem:[%s9 + $0x35c] sm:$0xf]
  %v1474 = vld [vmem:[%s9 + $0x360] sm:$0xf]
  %v1475 = vld [vmem:[%s9 + $0x364] sm:$0xf]
  %v1476 = vld [vmem:[%s9 + $0x368] sm:$0xf]
  %v1477 = vld [vmem:[%s9 + $0x36c] sm:$0xf]
  %v1478 = vld [vmem:[%s9 + $0x370] sm:$0xf]
  %v1479 = vld [vmem:[%s9 + $0x374] sm:$0xf]
  %v1480 = vld [vmem:[%s9 + $0x378] sm:$0xf]
  %v1481 = vld [vmem:[%s9 + $0x37c] sm:$0xf]
  %v1482 = vld [vmem:[%s9 + $0x380] sm:$0xf]
  %v1483 = vld [vmem:[%s9 + $0x384] sm:$0xf]
  %v1484 = vld [vmem:[%s9 + $0x388] sm:$0xf]
  %v1485 = vld [vmem:[%s9 + $0x38c] sm:$0xf]
  %v1486 = vld [vmem:[%s9 + $0x390] sm:$0xf]
  %v1487 = vld [vmem:[%s9 + $0x394] sm:$0xf]
  %v1488 = vld [vmem:[%s9 + $0x398] sm:$0xf]
  %v1489 = vld [vmem:[%s9 + $0x39c] sm:$0xf]
  %v1490 = vld [vmem:[%s9 + $0x3a0] sm:$0xf]
  %v1491 = vld [vmem:[%s9 + $0x3a4] sm:$0xf]
  %v1492 = vld [vmem:[%s9 + $0x3a8] sm:$0xf]
  %v1493 = vld [vmem:[%s9 + $0x3ac] sm:$0xf]
  %v1494 = vld [vmem:[%s9 + $0x3b0] sm:$0xf]
  %v1495 = vld [vmem:[%s9 + $0x3b4] sm:$0xf]
  %v1496 = vld [vmem:[%s9 + $0x3b8] sm:$0xf]
  %v1497 = vld [vmem:[%s9 + $0x3bc] sm:$0xf]
  %v1498 = vld [vmem:[%s9 + $0x3c0] sm:$0xf]
  %v1499 = vld [vmem:[%s9 + $0x3c4] sm:$0xf]
  %v1500 = vld [vmem:[%s9 + $0x3c8] sm:$0xf]
  %v1501 = vld [vmem:[%s9 + $0x3cc] sm:$0xf]
  %v1502 = vld [vmem:[%s9 + $0x3d0] sm:$0xf]
  %v1503 = vld [vmem:[%s9 + $0x3d4] sm:$0xf]
  %v1504 = vld [vmem:[%s9 + $0x3d8] sm:$0xf]
  %v1505 = vld [vmem:[%s9 + $0x3dc] sm:$0xf]
  %v1506 = vld [vmem:[%s9 + $0x3e0] sm:$0xf]
  %v1507 = vld [vmem:[%s9 + $0x3e4] sm:$0xf]
  %v1508 = vld [vmem:[%s9 + $0x3e8] sm:$0xf]
  %v1509 = vld [vmem:[%s9 + $0x3ec] sm:$0xf]
  %v1510 = vld [vmem:[%s9 + $0x3f0] sm:$0xf]
  %v1511 = vld [vmem:[%s9 + $0x3f4] sm:$0xf]
  %v1512 = vld [vmem:[%s9 + $0x3f8] sm:$0xf]
  %v1513 = vld [vmem:[%s9 + $0x3fc] sm:$0xf]
  %v1642 = vunpack.c.l.b16 %v1386
  %v1643 = vunpack.c.l.b16 %v1387
  %v1644 = vunpack.c.l.b16 %v1388
  %v1645 = vunpack.c.l.b16 %v1389
  %v1646 = vunpack.c.l.b16 %v1390
  %v1647 = vunpack.c.l.b16 %v1391
  %v1648 = vunpack.c.l.b16 %v1392
  %v1649 = vunpack.c.l.b16 %v1393
  %v1650 = vunpack.c.l.b16 %v1394
  %v1651 = vunpack.c.l.b16 %v1395
  %v1652 = vunpack.c.l.b16 %v1396
  %v1653 = vunpack.c.l.b16 %v1397
  %v1654 = vunpack.c.l.b16 %v1398
  %v1655 = vunpack.c.l.b16 %v1399
  %v1656 = vunpack.c.l.b16 %v1400
  %v1657 = vunpack.c.l.b16 %v1401
  %v1658 = vunpack.c.l.b16 %v1402
  %v1659 = vunpack.c.l.b16 %v1403
  %v1660 = vunpack.c.l.b16 %v1404
  %v1661 = vunpack.c.l.b16 %v1405
  %v1662 = vunpack.c.l.b16 %v1406
  %v1663 = vunpack.c.l.b16 %v1407
  %v1664 = vunpack.c.l.b16 %v1408
  %v1665 = vunpack.c.l.b16 %v1409
  %v1666 = vunpack.c.l.b16 %v1410
  %v1667 = vunpack.c.l.b16 %v1411
  %v1668 = vunpack.c.l.b16 %v1412
  %v1669 = vunpack.c.l.b16 %v1413
  %v1670 = vunpack.c.l.b16 %v1414
  %v1671 = vunpack.c.l.b16 %v1415
  %v1672 = vunpack.c.l.b16 %v1416
  %v1673 = vunpack.c.l.b16 %v1417
  %v1674 = vunpack.c.l.b16 %v1418
  %v1675 = vunpack.c.l.b16 %v1419
  %v1676 = vunpack.c.l.b16 %v1420
  %v1677 = vunpack.c.l.b16 %v1421
  %v1678 = vunpack.c.l.b16 %v1422
  %v1679 = vunpack.c.l.b16 %v1423
  %v1680 = vunpack.c.l.b16 %v1424
  %v1681 = vunpack.c.l.b16 %v1425
  %v1682 = vunpack.c.l.b16 %v1426
  %v1683 = vunpack.c.l.b16 %v1427
  %v1684 = vunpack.c.l.b16 %v1428
  %v1685 = vunpack.c.l.b16 %v1429
  %v1686 = vunpack.c.l.b16 %v1430
  %v1687 = vunpack.c.l.b16 %v1431
  %v1688 = vunpack.c.l.b16 %v1432
  %v1689 = vunpack.c.l.b16 %v1433
  %v1690 = vunpack.c.l.b16 %v1434
  %v1691 = vunpack.c.l.b16 %v1435
  %v1692 = vunpack.c.l.b16 %v1436
  %v1693 = vunpack.c.l.b16 %v1437
  %v1694 = vunpack.c.l.b16 %v1438
  %v1695 = vunpack.c.l.b16 %v1439
  %v1696 = vunpack.c.l.b16 %v1440
  %v1697 = vunpack.c.l.b16 %v1441
  %v1698 = vunpack.c.l.b16 %v1442
  %v1699 = vunpack.c.l.b16 %v1443
  %v1700 = vunpack.c.l.b16 %v1444
  %v1701 = vunpack.c.l.b16 %v1445
  %v1702 = vunpack.c.l.b16 %v1446
  %v1703 = vunpack.c.l.b16 %v1447
  %v1704 = vunpack.c.l.b16 %v1448
  %v1705 = vunpack.c.l.b16 %v1449
  %v1706 = vunpack.c.l.b16 %v1450
  %v1707 = vunpack.c.l.b16 %v1451
  %v1708 = vunpack.c.l.b16 %v1452
  %v1709 = vunpack.c.l.b16 %v1453
  %v1710 = vunpack.c.l.b16 %v1454
  %v1711 = vunpack.c.l.b16 %v1455
  %v1712 = vunpack.c.l.b16 %v1456
  %v1713 = vunpack.c.l.b16 %v1457
  %v1714 = vunpack.c.l.b16 %v1458
  %v1715 = vunpack.c.l.b16 %v1459
  %v1716 = vunpack.c.l.b16 %v1460
  %v1717 = vunpack.c.l.b16 %v1461
  %v1718 = vunpack.c.l.b16 %v1462
  %v1719 = vunpack.c.l.b16 %v1463
  %v1720 = vunpack.c.l.b16 %v1464
  %v1721 = vunpack.c.l.b16 %v1465
  %v1722 = vunpack.c.l.b16 %v1466
  %v1723 = vunpack.c.l.b16 %v1467
  %v1724 = vunpack.c.l.b16 %v1468
  %v1725 = vunpack.c.l.b16 %v1469
  %v1726 = vunpack.c.l.b16 %v1470
  %v1727 = vunpack.c.l.b16 %v1471
  %v1728 = vunpack.c.l.b16 %v1472
  %v1729 = vunpack.c.l.b16 %v1473
  %v1730 = vunpack.c.l.b16 %v1474
  %v1731 = vunpack.c.l.b16 %v1475
  %v1732 = vunpack.c.l.b16 %v1476
  %v1733 = vunpack.c.l.b16 %v1477
  %v1734 = vunpack.c.l.b16 %v1478
  %v1735 = vunpack.c.l.b16 %v1479
  %v1736 = vunpack.c.l.b16 %v1480
  %v1737 = vunpack.c.l.b16 %v1481
  %v1738 = vunpack.c.l.b16 %v1482
  %v1739 = vunpack.c.l.b16 %v1483
  %v1740 = vunpack.c.l.b16 %v1484
  %v1741 = vunpack.c.l.b16 %v1485
  %v1742 = vunpack.c.l.b16 %v1486
  %v1743 = vunpack.c.l.b16 %v1487
  %v1744 = vunpack.c.l.b16 %v1488
  %v1745 = vunpack.c.l.b16 %v1489
  %v1746 = vunpack.c.l.b16 %v1490
  %v1747 = vunpack.c.l.b16 %v1491
  %v1748 = vunpack.c.l.b16 %v1492
  %v1749 = vunpack.c.l.b16 %v1493
  %v1750 = vunpack.c.l.b16 %v1494
  %v1751 = vunpack.c.l.b16 %v1495
  %v1752 = vunpack.c.l.b16 %v1496
  %v1753 = vunpack.c.l.b16 %v1497
  %v1754 = vunpack.c.l.b16 %v1498
  %v1755 = vunpack.c.l.b16 %v1499
  %v1756 = vunpack.c.l.b16 %v1500
  %v1757 = vunpack.c.l.b16 %v1501
  %v1758 = vunpack.c.l.b16 %v1502
  %v1759 = vunpack.c.l.b16 %v1503
  %v1760 = vunpack.c.l.b16 %v1504
  %v1761 = vunpack.c.l.b16 %v1505
  %v1762 = vunpack.c.l.b16 %v1506
  %v1763 = vunpack.c.l.b16 %v1507
  %v1764 = vunpack.c.l.b16 %v1508
  %v1765 = vunpack.c.l.b16 %v1509
  %v1766 = vunpack.c.l.b16 %v1510
  %v1767 = vunpack.c.l.b16 %v1511
  %v1768 = vunpack.c.l.b16 %v1512
  %v1769 = vunpack.c.l.b16 %v1513
  %v1770 = vpack.c.b16 %v1643, %v1642
  %v1771 = vpack.c.b16 %v1645, %v1644
  %v1772 = vpack.c.b16 %v1647, %v1646
  %v1773 = vpack.c.b16 %v1649, %v1648
  %v1774 = vpack.c.b16 %v1651, %v1650
  %v1775 = vpack.c.b16 %v1653, %v1652
  %v1776 = vpack.c.b16 %v1655, %v1654
  %v1777 = vpack.c.b16 %v1657, %v1656
  %v1778 = vpack.c.b16 %v1659, %v1658
  %v1779 = vpack.c.b16 %v1661, %v1660
  %v1780 = vpack.c.b16 %v1663, %v1662
  %v1781 = vpack.c.b16 %v1665, %v1664
  %v1782 = vpack.c.b16 %v1667, %v1666
  %v1783 = vpack.c.b16 %v1669, %v1668
  %v1784 = vpack.c.b16 %v1671, %v1670
  %v1785 = vpack.c.b16 %v1673, %v1672
  %v1786 = vpack.c.b16 %v1675, %v1674
  %v1787 = vpack.c.b16 %v1677, %v1676
  %v1788 = vpack.c.b16 %v1679, %v1678
  %v1789 = vpack.c.b16 %v1681, %v1680
  %v1790 = vpack.c.b16 %v1683, %v1682
  %v1791 = vpack.c.b16 %v1685, %v1684
  %v1792 = vpack.c.b16 %v1687, %v1686
  %v1793 = vpack.c.b16 %v1689, %v1688
  %v1794 = vpack.c.b16 %v1691, %v1690
  %v1795 = vpack.c.b16 %v1693, %v1692
  %v1796 = vpack.c.b16 %v1695, %v1694
  %v1797 = vpack.c.b16 %v1697, %v1696
  %v1798 = vpack.c.b16 %v1699, %v1698
  %v1799 = vpack.c.b16 %v1701, %v1700
  %v1800 = vpack.c.b16 %v1703, %v1702
  %v1801 = vpack.c.b16 %v1705, %v1704
  %v1802 = vpack.c.b16 %v1707, %v1706
  %v1803 = vpack.c.b16 %v1709, %v1708
  %v1804 = vpack.c.b16 %v1711, %v1710
  %v1805 = vpack.c.b16 %v1713, %v1712
  %v1806 = vpack.c.b16 %v1715, %v1714
  %v1807 = vpack.c.b16 %v1717, %v1716
  %v1808 = vpack.c.b16 %v1719, %v1718
  %v1809 = vpack.c.b16 %v1721, %v1720
  %v1810 = vpack.c.b16 %v1723, %v1722
  %v1811 = vpack.c.b16 %v1725, %v1724
  %v1812 = vpack.c.b16 %v1727, %v1726
  %v1813 = vpack.c.b16 %v1729, %v1728
  %v1814 = vpack.c.b16 %v1731, %v1730
  %v1815 = vpack.c.b16 %v1733, %v1732
  %v1816 = vpack.c.b16 %v1735, %v1734
  %v1817 = vpack.c.b16 %v1737, %v1736
  %v1818 = vpack.c.b16 %v1739, %v1738
  %v1819 = vpack.c.b16 %v1741, %v1740
  %v1820 = vpack.c.b16 %v1743, %v1742
  %v1821 = vpack.c.b16 %v1745, %v1744
  %v1822 = vpack.c.b16 %v1747, %v1746
  %v1823 = vpack.c.b16 %v1749, %v1748
  %v1824 = vpack.c.b16 %v1751, %v1750
  %v1825 = vpack.c.b16 %v1753, %v1752
  %v1826 = vpack.c.b16 %v1755, %v1754
  %v1827 = vpack.c.b16 %v1757, %v1756
  %v1828 = vpack.c.b16 %v1759, %v1758
  %v1829 = vpack.c.b16 %v1761, %v1760
  %v1830 = vpack.c.b16 %v1763, %v1762
  %v1831 = vpack.c.b16 %v1765, %v1764
  %v1832 = vpack.c.b16 %v1767, %v1766
  %v1833 = vpack.c.b16 %v1769, %v1768
  %1898 = vmatpush.bf16.msra.mxu0 %v1777
  %1899 = vmatpush.bf16.msra.mxu0 %v1776
  %1900 = vmatpush.bf16.msra.mxu0 %v1775
  %1901 = vmatpush.bf16.msra.mxu0 %v1774
  %1902 = vmatpush.bf16.msra.mxu0 %v1773
  %1903 = vmatpush.bf16.msra.mxu0 %v1772
  %1904 = vmatpush.bf16.msra.mxu0 %v1771
  %1905 = vmatpush.bf16.msra.mxu0 %v1770
  %1906 = vmatmul.bf16.gmra.mxu0 %v1370
  %v1907 = vpop.f32.mrf.mxu0
  %v1908 = vadd.f32 0.0, %v1907
  %v1909 = vpop.f32.mrf.mxu0
  %v1910 = vadd.f32 0.0, %v1909
  %1911 = vmatmul.bf16.gmra.mxu0 %v1378
  %v1912 = vpop.f32.mrf.mxu0
  %v1913 = vadd.f32 0.0, %v1912
  %v1914 = vpop.f32.mrf.mxu0
  %1915 = vdwg.mxu0
  %1916 = vmatpush.bf16.msra.mxu0 %v1785
  %1917 = vmatpush.bf16.msra.mxu0 %v1784
  %1918 = vmatpush.bf16.msra.mxu0 %v1783
  %1919 = vmatpush.bf16.msra.mxu0 %v1782
  %1920 = vmatpush.bf16.msra.mxu0 %v1781
  %1921 = vmatpush.bf16.msra.mxu0 %v1780
  %1922 = vmatpush.bf16.msra.mxu0 %v1779
  %1923 = vmatpush.bf16.msra.mxu0 %v1778
  %1924 = vmatmul.bf16.gmra.mxu0 %v1371
  %v1925 = vpop.f32.mrf.mxu0
  %v1926 = vadd.f32 %v1908, %v1925
  %v1927 = vpop.f32.mrf.mxu0
  %v1928 = vadd.f32 %v1910, %v1927
  %1929 = vmatmul.bf16.gmra.mxu0 %v1379
  %v1930 = vpop.f32.mrf.mxu0
  %v1931 = vadd.f32 %v1913, %v1930
  %v1932 = vpop.f32.mrf.mxu0
  %1933 = vdwg.mxu0
  %1934 = vmatpush.bf16.msra.mxu0 %v1793
  %1935 = vmatpush.bf16.msra.mxu0 %v1792
  %1936 = vmatpush.bf16.msra.mxu0 %v1791
  %1937 = vmatpush.bf16.msra.mxu0 %v1790
  %1938 = vmatpush.bf16.msra.mxu0 %v1789
  %1939 = vmatpush.bf16.msra.mxu0 %v1788
  %1940 = vmatpush.bf16.msra.mxu0 %v1787
  %1941 = vmatpush.bf16.msra.mxu0 %v1786
  %1942 = vmatmul.bf16.gmra.mxu0 %v1372
  %v1943 = vpop.f32.mrf.mxu0
  %v1944 = vadd.f32 %v1926, %v1943
  %v1945 = vpop.f32.mrf.mxu0
  %v1946 = vadd.f32 %v1928, %v1945
  %1947 = vmatmul.bf16.gmra.mxu0 %v1380
  %v1948 = vpop.f32.mrf.mxu0
  %v1949 = vadd.f32 %v1931, %v1948
  %v1950 = vpop.f32.mrf.mxu0
  %1951 = vdwg.mxu0
  %1952 = vmatpush.bf16.msra.mxu0 %v1801
  %1953 = vmatpush.bf16.msra.mxu0 %v1800
  %1954 = vmatpush.bf16.msra.mxu0 %v1799
  %1955 = vmatpush.bf16.msra.mxu0 %v1798
  %1956 = vmatpush.bf16.msra.mxu0 %v1797
  %1957 = vmatpush.bf16.msra.mxu0 %v1796
  %1958 = vmatpush.bf16.msra.mxu0 %v1795
  %1959 = vmatpush.bf16.msra.mxu0 %v1794
  %1960 = vmatmul.bf16.gmra.mxu0 %v1373
  %v1961 = vpop.f32.mrf.mxu0
  %v1962 = vadd.f32 %v1944, %v1961
  %v1963 = vpop.f32.mrf.mxu0
  %v1964 = vadd.f32 %v1946, %v1963
  %1965 = vmatmul.bf16.gmra.mxu0 %v1381
  %v1966 = vpop.f32.mrf.mxu0
  %v1967 = vadd.f32 %v1949, %v1966
  %v1968 = vpop.f32.mrf.mxu0
  %1969 = vdwg.mxu0
  %1970 = vmatpush.bf16.msra.mxu0 %v1809
  %1971 = vmatpush.bf16.msra.mxu0 %v1808
  %1972 = vmatpush.bf16.msra.mxu0 %v1807
  %1973 = vmatpush.bf16.msra.mxu0 %v1806
  %1974 = vmatpush.bf16.msra.mxu0 %v1805
  %1975 = vmatpush.bf16.msra.mxu0 %v1804
  %1976 = vmatpush.bf16.msra.mxu0 %v1803
  %1977 = vmatpush.bf16.msra.mxu0 %v1802
  %1978 = vmatmul.bf16.gmra.mxu0 %v1374
  %v1979 = vpop.f32.mrf.mxu0
  %v1980 = vadd.f32 %v1962, %v1979
  %v1981 = vpop.f32.mrf.mxu0
  %v1982 = vadd.f32 %v1964, %v1981
  %1983 = vmatmul.bf16.gmra.mxu0 %v1382
  %v1984 = vpop.f32.mrf.mxu0
  %v1985 = vadd.f32 %v1967, %v1984
  %v1986 = vpop.f32.mrf.mxu0
  %1987 = vdwg.mxu0
  %1988 = vmatpush.bf16.msra.mxu0 %v1817
  %1989 = vmatpush.bf16.msra.mxu0 %v1816
  %1990 = vmatpush.bf16.msra.mxu0 %v1815
  %1991 = vmatpush.bf16.msra.mxu0 %v1814
  %1992 = vmatpush.bf16.msra.mxu0 %v1813
  %1993 = vmatpush.bf16.msra.mxu0 %v1812
  %1994 = vmatpush.bf16.msra.mxu0 %v1811
  %1995 = vmatpush.bf16.msra.mxu0 %v1810
  %1996 = vmatmul.bf16.gmra.mxu0 %v1375
  %v1997 = vpop.f32.mrf.mxu0
  %v1998 = vadd.f32 %v1980, %v1997
  %v1999 = vpop.f32.mrf.mxu0
  %v2000 = vadd.f32 %v1982, %v1999
  %2001 = vmatmul.bf16.gmra.mxu0 %v1383
  %v2002 = vpop.f32.mrf.mxu0
  %v2003 = vadd.f32 %v1985, %v2002
  %v2004 = vpop.f32.mrf.mxu0
  %2005 = vdwg.mxu0
  %2006 = vmatpush.bf16.msra.mxu0 %v1825
  %2007 = vmatpush.bf16.msra.mxu0 %v1824
  %2008 = vmatpush.bf16.msra.mxu0 %v1823
  %2009 = vmatpush.bf16.msra.mxu0 %v1822
  %2010 = vmatpush.bf16.msra.mxu0 %v1821
  %2011 = vmatpush.bf16.msra.mxu0 %v1820
  %2012 = vmatpush.bf16.msra.mxu0 %v1819
  %2013 = vmatpush.bf16.msra.mxu0 %v1818
  %2014 = vmatmul.bf16.gmra.mxu0 %v1376
  %v2015 = vpop.f32.mrf.mxu0
  %v2016 = vadd.f32 %v1998, %v2015
  %v2017 = vpop.f32.mrf.mxu0
  %v2018 = vadd.f32 %v2000, %v2017
  %2019 = vmatmul.bf16.gmra.mxu0 %v1384
  %v2020 = vpop.f32.mrf.mxu0
  %v2021 = vadd.f32 %v2003, %v2020
  %v2022 = vpop.f32.mrf.mxu0
  %2023 = vdwg.mxu0
  %2024 = vmatpush.bf16.msra.mxu0 %v1833
  %2025 = vmatpush.bf16.msra.mxu0 %v1832
  %2026 = vmatpush.bf16.msra.mxu0 %v1831
  %2027 = vmatpush.bf16.msra.mxu0 %v1830
  %2028 = vmatpush.bf16.msra.mxu0 %v1829
  %2029 = vmatpush.bf16.msra.mxu0 %v1828
  %2030 = vmatpush.bf16.msra.mxu0 %v1827
  %2031 = vmatpush.bf16.msra.mxu0 %v1826
  %2032 = vmatmul.bf16.gmra.mxu0 %v1377
  %v2033 = vpop.f32.mrf.mxu0
  %v2034 = vadd.f32 %v2016, %v2033
  %v2035 = vpop.f32.mrf.mxu0
  %v2036 = vadd.f32 %v2018, %v2035
  %2037 = vmatmul.bf16.gmra.mxu0 %v1385
  %v2038 = vpop.f32.mrf.mxu0
  %v2039 = vadd.f32 %v2021, %v2038
  %v2040 = vpop.f32.mrf.mxu0
  %2041 = vdwg.mxu0
  %v2170 = vunpack.c.l.b16 %v960
  %v2171 = vunpack.c.l.b16 %v961
  %v2172 = vunpack.c.l.b16 %v962
  %v2173 = vunpack.c.l.b16 %v963
  %v2174 = vunpack.c.l.b16 %v964
  %v2175 = vunpack.c.l.b16 %v965
  %v2176 = vunpack.c.l.b16 %v966
  %v2177 = vunpack.c.l.b16 %v967
  %v2178 = vunpack.c.l.b16 %v968
  %v2179 = vunpack.c.l.b16 %v969
  %v2180 = vunpack.c.l.b16 %v970
  %v2181 = vunpack.c.l.b16 %v971
  %v2182 = vunpack.c.l.b16 %v972
  %v2183 = vunpack.c.l.b16 %v973
  %v2184 = vunpack.c.l.b16 %v974
  %v2185 = vunpack.c.l.b16 %v975
  %v2186 = vunpack.c.l.b16 %v976
  %v2187 = vunpack.c.l.b16 %v977
  %v2188 = vunpack.c.l.b16 %v978
  %v2189 = vunpack.c.l.b16 %v979
  %v2190 = vunpack.c.l.b16 %v980
  %v2191 = vunpack.c.l.b16 %v981
  %v2192 = vunpack.c.l.b16 %v982
  %v2193 = vunpack.c.l.b16 %v983
  %v2194 = vunpack.c.l.b16 %v984
  %v2195 = vunpack.c.l.b16 %v985
  %v2196 = vunpack.c.l.b16 %v986
  %v2197 = vunpack.c.l.b16 %v987
  %v2198 = vunpack.c.l.b16 %v988
  %v2199 = vunpack.c.l.b16 %v989
  %v2200 = vunpack.c.l.b16 %v990
  %v2201 = vunpack.c.l.b16 %v991
  %v2202 = vunpack.c.l.b16 %v992
  %v2203 = vunpack.c.l.b16 %v993
  %v2204 = vunpack.c.l.b16 %v994
  %v2205 = vunpack.c.l.b16 %v995
  %v2206 = vunpack.c.l.b16 %v996
  %v2207 = vunpack.c.l.b16 %v997
  %v2208 = vunpack.c.l.b16 %v998
  %v2209 = vunpack.c.l.b16 %v999
  %v2210 = vunpack.c.l.b16 %v1000
  %v2211 = vunpack.c.l.b16 %v1001
  %v2212 = vunpack.c.l.b16 %v1002
  %v2213 = vunpack.c.l.b16 %v1003
  %v2214 = vunpack.c.l.b16 %v1004
  %v2215 = vunpack.c.l.b16 %v1005
  %v2216 = vunpack.c.l.b16 %v1006
  %v2217 = vunpack.c.l.b16 %v1007
  %v2218 = vunpack.c.l.b16 %v1008
  %v2219 = vunpack.c.l.b16 %v1009
  %v2220 = vunpack.c.l.b16 %v1010
  %v2221 = vunpack.c.l.b16 %v1011
  %v2222 = vunpack.c.l.b16 %v1012
  %v2223 = vunpack.c.l.b16 %v1013
  %v2224 = vunpack.c.l.b16 %v1014
  %v2225 = vunpack.c.l.b16 %v1015
  %v2226 = vunpack.c.l.b16 %v1016
  %v2227 = vunpack.c.l.b16 %v1017
  %v2228 = vunpack.c.l.b16 %v1018
  %v2229 = vunpack.c.l.b16 %v1019
  %v2230 = vunpack.c.l.b16 %v1020
  %v2231 = vunpack.c.l.b16 %v1021
  %v2232 = vunpack.c.l.b16 %v1022
  %v2233 = vunpack.c.l.b16 %v1023
  %v2234 = vunpack.c.l.b16 %v1024
  %v2235 = vunpack.c.l.b16 %v1025
  %v2236 = vunpack.c.l.b16 %v1026
  %v2237 = vunpack.c.l.b16 %v1027
  %v2238 = vunpack.c.l.b16 %v1028
  %v2239 = vunpack.c.l.b16 %v1029
  %v2240 = vunpack.c.l.b16 %v1030
  %v2241 = vunpack.c.l.b16 %v1031
  %v2242 = vunpack.c.l.b16 %v1032
  %v2243 = vunpack.c.l.b16 %v1033
  %v2244 = vunpack.c.l.b16 %v1034
  %v2245 = vunpack.c.l.b16 %v1035
  %v2246 = vunpack.c.l.b16 %v1036
  %v2247 = vunpack.c.l.b16 %v1037
  %v2248 = vunpack.c.l.b16 %v1038
  %v2249 = vunpack.c.l.b16 %v1039
  %v2250 = vunpack.c.l.b16 %v1040
  %v2251 = vunpack.c.l.b16 %v1041
  %v2252 = vunpack.c.l.b16 %v1042
  %v2253 = vunpack.c.l.b16 %v1043
  %v2254 = vunpack.c.l.b16 %v1044
  %v2255 = vunpack.c.l.b16 %v1045
  %v2256 = vunpack.c.l.b16 %v1046
  %v2257 = vunpack.c.l.b16 %v1047
  %v2258 = vunpack.c.l.b16 %v1048
  %v2259 = vunpack.c.l.b16 %v1049
  %v2260 = vunpack.c.l.b16 %v1050
  %v2261 = vunpack.c.l.b16 %v1051
  %v2262 = vunpack.c.l.b16 %v1052
  %v2263 = vunpack.c.l.b16 %v1053
  %v2264 = vunpack.c.l.b16 %v1054
  %v2265 = vunpack.c.l.b16 %v1055
  %v2266 = vunpack.c.l.b16 %v1056
  %v2267 = vunpack.c.l.b16 %v1057
  %v2268 = vunpack.c.l.b16 %v1058
  %v2269 = vunpack.c.l.b16 %v1059
  %v2270 = vunpack.c.l.b16 %v1060
  %v2271 = vunpack.c.l.b16 %v1061
  %v2272 = vunpack.c.l.b16 %v1062
  %v2273 = vunpack.c.l.b16 %v1063
  %v2274 = vunpack.c.l.b16 %v1064
  %v2275 = vunpack.c.l.b16 %v1065
  %v2276 = vunpack.c.l.b16 %v1066
  %v2277 = vunpack.c.l.b16 %v1067
  %v2278 = vunpack.c.l.b16 %v1068
  %v2279 = vunpack.c.l.b16 %v1069
  %v2280 = vunpack.c.l.b16 %v1070
  %v2281 = vunpack.c.l.b16 %v1071
  %v2282 = vunpack.c.l.b16 %v1072
  %v2283 = vunpack.c.l.b16 %v1073
  %v2284 = vunpack.c.l.b16 %v1074
  %v2285 = vunpack.c.l.b16 %v1075
  %v2286 = vunpack.c.l.b16 %v1076
  %v2287 = vunpack.c.l.b16 %v1077
  %v2288 = vunpack.c.l.b16 %v1078
  %v2289 = vunpack.c.l.b16 %v1079
  %v2290 = vunpack.c.l.b16 %v1080
  %v2291 = vunpack.c.l.b16 %v1081
  %v2292 = vunpack.c.l.b16 %v1082
  %v2293 = vunpack.c.l.b16 %v1083
  %v2294 = vunpack.c.l.b16 %v1084
  %v2295 = vunpack.c.l.b16 %v1085
  %v2296 = vunpack.c.l.b16 %v1086
  %v2297 = vunpack.c.l.b16 %v1087
  %v2298 = vpack.c.b16 %v2171, %v2170
  %v2299 = vpack.c.b16 %v2173, %v2172
  %v2300 = vpack.c.b16 %v2175, %v2174
  %v2301 = vpack.c.b16 %v2177, %v2176
  %v2302 = vpack.c.b16 %v2179, %v2178
  %v2303 = vpack.c.b16 %v2181, %v2180
  %v2304 = vpack.c.b16 %v2183, %v2182
  %v2305 = vpack.c.b16 %v2185, %v2184
  %v2306 = vpack.c.b16 %v2187, %v2186
  %v2307 = vpack.c.b16 %v2189, %v2188
  %v2308 = vpack.c.b16 %v2191, %v2190
  %v2309 = vpack.c.b16 %v2193, %v2192
  %v2310 = vpack.c.b16 %v2195, %v2194
  %v2311 = vpack.c.b16 %v2197, %v2196
  %v2312 = vpack.c.b16 %v2199, %v2198
  %v2313 = vpack.c.b16 %v2201, %v2200
  %v2314 = vpack.c.b16 %v2203, %v2202
  %v2315 = vpack.c.b16 %v2205, %v2204
  %v2316 = vpack.c.b16 %v2207, %v2206
  %v2317 = vpack.c.b16 %v2209, %v2208
  %v2318 = vpack.c.b16 %v2211, %v2210
  %v2319 = vpack.c.b16 %v2213, %v2212
  %v2320 = vpack.c.b16 %v2215, %v2214
  %v2321 = vpack.c.b16 %v2217, %v2216
  %v2322 = vpack.c.b16 %v2219, %v2218
  %v2323 = vpack.c.b16 %v2221, %v2220
  %v2324 = vpack.c.b16 %v2223, %v2222
  %v2325 = vpack.c.b16 %v2225, %v2224
  %v2326 = vpack.c.b16 %v2227, %v2226
  %v2327 = vpack.c.b16 %v2229, %v2228
  %v2328 = vpack.c.b16 %v2231, %v2230
  %v2329 = vpack.c.b16 %v2233, %v2232
  %v2330 = vpack.c.b16 %v2235, %v2234
  %v2331 = vpack.c.b16 %v2237, %v2236
  %v2332 = vpack.c.b16 %v2239, %v2238
  %v2333 = vpack.c.b16 %v2241, %v2240
  %v2334 = vpack.c.b16 %v2243, %v2242
  %v2335 = vpack.c.b16 %v2245, %v2244
  %v2336 = vpack.c.b16 %v2247, %v2246
  %v2337 = vpack.c.b16 %v2249, %v2248
  %v2338 = vpack.c.b16 %v2251, %v2250
  %v2339 = vpack.c.b16 %v2253, %v2252
  %v2340 = vpack.c.b16 %v2255, %v2254
  %v2341 = vpack.c.b16 %v2257, %v2256
  %v2342 = vpack.c.b16 %v2259, %v2258
  %v2343 = vpack.c.b16 %v2261, %v2260
  %v2344 = vpack.c.b16 %v2263, %v2262
  %v2345 = vpack.c.b16 %v2265, %v2264
  %v2346 = vpack.c.b16 %v2267, %v2266
  %v2347 = vpack.c.b16 %v2269, %v2268
  %v2348 = vpack.c.b16 %v2271, %v2270
  %v2349 = vpack.c.b16 %v2273, %v2272
  %v2350 = vpack.c.b16 %v2275, %v2274
  %v2351 = vpack.c.b16 %v2277, %v2276
  %v2352 = vpack.c.b16 %v2279, %v2278
  %v2353 = vpack.c.b16 %v2281, %v2280
  %v2354 = vpack.c.b16 %v2283, %v2282
  %v2355 = vpack.c.b16 %v2285, %v2284
  %v2356 = vpack.c.b16 %v2287, %v2286
  %v2357 = vpack.c.b16 %v2289, %v2288
  %v2358 = vpack.c.b16 %v2291, %v2290
  %v2359 = vpack.c.b16 %v2293, %v2292
  %v2360 = vpack.c.b16 %v2295, %v2294
  %v2361 = vpack.c.b16 %v2297, %v2296
  %2426 = vmatpush.bf16.msra.mxu0 %v2305
  %2427 = vmatpush.bf16.msra.mxu0 %v2304
  %2428 = vmatpush.bf16.msra.mxu0 %v2303
  %2429 = vmatpush.bf16.msra.mxu0 %v2302
  %2430 = vmatpush.bf16.msra.mxu0 %v2301
  %2431 = vmatpush.bf16.msra.mxu0 %v2300
  %2432 = vmatpush.bf16.msra.mxu0 %v2299
  %2433 = vmatpush.bf16.msra.mxu0 %v2298
  %2434 = vmatmul.bf16.gmra.mxu0 %v944
  %v2435 = vpop.f32.mrf.mxu0
  %v2436 = vadd.f32 %v2034, %v2435
  %v2437 = vpop.f32.mrf.mxu0
  %v2438 = vadd.f32 %v2036, %v2437
  %2439 = vmatmul.bf16.gmra.mxu0 %v952
  %v2440 = vpop.f32.mrf.mxu0
  %v2441 = vadd.f32 %v2039, %v2440
  %v2442 = vpop.f32.mrf.mxu0
  %2443 = vdwg.mxu0
  %2444 = vmatpush.bf16.msra.mxu0 %v2313
  %2445 = vmatpush.bf16.msra.mxu0 %v2312
  %2446 = vmatpush.bf16.msra.mxu0 %v2311
  %2447 = vmatpush.bf16.msra.mxu0 %v2310
  %2448 = vmatpush.bf16.msra.mxu0 %v2309
  %2449 = vmatpush.bf16.msra.mxu0 %v2308
  %2450 = vmatpush.bf16.msra.mxu0 %v2307
  %2451 = vmatpush.bf16.msra.mxu0 %v2306
  %2452 = vmatmul.bf16.gmra.mxu0 %v945
  %v2453 = vpop.f32.mrf.mxu0
  %v2454 = vadd.f32 %v2436, %v2453
  %v2455 = vpop.f32.mrf.mxu0
  %v2456 = vadd.f32 %v2438, %v2455
  %2457 = vmatmul.bf16.gmra.mxu0 %v953
  %v2458 = vpop.f32.mrf.mxu0
  %v2459 = vadd.f32 %v2441, %v2458
  %v2460 = vpop.f32.mrf.mxu0
  %2461 = vdwg.mxu0
  %2462 = vmatpush.bf16.msra.mxu0 %v2321
  %2463 = vmatpush.bf16.msra.mxu0 %v2320
  %2464 = vmatpush.bf16.msra.mxu0 %v2319
  %2465 = vmatpush.bf16.msra.mxu0 %v2318
  %2466 = vmatpush.bf16.msra.mxu0 %v2317
  %2467 = vmatpush.bf16.msra.mxu0 %v2316
  %2468 = vmatpush.bf16.msra.mxu0 %v2315
  %2469 = vmatpush.bf16.msra.mxu0 %v2314
  %2470 = vmatmul.bf16.gmra.mxu0 %v946
  %v2471 = vpop.f32.mrf.mxu0
  %v2472 = vadd.f32 %v2454, %v2471
  %v2473 = vpop.f32.mrf.mxu0
  %v2474 = vadd.f32 %v2456, %v2473
  %2475 = vmatmul.bf16.gmra.mxu0 %v954
  %v2476 = vpop.f32.mrf.mxu0
  %v2477 = vadd.f32 %v2459, %v2476
  %v2478 = vpop.f32.mrf.mxu0
  %2479 = vdwg.mxu0
  %2480 = vmatpush.bf16.msra.mxu0 %v2329
  %2481 = vmatpush.bf16.msra.mxu0 %v2328
  %2482 = vmatpush.bf16.msra.mxu0 %v2327
  %2483 = vmatpush.bf16.msra.mxu0 %v2326
  %2484 = vmatpush.bf16.msra.mxu0 %v2325
  %2485 = vmatpush.bf16.msra.mxu0 %v2324
  %2486 = vmatpush.bf16.msra.mxu0 %v2323
  %2487 = vmatpush.bf16.msra.mxu0 %v2322
  %2488 = vmatmul.bf16.gmra.mxu0 %v947
  %v2489 = vpop.f32.mrf.mxu0
  %v2490 = vadd.f32 %v2472, %v2489
  %v2491 = vpop.f32.mrf.mxu0
  %v2492 = vadd.f32 %v2474, %v2491
  %2493 = vmatmul.bf16.gmra.mxu0 %v955
  %v2494 = vpop.f32.mrf.mxu0
  %v2495 = vadd.f32 %v2477, %v2494
  %v2496 = vpop.f32.mrf.mxu0
  %2497 = vdwg.mxu0
  %2498 = vmatpush.bf16.msra.mxu0 %v2337
  %2499 = vmatpush.bf16.msra.mxu0 %v2336
  %2500 = vmatpush.bf16.msra.mxu0 %v2335
  %2501 = vmatpush.bf16.msra.mxu0 %v2334
  %2502 = vmatpush.bf16.msra.mxu0 %v2333
  %2503 = vmatpush.bf16.msra.mxu0 %v2332
  %2504 = vmatpush.bf16.msra.mxu0 %v2331
  %2505 = vmatpush.bf16.msra.mxu0 %v2330
  %2506 = vmatmul.bf16.gmra.mxu0 %v948
  %v2507 = vpop.f32.mrf.mxu0
  %v2508 = vadd.f32 %v2490, %v2507
  %v2509 = vpop.f32.mrf.mxu0
  %v2510 = vadd.f32 %v2492, %v2509
  %2511 = vmatmul.bf16.gmra.mxu0 %v956
  %v2512 = vpop.f32.mrf.mxu0
  %v2513 = vadd.f32 %v2495, %v2512
  %v2514 = vpop.f32.mrf.mxu0
  %2515 = vdwg.mxu0
  %2516 = vmatpush.bf16.msra.mxu0 %v2345
  %2517 = vmatpush.bf16.msra.mxu0 %v2344
  %2518 = vmatpush.bf16.msra.mxu0 %v2343
  %2519 = vmatpush.bf16.msra.mxu0 %v2342
  %2520 = vmatpush.bf16.msra.mxu0 %v2341
  %2521 = vmatpush.bf16.msra.mxu0 %v2340
  %2522 = vmatpush.bf16.msra.mxu0 %v2339
  %2523 = vmatpush.bf16.msra.mxu0 %v2338
  %2524 = vmatmul.bf16.gmra.mxu0 %v949
  %v2525 = vpop.f32.mrf.mxu0
  %v2526 = vadd.f32 %v2508, %v2525
  %v2527 = vpop.f32.mrf.mxu0
  %v2528 = vadd.f32 %v2510, %v2527
  %2529 = vmatmul.bf16.gmra.mxu0 %v957
  %v2530 = vpop.f32.mrf.mxu0
  %v2531 = vadd.f32 %v2513, %v2530
  %v2532 = vpop.f32.mrf.mxu0
  %2533 = vdwg.mxu0
  %2534 = vmatpush.bf16.msra.mxu0 %v2353
  %2535 = vmatpush.bf16.msra.mxu0 %v2352
  %2536 = vmatpush.bf16.msra.mxu0 %v2351
  %2537 = vmatpush.bf16.msra.mxu0 %v2350
  %2538 = vmatpush.bf16.msra.mxu0 %v2349
  %2539 = vmatpush.bf16.msra.mxu0 %v2348
  %2540 = vmatpush.bf16.msra.mxu0 %v2347
  %2541 = vmatpush.bf16.msra.mxu0 %v2346
  %2542 = vmatmul.bf16.gmra.mxu0 %v950
  %v2543 = vpop.f32.mrf.mxu0
  %v2544 = vadd.f32 %v2526, %v2543
  %v2545 = vpop.f32.mrf.mxu0
  %v2546 = vadd.f32 %v2528, %v2545
  %2547 = vmatmul.bf16.gmra.mxu0 %v958
  %v2548 = vpop.f32.mrf.mxu0
  %v2549 = vadd.f32 %v2531, %v2548
  %v2550 = vpop.f32.mrf.mxu0
  %2551 = vdwg.mxu0
  %2552 = vmatpush.bf16.msra.mxu0 %v2361
  %2553 = vmatpush.bf16.msra.mxu0 %v2360
  %2554 = vmatpush.bf16.msra.mxu0 %v2359
  %2555 = vmatpush.bf16.msra.mxu0 %v2358
  %2556 = vmatpush.bf16.msra.mxu0 %v2357
  %2557 = vmatpush.bf16.msra.mxu0 %v2356
  %2558 = vmatpush.bf16.msra.mxu0 %v2355
  %2559 = vmatpush.bf16.msra.mxu0 %v2354
  %2560 = vmatmul.bf16.gmra.mxu0 %v951
  %v2561 = vpop.f32.mrf.mxu0
  %v2562 = vadd.f32 %v2544, %v2561
  %v2563 = vpop.f32.mrf.mxu0
  %v2564 = vadd.f32 %v2546, %v2563
  %2565 = vmatmul.bf16.gmra.mxu0 %v959
  %v2566 = vpop.f32.mrf.mxu0
  %v2567 = vadd.f32 %v2549, %v2566
  %v2568 = vpop.f32.mrf.mxu0
  %2569 = vdwg.mxu0
  %v2570 = vld [vmem:[%s10] sm:$0x1]
  %v2572 = vperm.slane %v2570, 0
  %v2574 = vadd.f32 %v2562, %v2572
  %v2575 = vadd.f32 %v2564, %v2572
  %v2576 = vadd.f32 %v2567, %v2572
  %v2577 = vadd.f32 %v651, %v2574
  %v2578 = vadd.f32 %v652, %v2575
  %v2579 = vadd.f32 %v653, %v2576
  %v2580 = vld [vmem:[%s11] sm:$0x1]
  %v2581 = vld [vmem:[%s12] sm:$0x1]
  %v2582 = vsel %vm86, %v2577, 0.0
  %2583 = vadd.xlane.f32.xlu0 %v2582
  %v2584 = vpop.xlane.xlu0 %2583
  %v2585 = vsel %vm86, %v2578, 0.0
  %2586 = vadd.xlane.f32.xlu0 %v2585
  %v2587 = vpop.xlane.xlu0 %2586
  %v2588 = vsel %vm86, %v2579, 0.0
  %2589 = vadd.xlane.f32.xlu0 %v2588
  %v2590 = vpop.xlane.xlu0 %2589
  %v2591 = vmul.f32 %v2584, %v584
  %v2592 = vmul.f32 %v2587, %v584
  %v2593 = vmul.f32 %v2590, %v584
  %v2594 = vsub.f32 %v2577, %v2591
  %v2595 = vsub.f32 %v2578, %v2592
  %v2596 = vsub.f32 %v2579, %v2593
  %v2597 = vmul.f32 %v2594, %v2594
  %v2598 = vmul.f32 %v2595, %v2595
  %v2599 = vmul.f32 %v2596, %v2596
  %v2600 = vsel %vm86, %v2597, 0.0
  %2601 = vadd.xlane.f32.xlu0 %v2600
  %v2602 = vpop.xlane.xlu0 %2601
  %v2603 = vsel %vm86, %v2598, 0.0
  %2604 = vadd.xlane.f32.xlu0 %v2603
  %v2605 = vpop.xlane.xlu0 %2604
  %v2606 = vsel %vm86, %v2599, 0.0
  %2607 = vadd.xlane.f32.xlu0 %v2606
  %v2608 = vpop.xlane.xlu0 %2607
  %v2609 = vmul.f32 %v2602, %v584
  %v2610 = vmul.f32 %v2605, %v584
  %v2611 = vmul.f32 %v2608, %v584
  %v2612 = vadd.f32 %v2609, 1e-05
  %v2613 = vadd.f32 %v2610, 1e-05
  %v2614 = vadd.f32 %v2611, 1e-05
  %v2615 = vrsqrt.pop %v2612
  %v2616 = vmul.f32 %v2615, %v2612
  %v2617 = vmul.f32 %v2616, %v2615
  %v2618 = vmul.f32 0.5, %v2617
  %v2619 = vsub.f32 1.5, %v2618
  %v2620 = vmul.f32 %v2615, %v2619
  %vm2621 = vweird.f32 %v2612
  %vm2622 = vweird.f32 %v2615
  %vm2623 = vmor %vm2621, %vm2622
  %v2624 = vsel %vm2623, %v2615, %v2620
  %v2625 = vrsqrt.pop %v2613
  %v2626 = vmul.f32 %v2625, %v2613
  %v2627 = vmul.f32 %v2626, %v2625
  %v2628 = vmul.f32 0.5, %v2627
  %v2629 = vsub.f32 1.5, %v2628
  %v2630 = vmul.f32 %v2625, %v2629
  %vm2631 = vweird.f32 %v2613
  %vm2632 = vweird.f32 %v2625
  %vm2633 = vmor %vm2631, %vm2632
  %v2634 = vsel %vm2633, %v2625, %v2630
  %v2635 = vrsqrt.pop %v2614
  %v2636 = vmul.f32 %v2635, %v2614
  %v2637 = vmul.f32 %v2636, %v2635
  %v2638 = vmul.f32 0.5, %v2637
  %v2639 = vsub.f32 1.5, %v2638
  %v2640 = vmul.f32 %v2635, %v2639
  %vm2641 = vweird.f32 %v2614
  %vm2642 = vweird.f32 %v2635
  %vm2643 = vmor %vm2641, %vm2642
  %v2644 = vsel %vm2643, %v2635, %v2640
  %v2645 = vmul.f32 %v2594, %v2624
  %v2646 = vmul.f32 %v2595, %v2634
  %v2647 = vmul.f32 %v2596, %v2644
  %v2649 = vperm.slane %v2580, 0
  %v2651 = vmul.f32 %v2645, %v2649
  %v2652 = vmul.f32 %v2646, %v2649
  %v2653 = vmul.f32 %v2647, %v2649
  %v2655 = vperm.slane %v2581, 0
  %v2657 = vadd.f32 %v2651, %v2655
  %v2658 = vadd.f32 %v2652, %v2655
  %v2659 = vadd.f32 %v2653, %v2655
  %v2660 = vpack.c.bf16 %v2658, %v2657
  %v2661 = vpack.c.bf16 %v2659, %v2659
  %s2662 = scalar_lea.vmem %s2, 32
  %v2663 = vld [vmem:[%s2662] sm:$0xff]
  %v2664 = vld [vmem:[%s2662 + $0x8] sm:$0xff]
  %v2665 = vld [vmem:[%s2662 + $0x10] sm:$0xff]
  %v2666 = vld [vmem:[%s2662 + $0x18] sm:$0xff]
  %s2667 = scalar_lea.vmem %s3, 2
  %v2668 = vld [vmem:[%s2667] sm:$0x3]
  %v2670 = vperm.slane %v2668, 0
  %v2671 = vperm.slane %v2668, 1
  %v2678 = vunpack.c.l.b16 %v2663
  %v2679 = vunpack.c.h.b16 %v2663
  %v2680 = vunpack.c.l.b16 %v2664
  %v2681 = vunpack.c.h.b16 %v2664
  %v2682 = vunpack.c.l.b16 %v2665
  %v2683 = vunpack.c.h.b16 %v2665
  %v2684 = vunpack.c.l.b16 %v2666
  %v2685 = vunpack.c.h.b16 %v2666
  %v2686 = vpack.c.b16 %v2680, %v2678
  %v2687 = vpack.c.b16 %v2681, %v2679
  %v2688 = vpack.c.b16 %v2684, %v2682
  %v2689 = vpack.c.b16 %v2685, %v2683
  %v2695 = vsel %vm86, %v2660, 0
  %v2698 = vsel %vm86, %v2661, 0
  %2700 = vmatpush.bf16.msra.mxu0 0
  %2701 = vmatpush.bf16.msra.mxu0 0
  %2702 = vmatpush.bf16.msra.mxu0 0
  %2703 = vmatpush.bf16.msra.mxu0 0
  %2704 = vmatpush.bf16.msra.mxu0 0
  %2705 = vmatpush.bf16.msra.mxu0 0
  %2706 = vmatpush.bf16.msra.mxu0 %v2688
  %2707 = vmatpush.bf16.msra.mxu0 %v2686
  %2708 = vmatmul.bf16.gmra.mxu0 %v2695
  %v2709 = vpop.f32.mrf.mxu0
  %v2710 = vadd.f32 %v2670, %v2709
  %v2711 = vpop.f32.mrf.mxu0
  %v2712 = vadd.f32 %v2670, %v2711
  %2713 = vmatmul.bf16.gmra.mxu0 %v2698
  %v2714 = vpop.f32.mrf.mxu0
  %v2715 = vadd.f32 %v2670, %v2714
  %v2716 = vpop.f32.mrf.mxu0
  %2717 = vdwg.mxu0
  %2718 = vmatpush.bf16.msra.mxu0 0
  %2719 = vmatpush.bf16.msra.mxu0 0
  %2720 = vmatpush.bf16.msra.mxu0 0
  %2721 = vmatpush.bf16.msra.mxu0 0
  %2722 = vmatpush.bf16.msra.mxu0 0
  %2723 = vmatpush.bf16.msra.mxu0 0
  %2724 = vmatpush.bf16.msra.mxu0 %v2689
  %2725 = vmatpush.bf16.msra.mxu0 %v2687
  %2726 = vmatmul.bf16.gmra.mxu0 %v2695
  %v2727 = vpop.f32.mrf.mxu0
  %v2728 = vadd.f32 %v2671, %v2727
  %v2729 = vpop.f32.mrf.mxu0
  %v2730 = vadd.f32 %v2671, %v2729
  %2731 = vmatmul.bf16.gmra.mxu0 %v2698
  %v2732 = vpop.f32.mrf.mxu0
  %v2733 = vadd.f32 %v2671, %v2732
  %v2734 = vpop.f32.mrf.mxu0
  %2735 = vdwg.mxu0
  %v2736 = vpack.c.bf16 %v2712, %v2710
  %v2737 = vpack.c.bf16 %v2715, %v2715
  %2740 = vrot.lane.b32.xlu0 %v2736, 96
  %v2741 = vpop.permute.xlu0 %2740
  %2742 = vrot.lane.b32.xlu0 %v2737, 96
  %v2743 = vpop.permute.xlu0 %2742
  %v2745 = vsel %vm137, %v2736, 0
  %v2748 = vsel %vm137, %v2737, 0
  %v2751 = vsel %vm137, %v2741, 0
  %v2754 = vsel %vm137, %v2743, 0
  %2756 = vmatpush.bf16.xpose.msra.mxu0 0
  %2757 = vmatpush.bf16.xpose.msra.mxu0 0
  %2758 = vmatpush.bf16.xpose.msra.mxu0 0
  %2759 = vmatpush.bf16.xpose.msra.mxu0 0
  %2760 = vmatpush.bf16.xpose.msra.mxu0 0
  %2761 = vmatpush.bf16.xpose.msra.mxu0 0
  %2762 = vmatpush.bf16.xpose.msra.mxu0 %v2754
  %2763 = vmatpush.bf16.xpose.msra.mxu0 %v2751
  %2764 = vmatmul.bf16.gmra.mxu0 %v2745
  %v2765 = vpop.f32.mrf.mxu0
  %v2766 = vadd.f32 %v51, %v2765
  %v2767 = vpop.f32.mrf.mxu0
  %v2768 = vadd.f32 %v52, %v2767
  %2769 = vmatmul.bf16.gmra.mxu0 %v2748
  %v2770 = vpop.f32.mrf.mxu0
  %v2771 = vadd.f32 %v53, %v2770
  %v2772 = vpop.f32.mrf.mxu0
  %2773 = vdwg.mxu0
  %v2774 = vsel %vm168, %v2766, -inf
  %2775 = vmax.xlane.f32.xlu0 %v2774
  %v2776 = vpop.xlane.xlu0 %2775
  %v2777 = vsel %vm168, %v2768, -inf
  %2778 = vmax.xlane.f32.xlu0 %v2777
  %v2779 = vpop.xlane.xlu0 %2778
  %v2780 = vsel %vm168, %v2771, -inf
  %2781 = vmax.xlane.f32.xlu0 %v2780
  %v2782 = vpop.xlane.xlu0 %2781
  %v2783 = vsub.f32 %v2766, %v2776
  %v2784 = vsub.f32 %v2768, %v2779
  %v2785 = vsub.f32 %v2771, %v2782
  %v2786 = vmul.f32 %v2783, 1.442695
  %v2787 = vpow.pop %v2786
  %v2788 = vmul.f32 %v2784, 1.442695
  %v2789 = vpow.pop %v2788
  %v2790 = vmul.f32 %v2785, 1.442695
  %v2791 = vpow.pop %v2790
  %v2792 = vsel %vm168, %v2787, 0.0
  %2793 = vadd.xlane.f32.xlu0 %v2792
  %v2794 = vpop.xlane.xlu0 %2793
  %v2795 = vsel %vm168, %v2789, 0.0
  %2796 = vadd.xlane.f32.xlu0 %v2795
  %v2797 = vpop.xlane.xlu0 %2796
  %v2798 = vsel %vm168, %v2791, 0.0
  %2799 = vadd.xlane.f32.xlu0 %v2798
  %v2800 = vpop.xlane.xlu0 %2799
  %v2801 = vrcp.pop %v2794
  %v2802 = vrcp.pop %v2797
  %v2803 = vrcp.pop %v2800
  %v2804 = vmul.f32 %v2787, %v2801
  %v2805 = vmul.f32 %v2789, %v2802
  %v2806 = vmul.f32 %v2791, %v2803
  %v2807 = vpack.c.bf16 %v2805, %v2804
  %v2808 = vpack.c.bf16 %v2806, %v2806
  %2809 = vrot.lane.b32.xlu0 %v2736, 120
  %v2810 = vpop.permute.xlu0 %2809
  %2811 = vrot.lane.b32.xlu0 %v2737, 120
  %v2812 = vpop.permute.xlu0 %2811
  %2813 = vrot.lane.b32.xlu0 %v2736, 88
  %v2814 = vpop.permute.xlu0 %2813
  %2815 = vrot.lane.b32.xlu0 %v2737, 88
  %v2816 = vpop.permute.xlu0 %2815
  %v2818 = vsel %vm137, %v2810, 0
  %v2821 = vsel %vm137, %v2812, 0
  %v2824 = vsel %vm137, %v2814, 0
  %v2827 = vsel %vm137, %v2816, 0
  %2829 = vmatpush.bf16.xpose.msra.mxu0 0
  %2830 = vmatpush.bf16.xpose.msra.mxu0 0
  %2831 = vmatpush.bf16.xpose.msra.mxu0 0
  %2832 = vmatpush.bf16.xpose.msra.mxu0 0
  %2833 = vmatpush.bf16.xpose.msra.mxu0 0
  %2834 = vmatpush.bf16.xpose.msra.mxu0 0
  %2835 = vmatpush.bf16.xpose.msra.mxu0 %v2827
  %2836 = vmatpush.bf16.xpose.msra.mxu0 %v2824
  %2837 = vmatmul.bf16.gmra.mxu0 %v2818
  %v2838 = vpop.f32.mrf.mxu0
  %v2839 = vadd.f32 %v51, %v2838
  %v2840 = vpop.f32.mrf.mxu0
  %v2841 = vadd.f32 %v52, %v2840
  %2842 = vmatmul.bf16.gmra.mxu0 %v2821
  %v2843 = vpop.f32.mrf.mxu0
  %v2844 = vadd.f32 %v53, %v2843
  %v2845 = vpop.f32.mrf.mxu0
  %2846 = vdwg.mxu0
  %v2847 = vsel %vm168, %v2839, -inf
  %2848 = vmax.xlane.f32.xlu0 %v2847
  %v2849 = vpop.xlane.xlu0 %2848
  %v2850 = vsel %vm168, %v2841, -inf
  %2851 = vmax.xlane.f32.xlu0 %v2850
  %v2852 = vpop.xlane.xlu0 %2851
  %v2853 = vsel %vm168, %v2844, -inf
  %2854 = vmax.xlane.f32.xlu0 %v2853
  %v2855 = vpop.xlane.xlu0 %2854
  %v2856 = vsub.f32 %v2839, %v2849
  %v2857 = vsub.f32 %v2841, %v2852
  %v2858 = vsub.f32 %v2844, %v2855
  %v2859 = vmul.f32 %v2856, 1.442695
  %v2860 = vpow.pop %v2859
  %v2861 = vmul.f32 %v2857, 1.442695
  %v2862 = vpow.pop %v2861
  %v2863 = vmul.f32 %v2858, 1.442695
  %v2864 = vpow.pop %v2863
  %v2865 = vsel %vm168, %v2860, 0.0
  %2866 = vadd.xlane.f32.xlu0 %v2865
  %v2867 = vpop.xlane.xlu0 %2866
  %v2868 = vsel %vm168, %v2862, 0.0
  %2869 = vadd.xlane.f32.xlu0 %v2868
  %v2870 = vpop.xlane.xlu0 %2869
  %v2871 = vsel %vm168, %v2864, 0.0
  %2872 = vadd.xlane.f32.xlu0 %v2871
  %v2873 = vpop.xlane.xlu0 %2872
  %v2874 = vrcp.pop %v2867
  %v2875 = vrcp.pop %v2870
  %v2876 = vrcp.pop %v2873
  %v2877 = vmul.f32 %v2860, %v2874
  %v2878 = vmul.f32 %v2862, %v2875
  %v2879 = vmul.f32 %v2864, %v2876
  %v2880 = vpack.c.bf16 %v2878, %v2877
  %v2881 = vpack.c.bf16 %v2879, %v2879
  %2882 = vrot.lane.b32.xlu0 %v2736, 32
  %v2883 = vpop.permute.xlu0 %2882
  %2884 = vrot.lane.b32.xlu0 %v2737, 32
  %v2885 = vpop.permute.xlu0 %2884
  %v2888 = vsel %vm168, %v2880, 0
  %v2891 = vsel %vm168, %v2881, 0
  %v2894 = vsel %vm288, %v2885, 0
  %2896 = vmatpush.bf16.msra.mxu0 0
  %2897 = vmatpush.bf16.msra.mxu0 0
  %2898 = vmatpush.bf16.msra.mxu0 0
  %2899 = vmatpush.bf16.msra.mxu0 0
  %2900 = vmatpush.bf16.msra.mxu0 0
  %2901 = vmatpush.bf16.msra.mxu0 0
  %2902 = vmatpush.bf16.msra.mxu0 %v2894
  %2903 = vmatpush.bf16.msra.mxu0 %v2883
  %2904 = vmatmul.bf16.gmra.mxu0 %v2888
  %v2905 = vpop.f32.mrf.mxu0
  %v2906 = vadd.f32 0.0, %v2905
  %v2907 = vpop.f32.mrf.mxu0
  %v2908 = vadd.f32 0.0, %v2907
  %2909 = vmatmul.bf16.gmra.mxu0 %v2891
  %v2910 = vpop.f32.mrf.mxu0
  %v2911 = vadd.f32 0.0, %v2910
  %v2912 = vpop.f32.mrf.mxu0
  %2913 = vdwg.mxu0
  %2914 = vrot.lane.b32.xlu0 %v2736, 64
  %v2915 = vpop.permute.xlu0 %2914
  %2916 = vrot.lane.b32.xlu0 %v2737, 64
  %v2917 = vpop.permute.xlu0 %2916
  %v2920 = vsel %vm168, %v2807, 0
  %v2923 = vsel %vm168, %v2808, 0
  %v2926 = vsel %vm288, %v2917, 0
  %2928 = vmatpush.bf16.msra.mxu0 0
  %2929 = vmatpush.bf16.msra.mxu0 0
  %2930 = vmatpush.bf16.msra.mxu0 0
  %2931 = vmatpush.bf16.msra.mxu0 0
  %2932 = vmatpush.bf16.msra.mxu0 0
  %2933 = vmatpush.bf16.msra.mxu0 0
  %2934 = vmatpush.bf16.msra.mxu0 %v2926
  %2935 = vmatpush.bf16.msra.mxu0 %v2915
  %2936 = vmatmul.bf16.gmra.mxu0 %v2920
  %v2937 = vpop.f32.mrf.mxu0
  %v2938 = vadd.f32 %v2906, %v2937
  %v2939 = vpop.f32.mrf.mxu0
  %v2940 = vadd.f32 %v2908, %v2939
  %2941 = vmatmul.bf16.gmra.mxu0 %v2923
  %v2942 = vpop.f32.mrf.mxu0
  %v2943 = vadd.f32 %v2911, %v2942
  %v2944 = vpop.f32.mrf.mxu0
  %2945 = vdwg.mxu0
  %v2946 = vpack.c.bf16 %v2730, %v2728
  %v2947 = vpack.c.bf16 %v2733, %v2733
  %2948 = vrot.lane.b32.xlu0 %v2736, 112
  %v2949 = vpop.permute.xlu0 %2948
  %2950 = vrot.lane.b32.xlu0 %v2737, 112
  %v2951 = vpop.permute.xlu0 %2950
  %2952 = vrot.lane.b32.xlu0 %v2736, 80
  %v2953 = vpop.permute.xlu0 %2952
  %2954 = vrot.lane.b32.xlu0 %v2737, 80
  %v2955 = vpop.permute.xlu0 %2954
  %v2957 = vsel %vm137, %v2949, 0
  %v2960 = vsel %vm137, %v2951, 0
  %v2963 = vsel %vm137, %v2953, 0
  %v2966 = vsel %vm137, %v2955, 0
  %2968 = vmatpush.bf16.xpose.msra.mxu0 0
  %2969 = vmatpush.bf16.xpose.msra.mxu0 0
  %2970 = vmatpush.bf16.xpose.msra.mxu0 0
  %2971 = vmatpush.bf16.xpose.msra.mxu0 0
  %2972 = vmatpush.bf16.xpose.msra.mxu0 0
  %2973 = vmatpush.bf16.xpose.msra.mxu0 0
  %2974 = vmatpush.bf16.xpose.msra.mxu0 %v2966
  %2975 = vmatpush.bf16.xpose.msra.mxu0 %v2963
  %2976 = vmatmul.bf16.gmra.mxu0 %v2957
  %v2977 = vpop.f32.mrf.mxu0
  %v2978 = vadd.f32 %v51, %v2977
  %v2979 = vpop.f32.mrf.mxu0
  %v2980 = vadd.f32 %v52, %v2979
  %2981 = vmatmul.bf16.gmra.mxu0 %v2960
  %v2982 = vpop.f32.mrf.mxu0
  %v2983 = vadd.f32 %v53, %v2982
  %v2984 = vpop.f32.mrf.mxu0
  %2985 = vdwg.mxu0
  %v2986 = vsel %vm168, %v2978, -inf
  %2987 = vmax.xlane.f32.xlu0 %v2986
  %v2988 = vpop.xlane.xlu0 %2987
  %v2989 = vsel %vm168, %v2980, -inf
  %2990 = vmax.xlane.f32.xlu0 %v2989
  %v2991 = vpop.xlane.xlu0 %2990
  %v2992 = vsel %vm168, %v2983, -inf
  %2993 = vmax.xlane.f32.xlu0 %v2992
  %v2994 = vpop.xlane.xlu0 %2993
  %v2995 = vsub.f32 %v2978, %v2988
  %v2996 = vsub.f32 %v2980, %v2991
  %v2997 = vsub.f32 %v2983, %v2994
  %v2998 = vmul.f32 %v2995, 1.442695
  %v2999 = vpow.pop %v2998
  %v3000 = vmul.f32 %v2996, 1.442695
  %v3001 = vpow.pop %v3000
  %v3002 = vmul.f32 %v2997, 1.442695
  %v3003 = vpow.pop %v3002
  %v3004 = vsel %vm168, %v2999, 0.0
  %3005 = vadd.xlane.f32.xlu0 %v3004
  %v3006 = vpop.xlane.xlu0 %3005
  %v3007 = vsel %vm168, %v3001, 0.0
  %3008 = vadd.xlane.f32.xlu0 %v3007
  %v3009 = vpop.xlane.xlu0 %3008
  %v3010 = vsel %vm168, %v3003, 0.0
  %3011 = vadd.xlane.f32.xlu0 %v3010
  %v3012 = vpop.xlane.xlu0 %3011
  %v3013 = vrcp.pop %v3006
  %v3014 = vrcp.pop %v3009
  %v3015 = vrcp.pop %v3012
  %v3016 = vmul.f32 %v2999, %v3013
  %v3017 = vmul.f32 %v3001, %v3014
  %v3018 = vmul.f32 %v3003, %v3015
  %v3019 = vpack.c.bf16 %v3017, %v3016
  %v3020 = vpack.c.bf16 %v3018, %v3018
  %v3022 = vsel %vm168, %v3019, 0
  %v3025 = vsel %vm168, %v3020, 0
  %v3028 = vsel %vm288, %v2947, 0
  %3030 = vmatpush.bf16.msra.mxu0 0
  %3031 = vmatpush.bf16.msra.mxu0 0
  %3032 = vmatpush.bf16.msra.mxu0 0
  %3033 = vmatpush.bf16.msra.mxu0 0
  %3034 = vmatpush.bf16.msra.mxu0 0
  %3035 = vmatpush.bf16.msra.mxu0 0
  %3036 = vmatpush.bf16.msra.mxu0 %v3028
  %3037 = vmatpush.bf16.msra.mxu0 %v2946
  %3038 = vmatmul.bf16.gmra.mxu0 %v3022
  %v3039 = vpop.f32.mrf.mxu0
  %v3040 = vadd.f32 0.0, %v3039
  %v3041 = vpop.f32.mrf.mxu0
  %v3042 = vadd.f32 0.0, %v3041
  %3043 = vmatmul.bf16.gmra.mxu0 %v3025
  %v3044 = vpop.f32.mrf.mxu0
  %v3045 = vadd.f32 0.0, %v3044
  %v3046 = vpop.f32.mrf.mxu0
  %3047 = vdwg.mxu0
  %v3048 = vadd.f32 %v2938, %v3040
  %v3049 = vadd.f32 %v2940, %v3042
  %v3050 = vadd.f32 %v2943, %v3045
  %3051 = vrot.lane.b32.xlu0 %v2736, 104
  %v3052 = vpop.permute.xlu0 %3051
  %3053 = vrot.lane.b32.xlu0 %v2737, 104
  %v3054 = vpop.permute.xlu0 %3053
  %3055 = vrot.lane.b32.xlu0 %v2736, 72
  %v3056 = vpop.permute.xlu0 %3055
  %3057 = vrot.lane.b32.xlu0 %v2737, 72
  %v3058 = vpop.permute.xlu0 %3057
  %v3060 = vsel %vm137, %v3052, 0
  %v3063 = vsel %vm137, %v3054, 0
  %v3066 = vsel %vm137, %v3056, 0
  %v3069 = vsel %vm137, %v3058, 0
  %3071 = vmatpush.bf16.xpose.msra.mxu0 0
  %3072 = vmatpush.bf16.xpose.msra.mxu0 0
  %3073 = vmatpush.bf16.xpose.msra.mxu0 0
  %3074 = vmatpush.bf16.xpose.msra.mxu0 0
  %3075 = vmatpush.bf16.xpose.msra.mxu0 0
  %3076 = vmatpush.bf16.xpose.msra.mxu0 0
  %3077 = vmatpush.bf16.xpose.msra.mxu0 %v3069
  %3078 = vmatpush.bf16.xpose.msra.mxu0 %v3066
  %3079 = vmatmul.bf16.gmra.mxu0 %v3060
  %v3080 = vpop.f32.mrf.mxu0
  %v3081 = vadd.f32 %v51, %v3080
  %v3082 = vpop.f32.mrf.mxu0
  %v3083 = vadd.f32 %v52, %v3082
  %3084 = vmatmul.bf16.gmra.mxu0 %v3063
  %v3085 = vpop.f32.mrf.mxu0
  %v3086 = vadd.f32 %v53, %v3085
  %v3087 = vpop.f32.mrf.mxu0
  %3088 = vdwg.mxu0
  %v3089 = vsel %vm168, %v3081, -inf
  %3090 = vmax.xlane.f32.xlu0 %v3089
  %v3091 = vpop.xlane.xlu0 %3090
  %v3092 = vsel %vm168, %v3083, -inf
  %3093 = vmax.xlane.f32.xlu0 %v3092
  %v3094 = vpop.xlane.xlu0 %3093
  %v3095 = vsel %vm168, %v3086, -inf
  %3096 = vmax.xlane.f32.xlu0 %v3095
  %v3097 = vpop.xlane.xlu0 %3096
  %v3098 = vsub.f32 %v3081, %v3091
  %v3099 = vsub.f32 %v3083, %v3094
  %v3100 = vsub.f32 %v3086, %v3097
  %v3101 = vmul.f32 %v3098, 1.442695
  %v3102 = vpow.pop %v3101
  %v3103 = vmul.f32 %v3099, 1.442695
  %v3104 = vpow.pop %v3103
  %v3105 = vmul.f32 %v3100, 1.442695
  %v3106 = vpow.pop %v3105
  %v3107 = vsel %vm168, %v3102, 0.0
  %3108 = vadd.xlane.f32.xlu0 %v3107
  %v3109 = vpop.xlane.xlu0 %3108
  %v3110 = vsel %vm168, %v3104, 0.0
  %3111 = vadd.xlane.f32.xlu0 %v3110
  %v3112 = vpop.xlane.xlu0 %3111
  %v3113 = vsel %vm168, %v3106, 0.0
  %3114 = vadd.xlane.f32.xlu0 %v3113
  %v3115 = vpop.xlane.xlu0 %3114
  %v3116 = vrcp.pop %v3109
  %v3117 = vrcp.pop %v3112
  %v3118 = vrcp.pop %v3115
  %v3119 = vmul.f32 %v3102, %v3116
  %v3120 = vmul.f32 %v3104, %v3117
  %v3121 = vmul.f32 %v3106, %v3118
  %v3122 = vpack.c.bf16 %v3120, %v3119
  %v3123 = vpack.c.bf16 %v3121, %v3121
  %3126 = vrot.lane.b32.xlu0 %v2946, 96
  %v3127 = vpop.permute.xlu0 %3126
  %3128 = vrot.lane.b32.xlu0 %v2947, 96
  %v3129 = vpop.permute.xlu0 %3128
  %v3132 = vsel %vm168, %v3122, 0
  %v3135 = vsel %vm168, %v3123, 0
  %v3138 = vsel %vm288, %v3129, 0
  %3140 = vmatpush.bf16.msra.mxu0 0
  %3141 = vmatpush.bf16.msra.mxu0 0
  %3142 = vmatpush.bf16.msra.mxu0 0
  %3143 = vmatpush.bf16.msra.mxu0 0
  %3144 = vmatpush.bf16.msra.mxu0 0
  %3145 = vmatpush.bf16.msra.mxu0 0
  %3146 = vmatpush.bf16.msra.mxu0 %v3138
  %3147 = vmatpush.bf16.msra.mxu0 %v3127
  %3148 = vmatmul.bf16.gmra.mxu0 %v3132
  %v3149 = vpop.f32.mrf.mxu0
  %v3150 = vadd.f32 0.0, %v3149
  %v3151 = vpop.f32.mrf.mxu0
  %v3152 = vadd.f32 0.0, %v3151
  %3153 = vmatmul.bf16.gmra.mxu0 %v3135
  %v3154 = vpop.f32.mrf.mxu0
  %v3155 = vadd.f32 0.0, %v3154
  %v3156 = vpop.f32.mrf.mxu0
  %3157 = vdwg.mxu0
  %v3158 = vadd.f32 %v3048, %v3150
  %v3159 = vadd.f32 %v3049, %v3152
  %v3160 = vadd.f32 %v3050, %v3155
  %s3161 = scalar_lea.vmem %s4, 1
  %v3162 = vld [vmem:[%s3161] sm:$0x1]
  %v3164 = vperm.slane %v3162, 0
  %v3166 = vadd.f32 %v3158, %v3164
  %v3167 = vadd.f32 %v3159, %v3164
  %v3168 = vadd.f32 %v3160, %v3164
  %v3169 = vadd.f32 %v2657, %v3166
  %v3170 = vadd.f32 %v2658, %v3167
  %v3171 = vadd.f32 %v2659, %v3168
  %s3172 = scalar_lea.vmem %s5, 1
  %v3173 = vld [vmem:[%s3172] sm:$0x1]
  %s3174 = scalar_lea.vmem %s6, 1
  %v3175 = vld [vmem:[%s3174] sm:$0x1]
  %v3176 = vsel %vm86, %v3169, 0.0
  %3177 = vadd.xlane.f32.xlu0 %v3176
  %v3178 = vpop.xlane.xlu0 %3177
  %v3179 = vsel %vm86, %v3170, 0.0
  %3180 = vadd.xlane.f32.xlu0 %v3179
  %v3181 = vpop.xlane.xlu0 %3180
  %v3182 = vsel %vm86, %v3171, 0.0
  %3183 = vadd.xlane.f32.xlu0 %v3182
  %v3184 = vpop.xlane.xlu0 %3183
  %v3185 = vmul.f32 %v3178, %v584
  %v3186 = vmul.f32 %v3181, %v584
  %v3187 = vmul.f32 %v3184, %v584
  %v3188 = vsub.f32 %v3169, %v3185
  %v3189 = vsub.f32 %v3170, %v3186
  %v3190 = vsub.f32 %v3171, %v3187
  %v3191 = vmul.f32 %v3188, %v3188
  %v3192 = vmul.f32 %v3189, %v3189
  %v3193 = vmul.f32 %v3190, %v3190
  %v3194 = vsel %vm86, %v3191, 0.0
  %3195 = vadd.xlane.f32.xlu0 %v3194
  %v3196 = vpop.xlane.xlu0 %3195
  %v3197 = vsel %vm86, %v3192, 0.0
  %3198 = vadd.xlane.f32.xlu0 %v3197
  %v3199 = vpop.xlane.xlu0 %3198
  %v3200 = vsel %vm86, %v3193, 0.0
  %3201 = vadd.xlane.f32.xlu0 %v3200
  %v3202 = vpop.xlane.xlu0 %3201
  %v3203 = vmul.f32 %v3196, %v584
  %v3204 = vmul.f32 %v3199, %v584
  %v3205 = vmul.f32 %v3202, %v584
  %v3206 = vadd.f32 %v3203, 1e-05
  %v3207 = vadd.f32 %v3204, 1e-05
  %v3208 = vadd.f32 %v3205, 1e-05
  %v3209 = vrsqrt.pop %v3206
  %v3210 = vmul.f32 %v3209, %v3206
  %v3211 = vmul.f32 %v3210, %v3209
  %v3212 = vmul.f32 0.5, %v3211
  %v3213 = vsub.f32 1.5, %v3212
  %v3214 = vmul.f32 %v3209, %v3213
  %vm3215 = vweird.f32 %v3206
  %vm3216 = vweird.f32 %v3209
  %vm3217 = vmor %vm3215, %vm3216
  %v3218 = vsel %vm3217, %v3209, %v3214
  %v3219 = vrsqrt.pop %v3207
  %v3220 = vmul.f32 %v3219, %v3207
  %v3221 = vmul.f32 %v3220, %v3219
  %v3222 = vmul.f32 0.5, %v3221
  %v3223 = vsub.f32 1.5, %v3222
  %v3224 = vmul.f32 %v3219, %v3223
  %vm3225 = vweird.f32 %v3207
  %vm3226 = vweird.f32 %v3219
  %vm3227 = vmor %vm3225, %vm3226
  %v3228 = vsel %vm3227, %v3219, %v3224
  %v3229 = vrsqrt.pop %v3208
  %v3230 = vmul.f32 %v3229, %v3208
  %v3231 = vmul.f32 %v3230, %v3229
  %v3232 = vmul.f32 0.5, %v3231
  %v3233 = vsub.f32 1.5, %v3232
  %v3234 = vmul.f32 %v3229, %v3233
  %vm3235 = vweird.f32 %v3208
  %vm3236 = vweird.f32 %v3229
  %vm3237 = vmor %vm3235, %vm3236
  %v3238 = vsel %vm3237, %v3229, %v3234
  %v3239 = vmul.f32 %v3188, %v3218
  %v3240 = vmul.f32 %v3189, %v3228
  %v3241 = vmul.f32 %v3190, %v3238
  %v3243 = vperm.slane %v3173, 0
  %v3245 = vmul.f32 %v3239, %v3243
  %v3246 = vmul.f32 %v3240, %v3243
  %v3247 = vmul.f32 %v3241, %v3243
  %v3249 = vperm.slane %v3175, 0
  %v3251 = vadd.f32 %v3245, %v3249
  %v3252 = vadd.f32 %v3246, %v3249
  %v3253 = vadd.f32 %v3247, %v3249
  %v3254 = vpack.c.bf16 %v3252, %v3251
  %v3255 = vpack.c.bf16 %v3253, %v3253
  %s3256 = scalar_lea.vmem %s7, 256
  %v3257 = vld [vmem:[%s3256] sm:$0xff]
  %v3258 = vld [vmem:[%s3256 + $0x8] sm:$0xff]
  %v3259 = vld [vmem:[%s3256 + $0x10] sm:$0xff]
  %v3260 = vld [vmem:[%s3256 + $0x18] sm:$0xff]
  %v3261 = vld [vmem:[%s3256 + $0x40] sm:$0xff]
  %v3262 = vld [vmem:[%s3256 + $0x48] sm:$0xff]
  %v3263 = vld [vmem:[%s3256 + $0x50] sm:$0xff]
  %v3264 = vld [vmem:[%s3256 + $0x58] sm:$0xff]
  %v3265 = vld [vmem:[%s3256 + $0x80] sm:$0xff]
  %v3266 = vld [vmem:[%s3256 + $0x88] sm:$0xff]
  %v3267 = vld [vmem:[%s3256 + $0x90] sm:$0xff]
  %v3268 = vld [vmem:[%s3256 + $0x98] sm:$0xff]
  %v3269 = vld [vmem:[%s3256 + $0xc0] sm:$0xff]
  %v3270 = vld [vmem:[%s3256 + $0xc8] sm:$0xff]
  %v3271 = vld [vmem:[%s3256 + $0xd0] sm:$0xff]
  %v3272 = vld [vmem:[%s3256 + $0xd8] sm:$0xff]
  %s3273 = scalar_lea.vmem %s8, 16
  %v3274 = vld [vmem:[%s3273] sm:$0xff]
  %v3276 = vperm.slane %v3274, 0
  %v3277 = vperm.slane %v3274, 1
  %v3278 = vperm.slane %v3274, 2
  %v3279 = vperm.slane %v3274, 3
  %v3280 = vperm.slane %v3274, 4
  %v3281 = vperm.slane %v3274, 5
  %v3282 = vperm.slane %v3274, 6
  %v3283 = vperm.slane %v3274, 7
  %v3308 = vunpack.c.l.b16 %v3257
  %v3309 = vunpack.c.h.b16 %v3257
  %v3310 = vunpack.c.l.b16 %v3258
  %v3311 = vunpack.c.h.b16 %v3258
  %v3312 = vunpack.c.l.b16 %v3259
  %v3313 = vunpack.c.h.b16 %v3259
  %v3314 = vunpack.c.l.b16 %v3260
  %v3315 = vunpack.c.h.b16 %v3260
  %v3316 = vunpack.c.l.b16 %v3261
  %v3317 = vunpack.c.h.b16 %v3261
  %v3318 = vunpack.c.l.b16 %v3262
  %v3319 = vunpack.c.h.b16 %v3262
  %v3320 = vunpack.c.l.b16 %v3263
  %v3321 = vunpack.c.h.b16 %v3263
  %v3322 = vunpack.c.l.b16 %v3264
  %v3323 = vunpack.c.h.b16 %v3264
  %v3324 = vunpack.c.l.b16 %v3265
  %v3325 = vunpack.c.h.b16 %v3265
  %v3326 = vunpack.c.l.b16 %v3266
  %v3327 = vunpack.c.h.b16 %v3266
  %v3328 = vunpack.c.l.b16 %v3267
  %v3329 = vunpack.c.h.b16 %v3267
  %v3330 = vunpack.c.l.b16 %v3268
  %v3331 = vunpack.c.h.b16 %v3268
  %v3332 = vunpack.c.l.b16 %v3269
  %v3333 = vunpack.c.h.b16 %v3269
  %v3334 = vunpack.c.l.b16 %v3270
  %v3335 = vunpack.c.h.b16 %v3270
  %v3336 = vunpack.c.l.b16 %v3271
  %v3337 = vunpack.c.h.b16 %v3271
  %v3338 = vunpack.c.l.b16 %v3272
  %v3339 = vunpack.c.h.b16 %v3272
  %v3340 = vpack.c.b16 %v3316, %v3308
  %v3341 = vpack.c.b16 %v3317, %v3309
  %v3342 = vpack.c.b16 %v3318, %v3310
  %v3343 = vpack.c.b16 %v3319, %v3311
  %v3344 = vpack.c.b16 %v3320, %v3312
  %v3345 = vpack.c.b16 %v3321, %v3313
  %v3346 = vpack.c.b16 %v3322, %v3314
  %v3347 = vpack.c.b16 %v3323, %v3315
  %v3348 = vpack.c.b16 %v3332, %v3324
  %v3349 = vpack.c.b16 %v3333, %v3325
  %v3350 = vpack.c.b16 %v3334, %v3326
  %v3351 = vpack.c.b16 %v3335, %v3327
  %v3352 = vpack.c.b16 %v3336, %v3328
  %v3353 = vpack.c.b16 %v3337, %v3329
  %v3354 = vpack.c.b16 %v3338, %v3330
  %v3355 = vpack.c.b16 %v3339, %v3331
  %v3373 = vsel %vm86, %v3254, 0
  %v3376 = vsel %vm86, %v3255, 0
  %3378 = vmatpush.bf16.msra.mxu0 0
  %3379 = vmatpush.bf16.msra.mxu0 0
  %3380 = vmatpush.bf16.msra.mxu0 0
  %3381 = vmatpush.bf16.msra.mxu0 0
  %3382 = vmatpush.bf16.msra.mxu0 0
  %3383 = vmatpush.bf16.msra.mxu0 0
  %3384 = vmatpush.bf16.msra.mxu0 %v3348
  %3385 = vmatpush.bf16.msra.mxu0 %v3340
  %3386 = vmatmul.bf16.gmra.mxu0 %v3373
  %v3387 = vpop.f32.mrf.mxu0
  %v3388 = vadd.f32 %v3276, %v3387
  %v3389 = vpop.f32.mrf.mxu0
  %v3390 = vadd.f32 %v3276, %v3389
  %3391 = vmatmul.bf16.gmra.mxu0 %v3376
  %v3392 = vpop.f32.mrf.mxu0
  %v3393 = vadd.f32 %v3276, %v3392
  %v3394 = vpop.f32.mrf.mxu0
  %3395 = vdwg.mxu0
  %3396 = vmatpush.bf16.msra.mxu0 0
  %3397 = vmatpush.bf16.msra.mxu0 0
  %3398 = vmatpush.bf16.msra.mxu0 0
  %3399 = vmatpush.bf16.msra.mxu0 0
  %3400 = vmatpush.bf16.msra.mxu0 0
  %3401 = vmatpush.bf16.msra.mxu0 0
  %3402 = vmatpush.bf16.msra.mxu0 %v3349
  %3403 = vmatpush.bf16.msra.mxu0 %v3341
  %3404 = vmatmul.bf16.gmra.mxu0 %v3373
  %v3405 = vpop.f32.mrf.mxu0
  %v3406 = vadd.f32 %v3277, %v3405
  %v3407 = vpop.f32.mrf.mxu0
  %v3408 = vadd.f32 %v3277, %v3407
  %3409 = vmatmul.bf16.gmra.mxu0 %v3376
  %v3410 = vpop.f32.mrf.mxu0
  %v3411 = vadd.f32 %v3277, %v3410
  %v3412 = vpop.f32.mrf.mxu0
  %3413 = vdwg.mxu0
  %3414 = vmatpush.bf16.msra.mxu0 0
  %3415 = vmatpush.bf16.msra.mxu0 0
  %3416 = vmatpush.bf16.msra.mxu0 0
  %3417 = vmatpush.bf16.msra.mxu0 0
  %3418 = vmatpush.bf16.msra.mxu0 0
  %3419 = vmatpush.bf16.msra.mxu0 0
  %3420 = vmatpush.bf16.msra.mxu0 %v3350
  %3421 = vmatpush.bf16.msra.mxu0 %v3342
  %3422 = vmatmul.bf16.gmra.mxu0 %v3373
  %v3423 = vpop.f32.mrf.mxu0
  %v3424 = vadd.f32 %v3278, %v3423
  %v3425 = vpop.f32.mrf.mxu0
  %v3426 = vadd.f32 %v3278, %v3425
  %3427 = vmatmul.bf16.gmra.mxu0 %v3376
  %v3428 = vpop.f32.mrf.mxu0
  %v3429 = vadd.f32 %v3278, %v3428
  %v3430 = vpop.f32.mrf.mxu0
  %3431 = vdwg.mxu0
  %3432 = vmatpush.bf16.msra.mxu0 0
  %3433 = vmatpush.bf16.msra.mxu0 0
  %3434 = vmatpush.bf16.msra.mxu0 0
  %3435 = vmatpush.bf16.msra.mxu0 0
  %3436 = vmatpush.bf16.msra.mxu0 0
  %3437 = vmatpush.bf16.msra.mxu0 0
  %3438 = vmatpush.bf16.msra.mxu0 %v3351
  %3439 = vmatpush.bf16.msra.mxu0 %v3343
  %3440 = vmatmul.bf16.gmra.mxu0 %v3373
  %v3441 = vpop.f32.mrf.mxu0
  %v3442 = vadd.f32 %v3279, %v3441
  %v3443 = vpop.f32.mrf.mxu0
  %v3444 = vadd.f32 %v3279, %v3443
  %3445 = vmatmul.bf16.gmra.mxu0 %v3376
  %v3446 = vpop.f32.mrf.mxu0
  %v3447 = vadd.f32 %v3279, %v3446
  %v3448 = vpop.f32.mrf.mxu0
  %3449 = vdwg.mxu0
  %3450 = vmatpush.bf16.msra.mxu0 0
  %3451 = vmatpush.bf16.msra.mxu0 0
  %3452 = vmatpush.bf16.msra.mxu0 0
  %3453 = vmatpush.bf16.msra.mxu0 0
  %3454 = vmatpush.bf16.msra.mxu0 0
  %3455 = vmatpush.bf16.msra.mxu0 0
  %3456 = vmatpush.bf16.msra.mxu0 %v3352
  %3457 = vmatpush.bf16.msra.mxu0 %v3344
  %3458 = vmatmul.bf16.gmra.mxu0 %v3373
  %v3459 = vpop.f32.mrf.mxu0
  %v3460 = vadd.f32 %v3280, %v3459
  %v3461 = vpop.f32.mrf.mxu0
  %v3462 = vadd.f32 %v3280, %v3461
  %3463 = vmatmul.bf16.gmra.mxu0 %v3376
  %v3464 = vpop.f32.mrf.mxu0
  %v3465 = vadd.f32 %v3280, %v3464
  %v3466 = vpop.f32.mrf.mxu0
  %3467 = vdwg.mxu0
  %3468 = vmatpush.bf16.msra.mxu0 0
  %3469 = vmatpush.bf16.msra.mxu0 0
  %3470 = vmatpush.bf16.msra.mxu0 0
  %3471 = vmatpush.bf16.msra.mxu0 0
  %3472 = vmatpush.bf16.msra.mxu0 0
  %3473 = vmatpush.bf16.msra.mxu0 0
  %3474 = vmatpush.bf16.msra.mxu0 %v3353
  %3475 = vmatpush.bf16.msra.mxu0 %v3345
  %3476 = vmatmul.bf16.gmra.mxu0 %v3373
  %v3477 = vpop.f32.mrf.mxu0
  %v3478 = vadd.f32 %v3281, %v3477
  %v3479 = vpop.f32.mrf.mxu0
  %v3480 = vadd.f32 %v3281, %v3479
  %3481 = vmatmul.bf16.gmra.mxu0 %v3376
  %v3482 = vpop.f32.mrf.mxu0
  %v3483 = vadd.f32 %v3281, %v3482
  %v3484 = vpop.f32.mrf.mxu0
  %3485 = vdwg.mxu0
  %3486 = vmatpush.bf16.msra.mxu0 0
  %3487 = vmatpush.bf16.msra.mxu0 0
  %3488 = vmatpush.bf16.msra.mxu0 0
  %3489 = vmatpush.bf16.msra.mxu0 0
  %3490 = vmatpush.bf16.msra.mxu0 0
  %3491 = vmatpush.bf16.msra.mxu0 0
  %3492 = vmatpush.bf16.msra.mxu0 %v3354
  %3493 = vmatpush.bf16.msra.mxu0 %v3346
  %3494 = vmatmul.bf16.gmra.mxu0 %v3373
  %v3495 = vpop.f32.mrf.mxu0
  %v3496 = vadd.f32 %v3282, %v3495
  %v3497 = vpop.f32.mrf.mxu0
  %v3498 = vadd.f32 %v3282, %v3497
  %3499 = vmatmul.bf16.gmra.mxu0 %v3376
  %v3500 = vpop.f32.mrf.mxu0
  %v3501 = vadd.f32 %v3282, %v3500
  %v3502 = vpop.f32.mrf.mxu0
  %3503 = vdwg.mxu0
  %3504 = vmatpush.bf16.msra.mxu0 0
  %3505 = vmatpush.bf16.msra.mxu0 0
  %3506 = vmatpush.bf16.msra.mxu0 0
  %3507 = vmatpush.bf16.msra.mxu0 0
  %3508 = vmatpush.bf16.msra.mxu0 0
  %3509 = vmatpush.bf16.msra.mxu0 0
  %3510 = vmatpush.bf16.msra.mxu0 %v3355
  %3511 = vmatpush.bf16.msra.mxu0 %v3347
  %3512 = vmatmul.bf16.gmra.mxu0 %v3373
  %v3513 = vpop.f32.mrf.mxu0
  %v3514 = vadd.f32 %v3283, %v3513
  %v3515 = vpop.f32.mrf.mxu0
  %v3516 = vadd.f32 %v3283, %v3515
  %3517 = vmatmul.bf16.gmra.mxu0 %v3376
  %v3518 = vpop.f32.mrf.mxu0
  %v3519 = vadd.f32 %v3283, %v3518
  %v3520 = vpop.f32.mrf.mxu0
  %3521 = vdwg.mxu0
  %v3522 = vmax.f32 %v3388, 0.0
  %v3523 = vmax.f32 %v3406, 0.0
  %v3524 = vmax.f32 %v3424, 0.0
  %v3525 = vmax.f32 %v3442, 0.0
  %v3526 = vmax.f32 %v3460, 0.0
  %v3527 = vmax.f32 %v3478, 0.0
  %v3528 = vmax.f32 %v3496, 0.0
  %v3529 = vmax.f32 %v3514, 0.0
  %v3530 = vmax.f32 %v3390, 0.0
  %v3531 = vmax.f32 %v3408, 0.0
  %v3532 = vmax.f32 %v3426, 0.0
  %v3533 = vmax.f32 %v3444, 0.0
  %v3534 = vmax.f32 %v3462, 0.0
  %v3535 = vmax.f32 %v3480, 0.0
  %v3536 = vmax.f32 %v3498, 0.0
  %v3537 = vmax.f32 %v3516, 0.0
  %v3538 = vmax.f32 %v3393, 0.0
  %v3539 = vmax.f32 %v3411, 0.0
  %v3540 = vmax.f32 %v3429, 0.0
  %v3541 = vmax.f32 %v3447, 0.0
  %v3542 = vmax.f32 %v3465, 0.0
  %v3543 = vmax.f32 %v3483, 0.0
  %v3544 = vmax.f32 %v3501, 0.0
  %v3545 = vmax.f32 %v3519, 0.0
  %v3546 = vpack.c.bf16 %v3530, %v3522
  %v3547 = vpack.c.bf16 %v3531, %v3523
  %v3548 = vpack.c.bf16 %v3532, %v3524
  %v3549 = vpack.c.bf16 %v3533, %v3525
  %v3550 = vpack.c.bf16 %v3534, %v3526
  %v3551 = vpack.c.bf16 %v3535, %v3527
  %v3552 = vpack.c.bf16 %v3536, %v3528
  %v3553 = vpack.c.bf16 %v3537, %v3529
  %v3554 = vpack.c.bf16 %v3538, %v3538
  %v3555 = vpack.c.bf16 %v3539, %v3539
  %v3556 = vpack.c.bf16 %v3540, %v3540
  %v3557 = vpack.c.bf16 %v3541, %v3541
  %v3558 = vpack.c.bf16 %v3542, %v3542
  %v3559 = vpack.c.bf16 %v3543, %v3543
  %v3560 = vpack.c.bf16 %v3544, %v3544
  %v3561 = vpack.c.bf16 %v3545, %v3545
  %s3562 = scalar_lea.vmem %s9, 1024
  %v3563 = vld [vmem:[%s3562] sm:$0xf]
  %v3564 = vld [vmem:[%s3562 + $0x4] sm:$0xf]
  %v3565 = vld [vmem:[%s3562 + $0x8] sm:$0xf]
  %v3566 = vld [vmem:[%s3562 + $0xc] sm:$0xf]
  %v3567 = vld [vmem:[%s3562 + $0x10] sm:$0xf]
  %v3568 = vld [vmem:[%s3562 + $0x14] sm:$0xf]
  %v3569 = vld [vmem:[%s3562 + $0x18] sm:$0xf]
  %v3570 = vld [vmem:[%s3562 + $0x1c] sm:$0xf]
  %v3571 = vld [vmem:[%s3562 + $0x20] sm:$0xf]
  %v3572 = vld [vmem:[%s3562 + $0x24] sm:$0xf]
  %v3573 = vld [vmem:[%s3562 + $0x28] sm:$0xf]
  %v3574 = vld [vmem:[%s3562 + $0x2c] sm:$0xf]
  %v3575 = vld [vmem:[%s3562 + $0x30] sm:$0xf]
  %v3576 = vld [vmem:[%s3562 + $0x34] sm:$0xf]
  %v3577 = vld [vmem:[%s3562 + $0x38] sm:$0xf]
  %v3578 = vld [vmem:[%s3562 + $0x3c] sm:$0xf]
  %v3579 = vld [vmem:[%s3562 + $0x40] sm:$0xf]
  %v3580 = vld [vmem:[%s3562 + $0x44] sm:$0xf]
  %v3581 = vld [vmem:[%s3562 + $0x48] sm:$0xf]
  %v3582 = vld [vmem:[%s3562 + $0x4c] sm:$0xf]
  %v3583 = vld [vmem:[%s3562 + $0x50] sm:$0xf]
  %v3584 = vld [vmem:[%s3562 + $0x54] sm:$0xf]
  %v3585 = vld [vmem:[%s3562 + $0x58] sm:$0xf]
  %v3586 = vld [vmem:[%s3562 + $0x5c] sm:$0xf]
  %v3587 = vld [vmem:[%s3562 + $0x60] sm:$0xf]
  %v3588 = vld [vmem:[%s3562 + $0x64] sm:$0xf]
  %v3589 = vld [vmem:[%s3562 + $0x68] sm:$0xf]
  %v3590 = vld [vmem:[%s3562 + $0x6c] sm:$0xf]
  %v3591 = vld [vmem:[%s3562 + $0x70] sm:$0xf]
  %v3592 = vld [vmem:[%s3562 + $0x74] sm:$0xf]
  %v3593 = vld [vmem:[%s3562 + $0x78] sm:$0xf]
  %v3594 = vld [vmem:[%s3562 + $0x7c] sm:$0xf]
  %v3595 = vld [vmem:[%s3562 + $0x80] sm:$0xf]
  %v3596 = vld [vmem:[%s3562 + $0x84] sm:$0xf]
  %v3597 = vld [vmem:[%s3562 + $0x88] sm:$0xf]
  %v3598 = vld [vmem:[%s3562 + $0x8c] sm:$0xf]
  %v3599 = vld [vmem:[%s3562 + $0x90] sm:$0xf]
  %v3600 = vld [vmem:[%s3562 + $0x94] sm:$0xf]
  %v3601 = vld [vmem:[%s3562 + $0x98] sm:$0xf]
  %v3602 = vld [vmem:[%s3562 + $0x9c] sm:$0xf]
  %v3603 = vld [vmem:[%s3562 + $0xa0] sm:$0xf]
  %v3604 = vld [vmem:[%s3562 + $0xa4] sm:$0xf]
  %v3605 = vld [vmem:[%s3562 + $0xa8] sm:$0xf]
  %v3606 = vld [vmem:[%s3562 + $0xac] sm:$0xf]
  %v3607 = vld [vmem:[%s3562 + $0xb0] sm:$0xf]
  %v3608 = vld [vmem:[%s3562 + $0xb4] sm:$0xf]
  %v3609 = vld [vmem:[%s3562 + $0xb8] sm:$0xf]
  %v3610 = vld [vmem:[%s3562 + $0xbc] sm:$0xf]
  %v3611 = vld [vmem:[%s3562 + $0xc0] sm:$0xf]
  %v3612 = vld [vmem:[%s3562 + $0xc4] sm:$0xf]
  %v3613 = vld [vmem:[%s3562 + $0xc8] sm:$0xf]
  %v3614 = vld [vmem:[%s3562 + $0xcc] sm:$0xf]
  %v3615 = vld [vmem:[%s3562 + $0xd0] sm:$0xf]
  %v3616 = vld [vmem:[%s3562 + $0xd4] sm:$0xf]
  %v3617 = vld [vmem:[%s3562 + $0xd8] sm:$0xf]
  %v3618 = vld [vmem:[%s3562 + $0xdc] sm:$0xf]
  %v3619 = vld [vmem:[%s3562 + $0xe0] sm:$0xf]
  %v3620 = vld [vmem:[%s3562 + $0xe4] sm:$0xf]
  %v3621 = vld [vmem:[%s3562 + $0xe8] sm:$0xf]
  %v3622 = vld [vmem:[%s3562 + $0xec] sm:$0xf]
  %v3623 = vld [vmem:[%s3562 + $0xf0] sm:$0xf]
  %v3624 = vld [vmem:[%s3562 + $0xf4] sm:$0xf]
  %v3625 = vld [vmem:[%s3562 + $0xf8] sm:$0xf]
  %v3626 = vld [vmem:[%s3562 + $0xfc] sm:$0xf]
  %v3627 = vld [vmem:[%s3562 + $0x100] sm:$0xf]
  %v3628 = vld [vmem:[%s3562 + $0x104] sm:$0xf]
  %v3629 = vld [vmem:[%s3562 + $0x108] sm:$0xf]
  %v3630 = vld [vmem:[%s3562 + $0x10c] sm:$0xf]
  %v3631 = vld [vmem:[%s3562 + $0x110] sm:$0xf]
  %v3632 = vld [vmem:[%s3562 + $0x114] sm:$0xf]
  %v3633 = vld [vmem:[%s3562 + $0x118] sm:$0xf]
  %v3634 = vld [vmem:[%s3562 + $0x11c] sm:$0xf]
  %v3635 = vld [vmem:[%s3562 + $0x120] sm:$0xf]
  %v3636 = vld [vmem:[%s3562 + $0x124] sm:$0xf]
  %v3637 = vld [vmem:[%s3562 + $0x128] sm:$0xf]
  %v3638 = vld [vmem:[%s3562 + $0x12c] sm:$0xf]
  %v3639 = vld [vmem:[%s3562 + $0x130] sm:$0xf]
  %v3640 = vld [vmem:[%s3562 + $0x134] sm:$0xf]
  %v3641 = vld [vmem:[%s3562 + $0x138] sm:$0xf]
  %v3642 = vld [vmem:[%s3562 + $0x13c] sm:$0xf]
  %v3643 = vld [vmem:[%s3562 + $0x140] sm:$0xf]
  %v3644 = vld [vmem:[%s3562 + $0x144] sm:$0xf]
  %v3645 = vld [vmem:[%s3562 + $0x148] sm:$0xf]
  %v3646 = vld [vmem:[%s3562 + $0x14c] sm:$0xf]
  %v3647 = vld [vmem:[%s3562 + $0x150] sm:$0xf]
  %v3648 = vld [vmem:[%s3562 + $0x154] sm:$0xf]
  %v3649 = vld [vmem:[%s3562 + $0x158] sm:$0xf]
  %v3650 = vld [vmem:[%s3562 + $0x15c] sm:$0xf]
  %v3651 = vld [vmem:[%s3562 + $0x160] sm:$0xf]
  %v3652 = vld [vmem:[%s3562 + $0x164] sm:$0xf]
  %v3653 = vld [vmem:[%s3562 + $0x168] sm:$0xf]
  %v3654 = vld [vmem:[%s3562 + $0x16c] sm:$0xf]
  %v3655 = vld [vmem:[%s3562 + $0x170] sm:$0xf]
  %v3656 = vld [vmem:[%s3562 + $0x174] sm:$0xf]
  %v3657 = vld [vmem:[%s3562 + $0x178] sm:$0xf]
  %v3658 = vld [vmem:[%s3562 + $0x17c] sm:$0xf]
  %v3659 = vld [vmem:[%s3562 + $0x180] sm:$0xf]
  %v3660 = vld [vmem:[%s3562 + $0x184] sm:$0xf]
  %v3661 = vld [vmem:[%s3562 + $0x188] sm:$0xf]
  %v3662 = vld [vmem:[%s3562 + $0x18c] sm:$0xf]
  %v3663 = vld [vmem:[%s3562 + $0x190] sm:$0xf]
  %v3664 = vld [vmem:[%s3562 + $0x194] sm:$0xf]
  %v3665 = vld [vmem:[%s3562 + $0x198] sm:$0xf]
  %v3666 = vld [vmem:[%s3562 + $0x19c] sm:$0xf]
  %v3667 = vld [vmem:[%s3562 + $0x1a0] sm:$0xf]
  %v3668 = vld [vmem:[%s3562 + $0x1a4] sm:$0xf]
  %v3669 = vld [vmem:[%s3562 + $0x1a8] sm:$0xf]
  %v3670 = vld [vmem:[%s3562 + $0x1ac] sm:$0xf]
  %v3671 = vld [vmem:[%s3562 + $0x1b0] sm:$0xf]
  %v3672 = vld [vmem:[%s3562 + $0x1b4] sm:$0xf]
  %v3673 = vld [vmem:[%s3562 + $0x1b8] sm:$0xf]
  %v3674 = vld [vmem:[%s3562 + $0x1bc] sm:$0xf]
  %v3675 = vld [vmem:[%s3562 + $0x1c0] sm:$0xf]
  %v3676 = vld [vmem:[%s3562 + $0x1c4] sm:$0xf]
  %v3677 = vld [vmem:[%s3562 + $0x1c8] sm:$0xf]
  %v3678 = vld [vmem:[%s3562 + $0x1cc] sm:$0xf]
  %v3679 = vld [vmem:[%s3562 + $0x1d0] sm:$0xf]
  %v3680 = vld [vmem:[%s3562 + $0x1d4] sm:$0xf]
  %v3681 = vld [vmem:[%s3562 + $0x1d8] sm:$0xf]
  %v3682 = vld [vmem:[%s3562 + $0x1dc] sm:$0xf]
  %v3683 = vld [vmem:[%s3562 + $0x1e0] sm:$0xf]
  %v3684 = vld [vmem:[%s3562 + $0x1e4] sm:$0xf]
  %v3685 = vld [vmem:[%s3562 + $0x1e8] sm:$0xf]
  %v3686 = vld [vmem:[%s3562 + $0x1ec] sm:$0xf]
  %v3687 = vld [vmem:[%s3562 + $0x1f0] sm:$0xf]
  %v3688 = vld [vmem:[%s3562 + $0x1f4] sm:$0xf]
  %v3689 = vld [vmem:[%s3562 + $0x1f8] sm:$0xf]
  %v3690 = vld [vmem:[%s3562 + $0x1fc] sm:$0xf]
  %v3691 = vld [vmem:[%s3256 + $0x20] sm:$0xff]
  %v3692 = vld [vmem:[%s3256 + $0x28] sm:$0xff]
  %v3693 = vld [vmem:[%s3256 + $0x30] sm:$0xff]
  %v3694 = vld [vmem:[%s3256 + $0x38] sm:$0xff]
  %v3695 = vld [vmem:[%s3256 + $0x60] sm:$0xff]
  %v3696 = vld [vmem:[%s3256 + $0x68] sm:$0xff]
  %v3697 = vld [vmem:[%s3256 + $0x70] sm:$0xff]
  %v3698 = vld [vmem:[%s3256 + $0x78] sm:$0xff]
  %v3699 = vld [vmem:[%s3256 + $0xa0] sm:$0xff]
  %v3700 = vld [vmem:[%s3256 + $0xa8] sm:$0xff]
  %v3701 = vld [vmem:[%s3256 + $0xb0] sm:$0xff]
  %v3702 = vld [vmem:[%s3256 + $0xb8] sm:$0xff]
  %v3703 = vld [vmem:[%s3256 + $0xe0] sm:$0xff]
  %v3704 = vld [vmem:[%s3256 + $0xe8] sm:$0xff]
  %v3705 = vld [vmem:[%s3256 + $0xf0] sm:$0xff]
  %v3706 = vld [vmem:[%s3256 + $0xf8] sm:$0xff]
  %v3707 = vld [vmem:[%s3273 + $0x8] sm:$0xff]
  %v3709 = vperm.slane %v3707, 0
  %v3710 = vperm.slane %v3707, 1
  %v3711 = vperm.slane %v3707, 2
  %v3712 = vperm.slane %v3707, 3
  %v3713 = vperm.slane %v3707, 4
  %v3714 = vperm.slane %v3707, 5
  %v3715 = vperm.slane %v3707, 6
  %v3716 = vperm.slane %v3707, 7
  %v3741 = vunpack.c.l.b16 %v3691
  %v3742 = vunpack.c.h.b16 %v3691
  %v3743 = vunpack.c.l.b16 %v3692
  %v3744 = vunpack.c.h.b16 %v3692
  %v3745 = vunpack.c.l.b16 %v3693
  %v3746 = vunpack.c.h.b16 %v3693
  %v3747 = vunpack.c.l.b16 %v3694
  %v3748 = vunpack.c.h.b16 %v3694
  %v3749 = vunpack.c.l.b16 %v3695
  %v3750 = vunpack.c.h.b16 %v3695
  %v3751 = vunpack.c.l.b16 %v3696
  %v3752 = vunpack.c.h.b16 %v3696
  %v3753 = vunpack.c.l.b16 %v3697
  %v3754 = vunpack.c.h.b16 %v3697
  %v3755 = vunpack.c.l.b16 %v3698
  %v3756 = vunpack.c.h.b16 %v3698
  %v3757 = vunpack.c.l.b16 %v3699
  %v3758 = vunpack.c.h.b16 %v3699
  %v3759 = vunpack.c.l.b16 %v3700
  %v3760 = vunpack.c.h.b16 %v3700
  %v3761 = vunpack.c.l.b16 %v3701
  %v3762 = vunpack.c.h.b16 %v3701
  %v3763 = vunpack.c.l.b16 %v3702
  %v3764 = vunpack.c.h.b16 %v3702
  %v3765 = vunpack.c.l.b16 %v3703
  %v3766 = vunpack.c.h.b16 %v3703
  %v3767 = vunpack.c.l.b16 %v3704
  %v3768 = vunpack.c.h.b16 %v3704
  %v3769 = vunpack.c.l.b16 %v3705
  %v3770 = vunpack.c.h.b16 %v3705
  %v3771 = vunpack.c.l.b16 %v3706
  %v3772 = vunpack.c.h.b16 %v3706
  %v3773 = vpack.c.b16 %v3749, %v3741
  %v3774 = vpack.c.b16 %v3750, %v3742
  %v3775 = vpack.c.b16 %v3751, %v3743
  %v3776 = vpack.c.b16 %v3752, %v3744
  %v3777 = vpack.c.b16 %v3753, %v3745
  %v3778 = vpack.c.b16 %v3754, %v3746
  %v3779 = vpack.c.b16 %v3755, %v3747
  %v3780 = vpack.c.b16 %v3756, %v3748
  %v3781 = vpack.c.b16 %v3765, %v3757
  %v3782 = vpack.c.b16 %v3766, %v3758
  %v3783 = vpack.c.b16 %v3767, %v3759
  %v3784 = vpack.c.b16 %v3768, %v3760
  %v3785 = vpack.c.b16 %v3769, %v3761
  %v3786 = vpack.c.b16 %v3770, %v3762
  %v3787 = vpack.c.b16 %v3771, %v3763
  %v3788 = vpack.c.b16 %v3772, %v3764
  %3805 = vmatpush.bf16.msra.mxu0 0
  %3806 = vmatpush.bf16.msra.mxu0 0
  %3807 = vmatpush.bf16.msra.mxu0 0
  %3808 = vmatpush.bf16.msra.mxu0 0
  %3809 = vmatpush.bf16.msra.mxu0 0
  %3810 = vmatpush.bf16.msra.mxu0 0
  %3811 = vmatpush.bf16.msra.mxu0 %v3781
  %3812 = vmatpush.bf16.msra.mxu0 %v3773
  %3813 = vmatmul.bf16.gmra.mxu0 %v3373
  %v3814 = vpop.f32.mrf.mxu0
  %v3815 = vadd.f32 %v3709, %v3814
  %v3816 = vpop.f32.mrf.mxu0
  %v3817 = vadd.f32 %v3709, %v3816
  %3818 = vmatmul.bf16.gmra.mxu0 %v3376
  %v3819 = vpop.f32.mrf.mxu0
  %v3820 = vadd.f32 %v3709, %v3819
  %v3821 = vpop.f32.mrf.mxu0
  %3822 = vdwg.mxu0
  %3823 = vmatpush.bf16.msra.mxu0 0
  %3824 = vmatpush.bf16.msra.mxu0 0
  %3825 = vmatpush.bf16.msra.mxu0 0
  %3826 = vmatpush.bf16.msra.mxu0 0
  %3827 = vmatpush.bf16.msra.mxu0 0
  %3828 = vmatpush.bf16.msra.mxu0 0
  %3829 = vmatpush.bf16.msra.mxu0 %v3782
  %3830 = vmatpush.bf16.msra.mxu0 %v3774
  %3831 = vmatmul.bf16.gmra.mxu0 %v3373
  %v3832 = vpop.f32.mrf.mxu0
  %v3833 = vadd.f32 %v3710, %v3832
  %v3834 = vpop.f32.mrf.mxu0
  %v3835 = vadd.f32 %v3710, %v3834
  %3836 = vmatmul.bf16.gmra.mxu0 %v3376
  %v3837 = vpop.f32.mrf.mxu0
  %v3838 = vadd.f32 %v3710, %v3837
  %v3839 = vpop.f32.mrf.mxu0
  %3840 = vdwg.mxu0
  %3841 = vmatpush.bf16.msra.mxu0 0
  %3842 = vmatpush.bf16.msra.mxu0 0
  %3843 = vmatpush.bf16.msra.mxu0 0
  %3844 = vmatpush.bf16.msra.mxu0 0
  %3845 = vmatpush.bf16.msra.mxu0 0
  %3846 = vmatpush.bf16.msra.mxu0 0
  %3847 = vmatpush.bf16.msra.mxu0 %v3783
  %3848 = vmatpush.bf16.msra.mxu0 %v3775
  %3849 = vmatmul.bf16.gmra.mxu0 %v3373
  %v3850 = vpop.f32.mrf.mxu0
  %v3851 = vadd.f32 %v3711, %v3850
  %v3852 = vpop.f32.mrf.mxu0
  %v3853 = vadd.f32 %v3711, %v3852
  %3854 = vmatmul.bf16.gmra.mxu0 %v3376
  %v3855 = vpop.f32.mrf.mxu0
  %v3856 = vadd.f32 %v3711, %v3855
  %v3857 = vpop.f32.mrf.mxu0
  %3858 = vdwg.mxu0
  %3859 = vmatpush.bf16.msra.mxu0 0
  %3860 = vmatpush.bf16.msra.mxu0 0
  %3861 = vmatpush.bf16.msra.mxu0 0
  %3862 = vmatpush.bf16.msra.mxu0 0
  %3863 = vmatpush.bf16.msra.mxu0 0
  %3864 = vmatpush.bf16.msra.mxu0 0
  %3865 = vmatpush.bf16.msra.mxu0 %v3784
  %3866 = vmatpush.bf16.msra.mxu0 %v3776
  %3867 = vmatmul.bf16.gmra.mxu0 %v3373
  %v3868 = vpop.f32.mrf.mxu0
  %v3869 = vadd.f32 %v3712, %v3868
  %v3870 = vpop.f32.mrf.mxu0
  %v3871 = vadd.f32 %v3712, %v3870
  %3872 = vmatmul.bf16.gmra.mxu0 %v3376
  %v3873 = vpop.f32.mrf.mxu0
  %v3874 = vadd.f32 %v3712, %v3873
  %v3875 = vpop.f32.mrf.mxu0
  %3876 = vdwg.mxu0
  %3877 = vmatpush.bf16.msra.mxu0 0
  %3878 = vmatpush.bf16.msra.mxu0 0
  %3879 = vmatpush.bf16.msra.mxu0 0
  %3880 = vmatpush.bf16.msra.mxu0 0
  %3881 = vmatpush.bf16.msra.mxu0 0
  %3882 = vmatpush.bf16.msra.mxu0 0
  %3883 = vmatpush.bf16.msra.mxu0 %v3785
  %3884 = vmatpush.bf16.msra.mxu0 %v3777
  %3885 = vmatmul.bf16.gmra.mxu0 %v3373
  %v3886 = vpop.f32.mrf.mxu0
  %v3887 = vadd.f32 %v3713, %v3886
  %v3888 = vpop.f32.mrf.mxu0
  %v3889 = vadd.f32 %v3713, %v3888
  %3890 = vmatmul.bf16.gmra.mxu0 %v3376
  %v3891 = vpop.f32.mrf.mxu0
  %v3892 = vadd.f32 %v3713, %v3891
  %v3893 = vpop.f32.mrf.mxu0
  %3894 = vdwg.mxu0
  %3895 = vmatpush.bf16.msra.mxu0 0
  %3896 = vmatpush.bf16.msra.mxu0 0
  %3897 = vmatpush.bf16.msra.mxu0 0
  %3898 = vmatpush.bf16.msra.mxu0 0
  %3899 = vmatpush.bf16.msra.mxu0 0
  %3900 = vmatpush.bf16.msra.mxu0 0
  %3901 = vmatpush.bf16.msra.mxu0 %v3786
  %3902 = vmatpush.bf16.msra.mxu0 %v3778
  %3903 = vmatmul.bf16.gmra.mxu0 %v3373
  %v3904 = vpop.f32.mrf.mxu0
  %v3905 = vadd.f32 %v3714, %v3904
  %v3906 = vpop.f32.mrf.mxu0
  %v3907 = vadd.f32 %v3714, %v3906
  %3908 = vmatmul.bf16.gmra.mxu0 %v3376
  %v3909 = vpop.f32.mrf.mxu0
  %v3910 = vadd.f32 %v3714, %v3909
  %v3911 = vpop.f32.mrf.mxu0
  %3912 = vdwg.mxu0
  %3913 = vmatpush.bf16.msra.mxu0 0
  %3914 = vmatpush.bf16.msra.mxu0 0
  %3915 = vmatpush.bf16.msra.mxu0 0
  %3916 = vmatpush.bf16.msra.mxu0 0
  %3917 = vmatpush.bf16.msra.mxu0 0
  %3918 = vmatpush.bf16.msra.mxu0 0
  %3919 = vmatpush.bf16.msra.mxu0 %v3787
  %3920 = vmatpush.bf16.msra.mxu0 %v3779
  %3921 = vmatmul.bf16.gmra.mxu0 %v3373
  %v3922 = vpop.f32.mrf.mxu0
  %v3923 = vadd.f32 %v3715, %v3922
  %v3924 = vpop.f32.mrf.mxu0
  %v3925 = vadd.f32 %v3715, %v3924
  %3926 = vmatmul.bf16.gmra.mxu0 %v3376
  %v3927 = vpop.f32.mrf.mxu0
  %v3928 = vadd.f32 %v3715, %v3927
  %v3929 = vpop.f32.mrf.mxu0
  %3930 = vdwg.mxu0
  %3931 = vmatpush.bf16.msra.mxu0 0
  %3932 = vmatpush.bf16.msra.mxu0 0
  %3933 = vmatpush.bf16.msra.mxu0 0
  %3934 = vmatpush.bf16.msra.mxu0 0
  %3935 = vmatpush.bf16.msra.mxu0 0
  %3936 = vmatpush.bf16.msra.mxu0 0
  %3937 = vmatpush.bf16.msra.mxu0 %v3788
  %3938 = vmatpush.bf16.msra.mxu0 %v3780
  %3939 = vmatmul.bf16.gmra.mxu0 %v3373
  %v3940 = vpop.f32.mrf.mxu0
  %v3941 = vadd.f32 %v3716, %v3940
  %v3942 = vpop.f32.mrf.mxu0
  %v3943 = vadd.f32 %v3716, %v3942
  %3944 = vmatmul.bf16.gmra.mxu0 %v3376
  %v3945 = vpop.f32.mrf.mxu0
  %v3946 = vadd.f32 %v3716, %v3945
  %v3947 = vpop.f32.mrf.mxu0
  %3948 = vdwg.mxu0
  %v3949 = vmax.f32 %v3815, 0.0
  %v3950 = vmax.f32 %v3833, 0.0
  %v3951 = vmax.f32 %v3851, 0.0
  %v3952 = vmax.f32 %v3869, 0.0
  %v3953 = vmax.f32 %v3887, 0.0
  %v3954 = vmax.f32 %v3905, 0.0
  %v3955 = vmax.f32 %v3923, 0.0
  %v3956 = vmax.f32 %v3941, 0.0
  %v3957 = vmax.f32 %v3817, 0.0
  %v3958 = vmax.f32 %v3835, 0.0
  %v3959 = vmax.f32 %v3853, 0.0
  %v3960 = vmax.f32 %v3871, 0.0
  %v3961 = vmax.f32 %v3889, 0.0
  %v3962 = vmax.f32 %v3907, 0.0
  %v3963 = vmax.f32 %v3925, 0.0
  %v3964 = vmax.f32 %v3943, 0.0
  %v3965 = vmax.f32 %v3820, 0.0
  %v3966 = vmax.f32 %v3838, 0.0
  %v3967 = vmax.f32 %v3856, 0.0
  %v3968 = vmax.f32 %v3874, 0.0
  %v3969 = vmax.f32 %v3892, 0.0
  %v3970 = vmax.f32 %v3910, 0.0
  %v3971 = vmax.f32 %v3928, 0.0
  %v3972 = vmax.f32 %v3946, 0.0
  %v3973 = vpack.c.bf16 %v3957, %v3949
  %v3974 = vpack.c.bf16 %v3958, %v3950
  %v3975 = vpack.c.bf16 %v3959, %v3951
  %v3976 = vpack.c.bf16 %v3960, %v3952
  %v3977 = vpack.c.bf16 %v3961, %v3953
  %v3978 = vpack.c.bf16 %v3962, %v3954
  %v3979 = vpack.c.bf16 %v3963, %v3955
  %v3980 = vpack.c.bf16 %v3964, %v3956
  %v3981 = vpack.c.bf16 %v3965, %v3965
  %v3982 = vpack.c.bf16 %v3966, %v3966
  %v3983 = vpack.c.bf16 %v3967, %v3967
  %v3984 = vpack.c.bf16 %v3968, %v3968
  %v3985 = vpack.c.bf16 %v3969, %v3969
  %v3986 = vpack.c.bf16 %v3970, %v3970
  %v3987 = vpack.c.bf16 %v3971, %v3971
  %v3988 = vpack.c.bf16 %v3972, %v3972
  %v3989 = vld [vmem:[%s3562 + $0x200] sm:$0xf]
  %v3990 = vld [vmem:[%s3562 + $0x204] sm:$0xf]
  %v3991 = vld [vmem:[%s3562 + $0x208] sm:$0xf]
  %v3992 = vld [vmem:[%s3562 + $0x20c] sm:$0xf]
  %v3993 = vld [vmem:[%s3562 + $0x210] sm:$0xf]
  %v3994 = vld [vmem:[%s3562 + $0x214] sm:$0xf]
  %v3995 = vld [vmem:[%s3562 + $0x218] sm:$0xf]
  %v3996 = vld [vmem:[%s3562 + $0x21c] sm:$0xf]
  %v3997 = vld [vmem:[%s3562 + $0x220] sm:$0xf]
  %v3998 = vld [vmem:[%s3562 + $0x224] sm:$0xf]
  %v3999 = vld [vmem:[%s3562 + $0x228] sm:$0xf]
  %v4000 = vld [vmem:[%s3562 + $0x22c] sm:$0xf]
  %v4001 = vld [vmem:[%s3562 + $0x230] sm:$0xf]
  %v4002 = vld [vmem:[%s3562 + $0x234] sm:$0xf]
  %v4003 = vld [vmem:[%s3562 + $0x238] sm:$0xf]
  %v4004 = vld [vmem:[%s3562 + $0x23c] sm:$0xf]
  %v4005 = vld [vmem:[%s3562 + $0x240] sm:$0xf]
  %v4006 = vld [vmem:[%s3562 + $0x244] sm:$0xf]
  %v4007 = vld [vmem:[%s3562 + $0x248] sm:$0xf]
  %v4008 = vld [vmem:[%s3562 + $0x24c] sm:$0xf]
  %v4009 = vld [vmem:[%s3562 + $0x250] sm:$0xf]
  %v4010 = vld [vmem:[%s3562 + $0x254] sm:$0xf]
  %v4011 = vld [vmem:[%s3562 + $0x258] sm:$0xf]
  %v4012 = vld [vmem:[%s3562 + $0x25c] sm:$0xf]
  %v4013 = vld [vmem:[%s3562 + $0x260] sm:$0xf]
  %v4014 = vld [vmem:[%s3562 + $0x264] sm:$0xf]
  %v4015 = vld [vmem:[%s3562 + $0x268] sm:$0xf]
  %v4016 = vld [vmem:[%s3562 + $0x26c] sm:$0xf]
  %v4017 = vld [vmem:[%s3562 + $0x270] sm:$0xf]
  %v4018 = vld [vmem:[%s3562 + $0x274] sm:$0xf]
  %v4019 = vld [vmem:[%s3562 + $0x278] sm:$0xf]
  %v4020 = vld [vmem:[%s3562 + $0x27c] sm:$0xf]
  %v4021 = vld [vmem:[%s3562 + $0x280] sm:$0xf]
  %v4022 = vld [vmem:[%s3562 + $0x284] sm:$0xf]
  %v4023 = vld [vmem:[%s3562 + $0x288] sm:$0xf]
  %v4024 = vld [vmem:[%s3562 + $0x28c] sm:$0xf]
  %v4025 = vld [vmem:[%s3562 + $0x290] sm:$0xf]
  %v4026 = vld [vmem:[%s3562 + $0x294] sm:$0xf]
  %v4027 = vld [vmem:[%s3562 + $0x298] sm:$0xf]
  %v4028 = vld [vmem:[%s3562 + $0x29c] sm:$0xf]
  %v4029 = vld [vmem:[%s3562 + $0x2a0] sm:$0xf]
  %v4030 = vld [vmem:[%s3562 + $0x2a4] sm:$0xf]
  %v4031 = vld [vmem:[%s3562 + $0x2a8] sm:$0xf]
  %v4032 = vld [vmem:[%s3562 + $0x2ac] sm:$0xf]
  %v4033 = vld [vmem:[%s3562 + $0x2b0] sm:$0xf]
  %v4034 = vld [vmem:[%s3562 + $0x2b4] sm:$0xf]
  %v4035 = vld [vmem:[%s3562 + $0x2b8] sm:$0xf]
  %v4036 = vld [vmem:[%s3562 + $0x2bc] sm:$0xf]
  %v4037 = vld [vmem:[%s3562 + $0x2c0] sm:$0xf]
  %v4038 = vld [vmem:[%s3562 + $0x2c4] sm:$0xf]
  %v4039 = vld [vmem:[%s3562 + $0x2c8] sm:$0xf]
  %v4040 = vld [vmem:[%s3562 + $0x2cc] sm:$0xf]
  %v4041 = vld [vmem:[%s3562 + $0x2d0] sm:$0xf]
  %v4042 = vld [vmem:[%s3562 + $0x2d4] sm:$0xf]
  %v4043 = vld [vmem:[%s3562 + $0x2d8] sm:$0xf]
  %v4044 = vld [vmem:[%s3562 + $0x2dc] sm:$0xf]
  %v4045 = vld [vmem:[%s3562 + $0x2e0] sm:$0xf]
  %v4046 = vld [vmem:[%s3562 + $0x2e4] sm:$0xf]
  %v4047 = vld [vmem:[%s3562 + $0x2e8] sm:$0xf]
  %v4048 = vld [vmem:[%s3562 + $0x2ec] sm:$0xf]
  %v4049 = vld [vmem:[%s3562 + $0x2f0] sm:$0xf]
  %v4050 = vld [vmem:[%s3562 + $0x2f4] sm:$0xf]
  %v4051 = vld [vmem:[%s3562 + $0x2f8] sm:$0xf]
  %v4052 = vld [vmem:[%s3562 + $0x2fc] sm:$0xf]
  %v4053 = vld [vmem:[%s3562 + $0x300] sm:$0xf]
  %v4054 = vld [vmem:[%s3562 + $0x304] sm:$0xf]
  %v4055 = vld [vmem:[%s3562 + $0x308] sm:$0xf]
  %v4056 = vld [vmem:[%s3562 + $0x30c] sm:$0xf]
  %v4057 = vld [vmem:[%s3562 + $0x310] sm:$0xf]
  %v4058 = vld [vmem:[%s3562 + $0x314] sm:$0xf]
  %v4059 = vld [vmem:[%s3562 + $0x318] sm:$0xf]
  %v4060 = vld [vmem:[%s3562 + $0x31c] sm:$0xf]
  %v4061 = vld [vmem:[%s3562 + $0x320] sm:$0xf]
  %v4062 = vld [vmem:[%s3562 + $0x324] sm:$0xf]
  %v4063 = vld [vmem:[%s3562 + $0x328] sm:$0xf]
  %v4064 = vld [vmem:[%s3562 + $0x32c] sm:$0xf]
  %v4065 = vld [vmem:[%s3562 + $0x330] sm:$0xf]
  %v4066 = vld [vmem:[%s3562 + $0x334] sm:$0xf]
  %v4067 = vld [vmem:[%s3562 + $0x338] sm:$0xf]
  %v4068 = vld [vmem:[%s3562 + $0x33c] sm:$0xf]
  %v4069 = vld [vmem:[%s3562 + $0x340] sm:$0xf]
  %v4070 = vld [vmem:[%s3562 + $0x344] sm:$0xf]
  %v4071 = vld [vmem:[%s3562 + $0x348] sm:$0xf]
  %v4072 = vld [vmem:[%s3562 + $0x34c] sm:$0xf]
  %v4073 = vld [vmem:[%s3562 + $0x350] sm:$0xf]
  %v4074 = vld [vmem:[%s3562 + $0x354] sm:$0xf]
  %v4075 = vld [vmem:[%s3562 + $0x358] sm:$0xf]
  %v4076 = vld [vmem:[%s3562 + $0x35c] sm:$0xf]
  %v4077 = vld [vmem:[%s3562 + $0x360] sm:$0xf]
  %v4078 = vld [vmem:[%s3562 + $0x364] sm:$0xf]
  %v4079 = vld [vmem:[%s3562 + $0x368] sm:$0xf]
  %v4080 = vld [vmem:[%s3562 + $0x36c] sm:$0xf]
  %v4081 = vld [vmem:[%s3562 + $0x370] sm:$0xf]
  %v4082 = vld [vmem:[%s3562 + $0x374] sm:$0xf]
  %v4083 = vld [vmem:[%s3562 + $0x378] sm:$0xf]
  %v4084 = vld [vmem:[%s3562 + $0x37c] sm:$0xf]
  %v4085 = vld [vmem:[%s3562 + $0x380] sm:$0xf]
  %v4086 = vld [vmem:[%s3562 + $0x384] sm:$0xf]
  %v4087 = vld [vmem:[%s3562 + $0x388] sm:$0xf]
  %v4088 = vld [vmem:[%s3562 + $0x38c] sm:$0xf]
  %v4089 = vld [vmem:[%s3562 + $0x390] sm:$0xf]
  %v4090 = vld [vmem:[%s3562 + $0x394] sm:$0xf]
  %v4091 = vld [vmem:[%s3562 + $0x398] sm:$0xf]
  %v4092 = vld [vmem:[%s3562 + $0x39c] sm:$0xf]
  %v4093 = vld [vmem:[%s3562 + $0x3a0] sm:$0xf]
  %v4094 = vld [vmem:[%s3562 + $0x3a4] sm:$0xf]
  %v4095 = vld [vmem:[%s3562 + $0x3a8] sm:$0xf]
  %v4096 = vld [vmem:[%s3562 + $0x3ac] sm:$0xf]
  %v4097 = vld [vmem:[%s3562 + $0x3b0] sm:$0xf]
  %v4098 = vld [vmem:[%s3562 + $0x3b4] sm:$0xf]
  %v4099 = vld [vmem:[%s3562 + $0x3b8] sm:$0xf]
  %v4100 = vld [vmem:[%s3562 + $0x3bc] sm:$0xf]
  %v4101 = vld [vmem:[%s3562 + $0x3c0] sm:$0xf]
  %v4102 = vld [vmem:[%s3562 + $0x3c4] sm:$0xf]
  %v4103 = vld [vmem:[%s3562 + $0x3c8] sm:$0xf]
  %v4104 = vld [vmem:[%s3562 + $0x3cc] sm:$0xf]
  %v4105 = vld [vmem:[%s3562 + $0x3d0] sm:$0xf]
  %v4106 = vld [vmem:[%s3562 + $0x3d4] sm:$0xf]
  %v4107 = vld [vmem:[%s3562 + $0x3d8] sm:$0xf]
  %v4108 = vld [vmem:[%s3562 + $0x3dc] sm:$0xf]
  %v4109 = vld [vmem:[%s3562 + $0x3e0] sm:$0xf]
  %v4110 = vld [vmem:[%s3562 + $0x3e4] sm:$0xf]
  %v4111 = vld [vmem:[%s3562 + $0x3e8] sm:$0xf]
  %v4112 = vld [vmem:[%s3562 + $0x3ec] sm:$0xf]
  %v4113 = vld [vmem:[%s3562 + $0x3f0] sm:$0xf]
  %v4114 = vld [vmem:[%s3562 + $0x3f4] sm:$0xf]
  %v4115 = vld [vmem:[%s3562 + $0x3f8] sm:$0xf]
  %v4116 = vld [vmem:[%s3562 + $0x3fc] sm:$0xf]
  %v4245 = vunpack.c.l.b16 %v3989
  %v4246 = vunpack.c.l.b16 %v3990
  %v4247 = vunpack.c.l.b16 %v3991
  %v4248 = vunpack.c.l.b16 %v3992
  %v4249 = vunpack.c.l.b16 %v3993
  %v4250 = vunpack.c.l.b16 %v3994
  %v4251 = vunpack.c.l.b16 %v3995
  %v4252 = vunpack.c.l.b16 %v3996
  %v4253 = vunpack.c.l.b16 %v3997
  %v4254 = vunpack.c.l.b16 %v3998
  %v4255 = vunpack.c.l.b16 %v3999
  %v4256 = vunpack.c.l.b16 %v4000
  %v4257 = vunpack.c.l.b16 %v4001
  %v4258 = vunpack.c.l.b16 %v4002
  %v4259 = vunpack.c.l.b16 %v4003
  %v4260 = vunpack.c.l.b16 %v4004
  %v4261 = vunpack.c.l.b16 %v4005
  %v4262 = vunpack.c.l.b16 %v4006
  %v4263 = vunpack.c.l.b16 %v4007
  %v4264 = vunpack.c.l.b16 %v4008
  %v4265 = vunpack.c.l.b16 %v4009
  %v4266 = vunpack.c.l.b16 %v4010
  %v4267 = vunpack.c.l.b16 %v4011
  %v4268 = vunpack.c.l.b16 %v4012
  %v4269 = vunpack.c.l.b16 %v4013
  %v4270 = vunpack.c.l.b16 %v4014
  %v4271 = vunpack.c.l.b16 %v4015
  %v4272 = vunpack.c.l.b16 %v4016
  %v4273 = vunpack.c.l.b16 %v4017
  %v4274 = vunpack.c.l.b16 %v4018
  %v4275 = vunpack.c.l.b16 %v4019
  %v4276 = vunpack.c.l.b16 %v4020
  %v4277 = vunpack.c.l.b16 %v4021
  %v4278 = vunpack.c.l.b16 %v4022
  %v4279 = vunpack.c.l.b16 %v4023
  %v4280 = vunpack.c.l.b16 %v4024
  %v4281 = vunpack.c.l.b16 %v4025
  %v4282 = vunpack.c.l.b16 %v4026
  %v4283 = vunpack.c.l.b16 %v4027
  %v4284 = vunpack.c.l.b16 %v4028
  %v4285 = vunpack.c.l.b16 %v4029
  %v4286 = vunpack.c.l.b16 %v4030
  %v4287 = vunpack.c.l.b16 %v4031
  %v4288 = vunpack.c.l.b16 %v4032
  %v4289 = vunpack.c.l.b16 %v4033
  %v4290 = vunpack.c.l.b16 %v4034
  %v4291 = vunpack.c.l.b16 %v4035
  %v4292 = vunpack.c.l.b16 %v4036
  %v4293 = vunpack.c.l.b16 %v4037
  %v4294 = vunpack.c.l.b16 %v4038
  %v4295 = vunpack.c.l.b16 %v4039
  %v4296 = vunpack.c.l.b16 %v4040
  %v4297 = vunpack.c.l.b16 %v4041
  %v4298 = vunpack.c.l.b16 %v4042
  %v4299 = vunpack.c.l.b16 %v4043
  %v4300 = vunpack.c.l.b16 %v4044
  %v4301 = vunpack.c.l.b16 %v4045
  %v4302 = vunpack.c.l.b16 %v4046
  %v4303 = vunpack.c.l.b16 %v4047
  %v4304 = vunpack.c.l.b16 %v4048
  %v4305 = vunpack.c.l.b16 %v4049
  %v4306 = vunpack.c.l.b16 %v4050
  %v4307 = vunpack.c.l.b16 %v4051
  %v4308 = vunpack.c.l.b16 %v4052
  %v4309 = vunpack.c.l.b16 %v4053
  %v4310 = vunpack.c.l.b16 %v4054
  %v4311 = vunpack.c.l.b16 %v4055
  %v4312 = vunpack.c.l.b16 %v4056
  %v4313 = vunpack.c.l.b16 %v4057
  %v4314 = vunpack.c.l.b16 %v4058
  %v4315 = vunpack.c.l.b16 %v4059
  %v4316 = vunpack.c.l.b16 %v4060
  %v4317 = vunpack.c.l.b16 %v4061
  %v4318 = vunpack.c.l.b16 %v4062
  %v4319 = vunpack.c.l.b16 %v4063
  %v4320 = vunpack.c.l.b16 %v4064
  %v4321 = vunpack.c.l.b16 %v4065
  %v4322 = vunpack.c.l.b16 %v4066
  %v4323 = vunpack.c.l.b16 %v4067
  %v4324 = vunpack.c.l.b16 %v4068
  %v4325 = vunpack.c.l.b16 %v4069
  %v4326 = vunpack.c.l.b16 %v4070
  %v4327 = vunpack.c.l.b16 %v4071
  %v4328 = vunpack.c.l.b16 %v4072
  %v4329 = vunpack.c.l.b16 %v4073
  %v4330 = vunpack.c.l.b16 %v4074
  %v4331 = vunpack.c.l.b16 %v4075
  %v4332 = vunpack.c.l.b16 %v4076
  %v4333 = vunpack.c.l.b16 %v4077
  %v4334 = vunpack.c.l.b16 %v4078
  %v4335 = vunpack.c.l.b16 %v4079
  %v4336 = vunpack.c.l.b16 %v4080
  %v4337 = vunpack.c.l.b16 %v4081
  %v4338 = vunpack.c.l.b16 %v4082
  %v4339 = vunpack.c.l.b16 %v4083
  %v4340 = vunpack.c.l.b16 %v4084
  %v4341 = vunpack.c.l.b16 %v4085
  %v4342 = vunpack.c.l.b16 %v4086
  %v4343 = vunpack.c.l.b16 %v4087
  %v4344 = vunpack.c.l.b16 %v4088
  %v4345 = vunpack.c.l.b16 %v4089
  %v4346 = vunpack.c.l.b16 %v4090
  %v4347 = vunpack.c.l.b16 %v4091
  %v4348 = vunpack.c.l.b16 %v4092
  %v4349 = vunpack.c.l.b16 %v4093
  %v4350 = vunpack.c.l.b16 %v4094
  %v4351 = vunpack.c.l.b16 %v4095
  %v4352 = vunpack.c.l.b16 %v4096
  %v4353 = vunpack.c.l.b16 %v4097
  %v4354 = vunpack.c.l.b16 %v4098
  %v4355 = vunpack.c.l.b16 %v4099
  %v4356 = vunpack.c.l.b16 %v4100
  %v4357 = vunpack.c.l.b16 %v4101
  %v4358 = vunpack.c.l.b16 %v4102
  %v4359 = vunpack.c.l.b16 %v4103
  %v4360 = vunpack.c.l.b16 %v4104
  %v4361 = vunpack.c.l.b16 %v4105
  %v4362 = vunpack.c.l.b16 %v4106
  %v4363 = vunpack.c.l.b16 %v4107
  %v4364 = vunpack.c.l.b16 %v4108
  %v4365 = vunpack.c.l.b16 %v4109
  %v4366 = vunpack.c.l.b16 %v4110
  %v4367 = vunpack.c.l.b16 %v4111
  %v4368 = vunpack.c.l.b16 %v4112
  %v4369 = vunpack.c.l.b16 %v4113
  %v4370 = vunpack.c.l.b16 %v4114
  %v4371 = vunpack.c.l.b16 %v4115
  %v4372 = vunpack.c.l.b16 %v4116
  %v4373 = vpack.c.b16 %v4246, %v4245
  %v4374 = vpack.c.b16 %v4248, %v4247
  %v4375 = vpack.c.b16 %v4250, %v4249
  %v4376 = vpack.c.b16 %v4252, %v4251
  %v4377 = vpack.c.b16 %v4254, %v4253
  %v4378 = vpack.c.b16 %v4256, %v4255
  %v4379 = vpack.c.b16 %v4258, %v4257
  %v4380 = vpack.c.b16 %v4260, %v4259
  %v4381 = vpack.c.b16 %v4262, %v4261
  %v4382 = vpack.c.b16 %v4264, %v4263
  %v4383 = vpack.c.b16 %v4266, %v4265
  %v4384 = vpack.c.b16 %v4268, %v4267
  %v4385 = vpack.c.b16 %v4270, %v4269
  %v4386 = vpack.c.b16 %v4272, %v4271
  %v4387 = vpack.c.b16 %v4274, %v4273
  %v4388 = vpack.c.b16 %v4276, %v4275
  %v4389 = vpack.c.b16 %v4278, %v4277
  %v4390 = vpack.c.b16 %v4280, %v4279
  %v4391 = vpack.c.b16 %v4282, %v4281
  %v4392 = vpack.c.b16 %v4284, %v4283
  %v4393 = vpack.c.b16 %v4286, %v4285
  %v4394 = vpack.c.b16 %v4288, %v4287
  %v4395 = vpack.c.b16 %v4290, %v4289
  %v4396 = vpack.c.b16 %v4292, %v4291
  %v4397 = vpack.c.b16 %v4294, %v4293
  %v4398 = vpack.c.b16 %v4296, %v4295
  %v4399 = vpack.c.b16 %v4298, %v4297
  %v4400 = vpack.c.b16 %v4300, %v4299
  %v4401 = vpack.c.b16 %v4302, %v4301
  %v4402 = vpack.c.b16 %v4304, %v4303
  %v4403 = vpack.c.b16 %v4306, %v4305
  %v4404 = vpack.c.b16 %v4308, %v4307
  %v4405 = vpack.c.b16 %v4310, %v4309
  %v4406 = vpack.c.b16 %v4312, %v4311
  %v4407 = vpack.c.b16 %v4314, %v4313
  %v4408 = vpack.c.b16 %v4316, %v4315
  %v4409 = vpack.c.b16 %v4318, %v4317
  %v4410 = vpack.c.b16 %v4320, %v4319
  %v4411 = vpack.c.b16 %v4322, %v4321
  %v4412 = vpack.c.b16 %v4324, %v4323
  %v4413 = vpack.c.b16 %v4326, %v4325
  %v4414 = vpack.c.b16 %v4328, %v4327
  %v4415 = vpack.c.b16 %v4330, %v4329
  %v4416 = vpack.c.b16 %v4332, %v4331
  %v4417 = vpack.c.b16 %v4334, %v4333
  %v4418 = vpack.c.b16 %v4336, %v4335
  %v4419 = vpack.c.b16 %v4338, %v4337
  %v4420 = vpack.c.b16 %v4340, %v4339
  %v4421 = vpack.c.b16 %v4342, %v4341
  %v4422 = vpack.c.b16 %v4344, %v4343
  %v4423 = vpack.c.b16 %v4346, %v4345
  %v4424 = vpack.c.b16 %v4348, %v4347
  %v4425 = vpack.c.b16 %v4350, %v4349
  %v4426 = vpack.c.b16 %v4352, %v4351
  %v4427 = vpack.c.b16 %v4354, %v4353
  %v4428 = vpack.c.b16 %v4356, %v4355
  %v4429 = vpack.c.b16 %v4358, %v4357
  %v4430 = vpack.c.b16 %v4360, %v4359
  %v4431 = vpack.c.b16 %v4362, %v4361
  %v4432 = vpack.c.b16 %v4364, %v4363
  %v4433 = vpack.c.b16 %v4366, %v4365
  %v4434 = vpack.c.b16 %v4368, %v4367
  %v4435 = vpack.c.b16 %v4370, %v4369
  %v4436 = vpack.c.b16 %v4372, %v4371
  %4501 = vmatpush.bf16.msra.mxu0 %v4380
  %4502 = vmatpush.bf16.msra.mxu0 %v4379
  %4503 = vmatpush.bf16.msra.mxu0 %v4378
  %4504 = vmatpush.bf16.msra.mxu0 %v4377
  %4505 = vmatpush.bf16.msra.mxu0 %v4376
  %4506 = vmatpush.bf16.msra.mxu0 %v4375
  %4507 = vmatpush.bf16.msra.mxu0 %v4374
  %4508 = vmatpush.bf16.msra.mxu0 %v4373
  %4509 = vmatmul.bf16.gmra.mxu0 %v3973
  %v4510 = vpop.f32.mrf.mxu0
  %v4511 = vadd.f32 0.0, %v4510
  %v4512 = vpop.f32.mrf.mxu0
  %v4513 = vadd.f32 0.0, %v4512
  %4514 = vmatmul.bf16.gmra.mxu0 %v3981
  %v4515 = vpop.f32.mrf.mxu0
  %v4516 = vadd.f32 0.0, %v4515
  %v4517 = vpop.f32.mrf.mxu0
  %4518 = vdwg.mxu0
  %4519 = vmatpush.bf16.msra.mxu0 %v4388
  %4520 = vmatpush.bf16.msra.mxu0 %v4387
  %4521 = vmatpush.bf16.msra.mxu0 %v4386
  %4522 = vmatpush.bf16.msra.mxu0 %v4385
  %4523 = vmatpush.bf16.msra.mxu0 %v4384
  %4524 = vmatpush.bf16.msra.mxu0 %v4383
  %4525 = vmatpush.bf16.msra.mxu0 %v4382
  %4526 = vmatpush.bf16.msra.mxu0 %v4381
  %4527 = vmatmul.bf16.gmra.mxu0 %v3974
  %v4528 = vpop.f32.mrf.mxu0
  %v4529 = vadd.f32 %v4511, %v4528
  %v4530 = vpop.f32.mrf.mxu0
  %v4531 = vadd.f32 %v4513, %v4530
  %4532 = vmatmul.bf16.gmra.mxu0 %v3982
  %v4533 = vpop.f32.mrf.mxu0
  %v4534 = vadd.f32 %v4516, %v4533
  %v4535 = vpop.f32.mrf.mxu0
  %4536 = vdwg.mxu0
  %4537 = vmatpush.bf16.msra.mxu0 %v4396
  %4538 = vmatpush.bf16.msra.mxu0 %v4395
  %4539 = vmatpush.bf16.msra.mxu0 %v4394
  %4540 = vmatpush.bf16.msra.mxu0 %v4393
  %4541 = vmatpush.bf16.msra.mxu0 %v4392
  %4542 = vmatpush.bf16.msra.mxu0 %v4391
  %4543 = vmatpush.bf16.msra.mxu0 %v4390
  %4544 = vmatpush.bf16.msra.mxu0 %v4389
  %4545 = vmatmul.bf16.gmra.mxu0 %v3975
  %v4546 = vpop.f32.mrf.mxu0
  %v4547 = vadd.f32 %v4529, %v4546
  %v4548 = vpop.f32.mrf.mxu0
  %v4549 = vadd.f32 %v4531, %v4548
  %4550 = vmatmul.bf16.gmra.mxu0 %v3983
  %v4551 = vpop.f32.mrf.mxu0
  %v4552 = vadd.f32 %v4534, %v4551
  %v4553 = vpop.f32.mrf.mxu0
  %4554 = vdwg.mxu0
  %4555 = vmatpush.bf16.msra.mxu0 %v4404
  %4556 = vmatpush.bf16.msra.mxu0 %v4403
  %4557 = vmatpush.bf16.msra.mxu0 %v4402
  %4558 = vmatpush.bf16.msra.mxu0 %v4401
  %4559 = vmatpush.bf16.msra.mxu0 %v4400
  %4560 = vmatpush.bf16.msra.mxu0 %v4399
  %4561 = vmatpush.bf16.msra.mxu0 %v4398
  %4562 = vmatpush.bf16.msra.mxu0 %v4397
  %4563 = vmatmul.bf16.gmra.mxu0 %v3976
  %v4564 = vpop.f32.mrf.mxu0
  %v4565 = vadd.f32 %v4547, %v4564
  %v4566 = vpop.f32.mrf.mxu0
  %v4567 = vadd.f32 %v4549, %v4566
  %4568 = vmatmul.bf16.gmra.mxu0 %v3984
  %v4569 = vpop.f32.mrf.mxu0
  %v4570 = vadd.f32 %v4552, %v4569
  %v4571 = vpop.f32.mrf.mxu0
  %4572 = vdwg.mxu0
  %4573 = vmatpush.bf16.msra.mxu0 %v4412
  %4574 = vmatpush.bf16.msra.mxu0 %v4411
  %4575 = vmatpush.bf16.msra.mxu0 %v4410
  %4576 = vmatpush.bf16.msra.mxu0 %v4409
  %4577 = vmatpush.bf16.msra.mxu0 %v4408
  %4578 = vmatpush.bf16.msra.mxu0 %v4407
  %4579 = vmatpush.bf16.msra.mxu0 %v4406
  %4580 = vmatpush.bf16.msra.mxu0 %v4405
  %4581 = vmatmul.bf16.gmra.mxu0 %v3977
  %v4582 = vpop.f32.mrf.mxu0
  %v4583 = vadd.f32 %v4565, %v4582
  %v4584 = vpop.f32.mrf.mxu0
  %v4585 = vadd.f32 %v4567, %v4584
  %4586 = vmatmul.bf16.gmra.mxu0 %v3985
  %v4587 = vpop.f32.mrf.mxu0
  %v4588 = vadd.f32 %v4570, %v4587
  %v4589 = vpop.f32.mrf.mxu0
  %4590 = vdwg.mxu0
  %4591 = vmatpush.bf16.msra.mxu0 %v4420
  %4592 = vmatpush.bf16.msra.mxu0 %v4419
  %4593 = vmatpush.bf16.msra.mxu0 %v4418
  %4594 = vmatpush.bf16.msra.mxu0 %v4417
  %4595 = vmatpush.bf16.msra.mxu0 %v4416
  %4596 = vmatpush.bf16.msra.mxu0 %v4415
  %4597 = vmatpush.bf16.msra.mxu0 %v4414
  %4598 = vmatpush.bf16.msra.mxu0 %v4413
  %4599 = vmatmul.bf16.gmra.mxu0 %v3978
  %v4600 = vpop.f32.mrf.mxu0
  %v4601 = vadd.f32 %v4583, %v4600
  %v4602 = vpop.f32.mrf.mxu0
  %v4603 = vadd.f32 %v4585, %v4602
  %4604 = vmatmul.bf16.gmra.mxu0 %v3986
  %v4605 = vpop.f32.mrf.mxu0
  %v4606 = vadd.f32 %v4588, %v4605
  %v4607 = vpop.f32.mrf.mxu0
  %4608 = vdwg.mxu0
  %4609 = vmatpush.bf16.msra.mxu0 %v4428
  %4610 = vmatpush.bf16.msra.mxu0 %v4427
  %4611 = vmatpush.bf16.msra.mxu0 %v4426
  %4612 = vmatpush.bf16.msra.mxu0 %v4425
  %4613 = vmatpush.bf16.msra.mxu0 %v4424
  %4614 = vmatpush.bf16.msra.mxu0 %v4423
  %4615 = vmatpush.bf16.msra.mxu0 %v4422
  %4616 = vmatpush.bf16.msra.mxu0 %v4421
  %4617 = vmatmul.bf16.gmra.mxu0 %v3979
  %v4618 = vpop.f32.mrf.mxu0
  %v4619 = vadd.f32 %v4601, %v4618
  %v4620 = vpop.f32.mrf.mxu0
  %v4621 = vadd.f32 %v4603, %v4620
  %4622 = vmatmul.bf16.gmra.mxu0 %v3987
  %v4623 = vpop.f32.mrf.mxu0
  %v4624 = vadd.f32 %v4606, %v4623
  %v4625 = vpop.f32.mrf.mxu0
  %4626 = vdwg.mxu0
  %4627 = vmatpush.bf16.msra.mxu0 %v4436
  %4628 = vmatpush.bf16.msra.mxu0 %v4435
  %4629 = vmatpush.bf16.msra.mxu0 %v4434
  %4630 = vmatpush.bf16.msra.mxu0 %v4433
  %4631 = vmatpush.bf16.msra.mxu0 %v4432
  %4632 = vmatpush.bf16.msra.mxu0 %v4431
  %4633 = vmatpush.bf16.msra.mxu0 %v4430
  %4634 = vmatpush.bf16.msra.mxu0 %v4429
  %4635 = vmatmul.bf16.gmra.mxu0 %v3980
  %v4636 = vpop.f32.mrf.mxu0
  %v4637 = vadd.f32 %v4619, %v4636
  %v4638 = vpop.f32.mrf.mxu0
  %v4639 = vadd.f32 %v4621, %v4638
  %4640 = vmatmul.bf16.gmra.mxu0 %v3988
  %v4641 = vpop.f32.mrf.mxu0
  %v4642 = vadd.f32 %v4624, %v4641
  %v4643 = vpop.f32.mrf.mxu0
  %4644 = vdwg.mxu0
  %v4773 = vunpack.c.l.b16 %v3563
  %v4774 = vunpack.c.l.b16 %v3564
  %v4775 = vunpack.c.l.b16 %v3565
  %v4776 = vunpack.c.l.b16 %v3566
  %v4777 = vunpack.c.l.b16 %v3567
  %v4778 = vunpack.c.l.b16 %v3568
  %v4779 = vunpack.c.l.b16 %v3569
  %v4780 = vunpack.c.l.b16 %v3570
  %v4781 = vunpack.c.l.b16 %v3571
  %v4782 = vunpack.c.l.b16 %v3572
  %v4783 = vunpack.c.l.b16 %v3573
  %v4784 = vunpack.c.l.b16 %v3574
  %v4785 = vunpack.c.l.b16 %v3575
  %v4786 = vunpack.c.l.b16 %v3576
  %v4787 = vunpack.c.l.b16 %v3577
  %v4788 = vunpack.c.l.b16 %v3578
  %v4789 = vunpack.c.l.b16 %v3579
  %v4790 = vunpack.c.l.b16 %v3580
  %v4791 = vunpack.c.l.b16 %v3581
  %v4792 = vunpack.c.l.b16 %v3582
  %v4793 = vunpack.c.l.b16 %v3583
  %v4794 = vunpack.c.l.b16 %v3584
  %v4795 = vunpack.c.l.b16 %v3585
  %v4796 = vunpack.c.l.b16 %v3586
  %v4797 = vunpack.c.l.b16 %v3587
  %v4798 = vunpack.c.l.b16 %v3588
  %v4799 = vunpack.c.l.b16 %v3589
  %v4800 = vunpack.c.l.b16 %v3590
  %v4801 = vunpack.c.l.b16 %v3591
  %v4802 = vunpack.c.l.b16 %v3592
  %v4803 = vunpack.c.l.b16 %v3593
  %v4804 = vunpack.c.l.b16 %v3594
  %v4805 = vunpack.c.l.b16 %v3595
  %v4806 = vunpack.c.l.b16 %v3596
  %v4807 = vunpack.c.l.b16 %v3597
  %v4808 = vunpack.c.l.b16 %v3598
  %v4809 = vunpack.c.l.b16 %v3599
  %v4810 = vunpack.c.l.b16 %v3600
  %v4811 = vunpack.c.l.b16 %v3601
  %v4812 = vunpack.c.l.b16 %v3602
  %v4813 = vunpack.c.l.b16 %v3603
  %v4814 = vunpack.c.l.b16 %v3604
  %v4815 = vunpack.c.l.b16 %v3605
  %v4816 = vunpack.c.l.b16 %v3606
  %v4817 = vunpack.c.l.b16 %v3607
  %v4818 = vunpack.c.l.b16 %v3608
  %v4819 = vunpack.c.l.b16 %v3609
  %v4820 = vunpack.c.l.b16 %v3610
  %v4821 = vunpack.c.l.b16 %v3611
  %v4822 = vunpack.c.l.b16 %v3612
  %v4823 = vunpack.c.l.b16 %v3613
  %v4824 = vunpack.c.l.b16 %v3614
  %v4825 = vunpack.c.l.b16 %v3615
  %v4826 = vunpack.c.l.b16 %v3616
  %v4827 = vunpack.c.l.b16 %v3617
  %v4828 = vunpack.c.l.b16 %v3618
  %v4829 = vunpack.c.l.b16 %v3619
  %v4830 = vunpack.c.l.b16 %v3620
  %v4831 = vunpack.c.l.b16 %v3621
  %v4832 = vunpack.c.l.b16 %v3622
  %v4833 = vunpack.c.l.b16 %v3623
  %v4834 = vunpack.c.l.b16 %v3624
  %v4835 = vunpack.c.l.b16 %v3625
  %v4836 = vunpack.c.l.b16 %v3626
  %v4837 = vunpack.c.l.b16 %v3627
  %v4838 = vunpack.c.l.b16 %v3628
  %v4839 = vunpack.c.l.b16 %v3629
  %v4840 = vunpack.c.l.b16 %v3630
  %v4841 = vunpack.c.l.b16 %v3631
  %v4842 = vunpack.c.l.b16 %v3632
  %v4843 = vunpack.c.l.b16 %v3633
  %v4844 = vunpack.c.l.b16 %v3634
  %v4845 = vunpack.c.l.b16 %v3635
  %v4846 = vunpack.c.l.b16 %v3636
  %v4847 = vunpack.c.l.b16 %v3637
  %v4848 = vunpack.c.l.b16 %v3638
  %v4849 = vunpack.c.l.b16 %v3639
  %v4850 = vunpack.c.l.b16 %v3640
  %v4851 = vunpack.c.l.b16 %v3641
  %v4852 = vunpack.c.l.b16 %v3642
  %v4853 = vunpack.c.l.b16 %v3643
  %v4854 = vunpack.c.l.b16 %v3644
  %v4855 = vunpack.c.l.b16 %v3645
  %v4856 = vunpack.c.l.b16 %v3646
  %v4857 = vunpack.c.l.b16 %v3647
  %v4858 = vunpack.c.l.b16 %v3648
  %v4859 = vunpack.c.l.b16 %v3649
  %v4860 = vunpack.c.l.b16 %v3650
  %v4861 = vunpack.c.l.b16 %v3651
  %v4862 = vunpack.c.l.b16 %v3652
  %v4863 = vunpack.c.l.b16 %v3653
  %v4864 = vunpack.c.l.b16 %v3654
  %v4865 = vunpack.c.l.b16 %v3655
  %v4866 = vunpack.c.l.b16 %v3656
  %v4867 = vunpack.c.l.b16 %v3657
  %v4868 = vunpack.c.l.b16 %v3658
  %v4869 = vunpack.c.l.b16 %v3659
  %v4870 = vunpack.c.l.b16 %v3660
  %v4871 = vunpack.c.l.b16 %v3661
  %v4872 = vunpack.c.l.b16 %v3662
  %v4873 = vunpack.c.l.b16 %v3663
  %v4874 = vunpack.c.l.b16 %v3664
  %v4875 = vunpack.c.l.b16 %v3665
  %v4876 = vunpack.c.l.b16 %v3666
  %v4877 = vunpack.c.l.b16 %v3667
  %v4878 = vunpack.c.l.b16 %v3668
  %v4879 = vunpack.c.l.b16 %v3669
  %v4880 = vunpack.c.l.b16 %v3670
  %v4881 = vunpack.c.l.b16 %v3671
  %v4882 = vunpack.c.l.b16 %v3672
  %v4883 = vunpack.c.l.b16 %v3673
  %v4884 = vunpack.c.l.b16 %v3674
  %v4885 = vunpack.c.l.b16 %v3675
  %v4886 = vunpack.c.l.b16 %v3676
  %v4887 = vunpack.c.l.b16 %v3677
  %v4888 = vunpack.c.l.b16 %v3678
  %v4889 = vunpack.c.l.b16 %v3679
  %v4890 = vunpack.c.l.b16 %v3680
  %v4891 = vunpack.c.l.b16 %v3681
  %v4892 = vunpack.c.l.b16 %v3682
  %v4893 = vunpack.c.l.b16 %v3683
  %v4894 = vunpack.c.l.b16 %v3684
  %v4895 = vunpack.c.l.b16 %v3685
  %v4896 = vunpack.c.l.b16 %v3686
  %v4897 = vunpack.c.l.b16 %v3687
  %v4898 = vunpack.c.l.b16 %v3688
  %v4899 = vunpack.c.l.b16 %v3689
  %v4900 = vunpack.c.l.b16 %v3690
  %v4901 = vpack.c.b16 %v4774, %v4773
  %v4902 = vpack.c.b16 %v4776, %v4775
  %v4903 = vpack.c.b16 %v4778, %v4777
  %v4904 = vpack.c.b16 %v4780, %v4779
  %v4905 = vpack.c.b16 %v4782, %v4781
  %v4906 = vpack.c.b16 %v4784, %v4783
  %v4907 = vpack.c.b16 %v4786, %v4785
  %v4908 = vpack.c.b16 %v4788, %v4787
  %v4909 = vpack.c.b16 %v4790, %v4789
  %v4910 = vpack.c.b16 %v4792, %v4791
  %v4911 = vpack.c.b16 %v4794, %v4793
  %v4912 = vpack.c.b16 %v4796, %v4795
  %v4913 = vpack.c.b16 %v4798, %v4797
  %v4914 = vpack.c.b16 %v4800, %v4799
  %v4915 = vpack.c.b16 %v4802, %v4801
  %v4916 = vpack.c.b16 %v4804, %v4803
  %v4917 = vpack.c.b16 %v4806, %v4805
  %v4918 = vpack.c.b16 %v4808, %v4807
  %v4919 = vpack.c.b16 %v4810, %v4809
  %v4920 = vpack.c.b16 %v4812, %v4811
  %v4921 = vpack.c.b16 %v4814, %v4813
  %v4922 = vpack.c.b16 %v4816, %v4815
  %v4923 = vpack.c.b16 %v4818, %v4817
  %v4924 = vpack.c.b16 %v4820, %v4819
  %v4925 = vpack.c.b16 %v4822, %v4821
  %v4926 = vpack.c.b16 %v4824, %v4823
  %v4927 = vpack.c.b16 %v4826, %v4825
  %v4928 = vpack.c.b16 %v4828, %v4827
  %v4929 = vpack.c.b16 %v4830, %v4829
  %v4930 = vpack.c.b16 %v4832, %v4831
  %v4931 = vpack.c.b16 %v4834, %v4833
  %v4932 = vpack.c.b16 %v4836, %v4835
  %v4933 = vpack.c.b16 %v4838, %v4837
  %v4934 = vpack.c.b16 %v4840, %v4839
  %v4935 = vpack.c.b16 %v4842, %v4841
  %v4936 = vpack.c.b16 %v4844, %v4843
  %v4937 = vpack.c.b16 %v4846, %v4845
  %v4938 = vpack.c.b16 %v4848, %v4847
  %v4939 = vpack.c.b16 %v4850, %v4849
  %v4940 = vpack.c.b16 %v4852, %v4851
  %v4941 = vpack.c.b16 %v4854, %v4853
  %v4942 = vpack.c.b16 %v4856, %v4855
  %v4943 = vpack.c.b16 %v4858, %v4857
  %v4944 = vpack.c.b16 %v4860, %v4859
  %v4945 = vpack.c.b16 %v4862, %v4861
  %v4946 = vpack.c.b16 %v4864, %v4863
  %v4947 = vpack.c.b16 %v4866, %v4865
  %v4948 = vpack.c.b16 %v4868, %v4867
  %v4949 = vpack.c.b16 %v4870, %v4869
  %v4950 = vpack.c.b16 %v4872, %v4871
  %v4951 = vpack.c.b16 %v4874, %v4873
  %v4952 = vpack.c.b16 %v4876, %v4875
  %v4953 = vpack.c.b16 %v4878, %v4877
  %v4954 = vpack.c.b16 %v4880, %v4879
  %v4955 = vpack.c.b16 %v4882, %v4881
  %v4956 = vpack.c.b16 %v4884, %v4883
  %v4957 = vpack.c.b16 %v4886, %v4885
  %v4958 = vpack.c.b16 %v4888, %v4887
  %v4959 = vpack.c.b16 %v4890, %v4889
  %v4960 = vpack.c.b16 %v4892, %v4891
  %v4961 = vpack.c.b16 %v4894, %v4893
  %v4962 = vpack.c.b16 %v4896, %v4895
  %v4963 = vpack.c.b16 %v4898, %v4897
  %v4964 = vpack.c.b16 %v4900, %v4899
  %5029 = vmatpush.bf16.msra.mxu0 %v4908
  %5030 = vmatpush.bf16.msra.mxu0 %v4907
  %5031 = vmatpush.bf16.msra.mxu0 %v4906
  %5032 = vmatpush.bf16.msra.mxu0 %v4905
  %5033 = vmatpush.bf16.msra.mxu0 %v4904
  %5034 = vmatpush.bf16.msra.mxu0 %v4903
  %5035 = vmatpush.bf16.msra.mxu0 %v4902
  %5036 = vmatpush.bf16.msra.mxu0 %v4901
  %5037 = vmatmul.bf16.gmra.mxu0 %v3546
  %v5038 = vpop.f32.mrf.mxu0
  %v5039 = vadd.f32 %v4637, %v5038
  %v5040 = vpop.f32.mrf.mxu0
  %v5041 = vadd.f32 %v4639, %v5040
  %5042 = vmatmul.bf16.gmra.mxu0 %v3554
  %v5043 = vpop.f32.mrf.mxu0
  %v5044 = vadd.f32 %v4642, %v5043
  %v5045 = vpop.f32.mrf.mxu0
  %5046 = vdwg.mxu0
  %5047 = vmatpush.bf16.msra.mxu0 %v4916
  %5048 = vmatpush.bf16.msra.mxu0 %v4915
  %5049 = vmatpush.bf16.msra.mxu0 %v4914
  %5050 = vmatpush.bf16.msra.mxu0 %v4913
  %5051 = vmatpush.bf16.msra.mxu0 %v4912
  %5052 = vmatpush.bf16.msra.mxu0 %v4911
  %5053 = vmatpush.bf16.msra.mxu0 %v4910
  %5054 = vmatpush.bf16.msra.mxu0 %v4909
  %5055 = vmatmul.bf16.gmra.mxu0 %v3547
  %v5056 = vpop.f32.mrf.mxu0
  %v5057 = vadd.f32 %v5039, %v5056
  %v5058 = vpop.f32.mrf.mxu0
  %v5059 = vadd.f32 %v5041, %v5058
  %5060 = vmatmul.bf16.gmra.mxu0 %v3555
  %v5061 = vpop.f32.mrf.mxu0
  %v5062 = vadd.f32 %v5044, %v5061
  %v5063 = vpop.f32.mrf.mxu0
  %5064 = vdwg.mxu0
  %5065 = vmatpush.bf16.msra.mxu0 %v4924
  %5066 = vmatpush.bf16.msra.mxu0 %v4923
  %5067 = vmatpush.bf16.msra.mxu0 %v4922
  %5068 = vmatpush.bf16.msra.mxu0 %v4921
  %5069 = vmatpush.bf16.msra.mxu0 %v4920
  %5070 = vmatpush.bf16.msra.mxu0 %v4919
  %5071 = vmatpush.bf16.msra.mxu0 %v4918
  %5072 = vmatpush.bf16.msra.mxu0 %v4917
  %5073 = vmatmul.bf16.gmra.mxu0 %v3548
  %v5074 = vpop.f32.mrf.mxu0
  %v5075 = vadd.f32 %v5057, %v5074
  %v5076 = vpop.f32.mrf.mxu0
  %v5077 = vadd.f32 %v5059, %v5076
  %5078 = vmatmul.bf16.gmra.mxu0 %v3556
  %v5079 = vpop.f32.mrf.mxu0
  %v5080 = vadd.f32 %v5062, %v5079
  %v5081 = vpop.f32.mrf.mxu0
  %5082 = vdwg.mxu0
  %5083 = vmatpush.bf16.msra.mxu0 %v4932
  %5084 = vmatpush.bf16.msra.mxu0 %v4931
  %5085 = vmatpush.bf16.msra.mxu0 %v4930
  %5086 = vmatpush.bf16.msra.mxu0 %v4929
  %5087 = vmatpush.bf16.msra.mxu0 %v4928
  %5088 = vmatpush.bf16.msra.mxu0 %v4927
  %5089 = vmatpush.bf16.msra.mxu0 %v4926
  %5090 = vmatpush.bf16.msra.mxu0 %v4925
  %5091 = vmatmul.bf16.gmra.mxu0 %v3549
  %v5092 = vpop.f32.mrf.mxu0
  %v5093 = vadd.f32 %v5075, %v5092
  %v5094 = vpop.f32.mrf.mxu0
  %v5095 = vadd.f32 %v5077, %v5094
  %5096 = vmatmul.bf16.gmra.mxu0 %v3557
  %v5097 = vpop.f32.mrf.mxu0
  %v5098 = vadd.f32 %v5080, %v5097
  %v5099 = vpop.f32.mrf.mxu0
  %5100 = vdwg.mxu0
  %5101 = vmatpush.bf16.msra.mxu0 %v4940
  %5102 = vmatpush.bf16.msra.mxu0 %v4939
  %5103 = vmatpush.bf16.msra.mxu0 %v4938
  %5104 = vmatpush.bf16.msra.mxu0 %v4937
  %5105 = vmatpush.bf16.msra.mxu0 %v4936
  %5106 = vmatpush.bf16.msra.mxu0 %v4935
  %5107 = vmatpush.bf16.msra.mxu0 %v4934
  %5108 = vmatpush.bf16.msra.mxu0 %v4933
  %5109 = vmatmul.bf16.gmra.mxu0 %v3550
  %v5110 = vpop.f32.mrf.mxu0
  %v5111 = vadd.f32 %v5093, %v5110
  %v5112 = vpop.f32.mrf.mxu0
  %v5113 = vadd.f32 %v5095, %v5112
  %5114 = vmatmul.bf16.gmra.mxu0 %v3558
  %v5115 = vpop.f32.mrf.mxu0
  %v5116 = vadd.f32 %v5098, %v5115
  %v5117 = vpop.f32.mrf.mxu0
  %5118 = vdwg.mxu0
  %5119 = vmatpush.bf16.msra.mxu0 %v4948
  %5120 = vmatpush.bf16.msra.mxu0 %v4947
  %5121 = vmatpush.bf16.msra.mxu0 %v4946
  %5122 = vmatpush.bf16.msra.mxu0 %v4945
  %5123 = vmatpush.bf16.msra.mxu0 %v4944
  %5124 = vmatpush.bf16.msra.mxu0 %v4943
  %5125 = vmatpush.bf16.msra.mxu0 %v4942
  %5126 = vmatpush.bf16.msra.mxu0 %v4941
  %5127 = vmatmul.bf16.gmra.mxu0 %v3551
  %v5128 = vpop.f32.mrf.mxu0
  %v5129 = vadd.f32 %v5111, %v5128
  %v5130 = vpop.f32.mrf.mxu0
  %v5131 = vadd.f32 %v5113, %v5130
  %5132 = vmatmul.bf16.gmra.mxu0 %v3559
  %v5133 = vpop.f32.mrf.mxu0
  %v5134 = vadd.f32 %v5116, %v5133
  %v5135 = vpop.f32.mrf.mxu0
  %5136 = vdwg.mxu0
  %5137 = vmatpush.bf16.msra.mxu0 %v4956
  %5138 = vmatpush.bf16.msra.mxu0 %v4955
  %5139 = vmatpush.bf16.msra.mxu0 %v4954
  %5140 = vmatpush.bf16.msra.mxu0 %v4953
  %5141 = vmatpush.bf16.msra.mxu0 %v4952
  %5142 = vmatpush.bf16.msra.mxu0 %v4951
  %5143 = vmatpush.bf16.msra.mxu0 %v4950
  %5144 = vmatpush.bf16.msra.mxu0 %v4949
  %5145 = vmatmul.bf16.gmra.mxu0 %v3552
  %v5146 = vpop.f32.mrf.mxu0
  %v5147 = vadd.f32 %v5129, %v5146
  %v5148 = vpop.f32.mrf.mxu0
  %v5149 = vadd.f32 %v5131, %v5148
  %5150 = vmatmul.bf16.gmra.mxu0 %v3560
  %v5151 = vpop.f32.mrf.mxu0
  %v5152 = vadd.f32 %v5134, %v5151
  %v5153 = vpop.f32.mrf.mxu0
  %5154 = vdwg.mxu0
  %5155 = vmatpush.bf16.msra.mxu0 %v4964
  %5156 = vmatpush.bf16.msra.mxu0 %v4963
  %5157 = vmatpush.bf16.msra.mxu0 %v4962
  %5158 = vmatpush.bf16.msra.mxu0 %v4961
  %5159 = vmatpush.bf16.msra.mxu0 %v4960
  %5160 = vmatpush.bf16.msra.mxu0 %v4959
  %5161 = vmatpush.bf16.msra.mxu0 %v4958
  %5162 = vmatpush.bf16.msra.mxu0 %v4957
  %5163 = vmatmul.bf16.gmra.mxu0 %v3553
  %v5164 = vpop.f32.mrf.mxu0
  %v5165 = vadd.f32 %v5147, %v5164
  %v5166 = vpop.f32.mrf.mxu0
  %v5167 = vadd.f32 %v5149, %v5166
  %5168 = vmatmul.bf16.gmra.mxu0 %v3561
  %v5169 = vpop.f32.mrf.mxu0
  %v5170 = vadd.f32 %v5152, %v5169
  %v5171 = vpop.f32.mrf.mxu0
  %5172 = vdwg.mxu0
  %s5173 = scalar_lea.vmem %s10, 1
  %v5174 = vld [vmem:[%s5173] sm:$0x1]
  %v5176 = vperm.slane %v5174, 0
  %v5178 = vadd.f32 %v5165, %v5176
  %v5179 = vadd.f32 %v5167, %v5176
  %v5180 = vadd.f32 %v5170, %v5176
  %v5181 = vadd.f32 %v3251, %v5178
  %v5182 = vadd.f32 %v3252, %v5179
  %v5183 = vadd.f32 %v3253, %v5180
  %s5184 = scalar_lea.vmem %s11, 1
  %v5185 = vld [vmem:[%s5184] sm:$0x1]
  %s5186 = scalar_lea.vmem %s12, 1
  %v5187 = vld [vmem:[%s5186] sm:$0x1]
  %v5188 = vsel %vm86, %v5181, 0.0
  %5189 = vadd.xlane.f32.xlu0 %v5188
  %v5190 = vpop.xlane.xlu0 %5189
  %v5191 = vsel %vm86, %v5182, 0.0
  %5192 = vadd.xlane.f32.xlu0 %v5191
  %v5193 = vpop.xlane.xlu0 %5192
  %v5194 = vsel %vm86, %v5183, 0.0
  %5195 = vadd.xlane.f32.xlu0 %v5194
  %v5196 = vpop.xlane.xlu0 %5195
  %v5197 = vmul.f32 %v5190, %v584
  %v5198 = vmul.f32 %v5193, %v584
  %v5199 = vmul.f32 %v5196, %v584
  %v5200 = vsub.f32 %v5181, %v5197
  %v5201 = vsub.f32 %v5182, %v5198
  %v5202 = vsub.f32 %v5183, %v5199
  %v5203 = vmul.f32 %v5200, %v5200
  %v5204 = vmul.f32 %v5201, %v5201
  %v5205 = vmul.f32 %v5202, %v5202
  %v5206 = vsel %vm86, %v5203, 0.0
  %5207 = vadd.xlane.f32.xlu0 %v5206
  %v5208 = vpop.xlane.xlu0 %5207
  %v5209 = vsel %vm86, %v5204, 0.0
  %5210 = vadd.xlane.f32.xlu0 %v5209
  %v5211 = vpop.xlane.xlu0 %5210
  %v5212 = vsel %vm86, %v5205, 0.0
  %5213 = vadd.xlane.f32.xlu0 %v5212
  %v5214 = vpop.xlane.xlu0 %5213
  %v5215 = vmul.f32 %v5208, %v584
  %v5216 = vmul.f32 %v5211, %v584
  %v5217 = vmul.f32 %v5214, %v584
  %v5218 = vadd.f32 %v5215, 1e-05
  %v5219 = vadd.f32 %v5216, 1e-05
  %v5220 = vadd.f32 %v5217, 1e-05
  %v5221 = vrsqrt.pop %v5218
  %v5222 = vmul.f32 %v5221, %v5218
  %v5223 = vmul.f32 %v5222, %v5221
  %v5224 = vmul.f32 0.5, %v5223
  %v5225 = vsub.f32 1.5, %v5224
  %v5226 = vmul.f32 %v5221, %v5225
  %vm5227 = vweird.f32 %v5218
  %vm5228 = vweird.f32 %v5221
  %vm5229 = vmor %vm5227, %vm5228
  %v5230 = vsel %vm5229, %v5221, %v5226
  %v5231 = vrsqrt.pop %v5219
  %v5232 = vmul.f32 %v5231, %v5219
  %v5233 = vmul.f32 %v5232, %v5231
  %v5234 = vmul.f32 0.5, %v5233
  %v5235 = vsub.f32 1.5, %v5234
  %v5236 = vmul.f32 %v5231, %v5235
  %vm5237 = vweird.f32 %v5219
  %vm5238 = vweird.f32 %v5231
  %vm5239 = vmor %vm5237, %vm5238
  %v5240 = vsel %vm5239, %v5231, %v5236
  %v5241 = vrsqrt.pop %v5220
  %v5242 = vmul.f32 %v5241, %v5220
  %v5243 = vmul.f32 %v5242, %v5241
  %v5244 = vmul.f32 0.5, %v5243
  %v5245 = vsub.f32 1.5, %v5244
  %v5246 = vmul.f32 %v5241, %v5245
  %vm5247 = vweird.f32 %v5220
  %vm5248 = vweird.f32 %v5241
  %vm5249 = vmor %vm5247, %vm5248
  %v5250 = vsel %vm5249, %v5241, %v5246
  %v5251 = vmul.f32 %v5200, %v5230
  %v5252 = vmul.f32 %v5201, %v5240
  %v5253 = vmul.f32 %v5202, %v5250
  %v5255 = vperm.slane %v5185, 0
  %v5257 = vmul.f32 %v5251, %v5255
  %v5258 = vmul.f32 %v5252, %v5255
  %v5259 = vmul.f32 %v5253, %v5255
  %v5261 = vperm.slane %v5187, 0
  %v5263 = vadd.f32 %v5257, %v5261
  %v5264 = vadd.f32 %v5258, %v5261
  %v5265 = vadd.f32 %v5259, %v5261
  %v5266 = vpack.c.bf16 %v5264, %v5263
  %v5267 = vpack.c.bf16 %v5265, %v5265
  %v5268 = vld [vmem:[%s13] sm:$0xf]
  %v5269 = vld [vmem:[%s13 + $0x4] sm:$0xf]
  %v5270 = vld [vmem:[%s13 + $0x8] sm:$0xf]
  %v5271 = vld [vmem:[%s13 + $0xc] sm:$0xf]
  %v5276 = vunpack.c.l.b16 %v5268
  %v5277 = vunpack.c.l.b16 %v5269
  %v5278 = vunpack.c.l.b16 %v5270
  %v5279 = vunpack.c.l.b16 %v5271
  %v5280 = vpack.c.b16 %v5277, %v5276
  %v5281 = vpack.c.b16 %v5279, %v5278
  %v5285 = vsel %vm86, %v5266, 0
  %v5288 = vsel %vm86, %v5267, 0
  %5290 = vmatpush.bf16.msra.mxu0 0
  %5291 = vmatpush.bf16.msra.mxu0 0
  %5292 = vmatpush.bf16.msra.mxu0 0
  %5293 = vmatpush.bf16.msra.mxu0 0
  %5294 = vmatpush.bf16.msra.mxu0 0
  %5295 = vmatpush.bf16.msra.mxu0 0
  %5296 = vmatpush.bf16.msra.mxu0 %v5281
  %5297 = vmatpush.bf16.msra.mxu0 %v5280
  %5298 = vmatmul.bf16.gmra.mxu0 %v5285
  %v5299 = vpop.f32.mrf.mxu0
  %v5300 = vadd.f32 0.0, %v5299
  %v5301 = vpop.f32.mrf.mxu0
  %v5302 = vadd.f32 0.0, %v5301
  %5303 = vmatmul.bf16.gmra.mxu0 %v5288
  %v5304 = vpop.f32.mrf.mxu0
  %v5305 = vadd.f32 0.0, %v5304
  %v5306 = vpop.f32.mrf.mxu0
  %5307 = vdwg.mxu0
  %5308 = vst [vmem:[%s14] sm:$0xff] %v5300
  %5309 = vst [vmem:[%s14 + $0x8] sm:$0xff] %v5302
  %5310 = vst [vmem:[%s14 + $0x10] sm:$0xff] %v5305
  // Predicated region
  $region58: #{sequence_model_forward.1} parent=0 // pred_check
    _
  $region59: #{sequence_model_forward.1} parent=0 // pred_check_branch
    %5312 = sbr.rel (0) target = $region61
  $region60: #{sequence_model_forward.1} parent=0 // pred_region
    _
  $region61: #{sequence_model_forward.1} parent=0 // pred_fallthru
    _
  // Predicated region
  $region62: #{sequence_model_forward.1} parent=0 // pred_check
    _
  $region63: #{sequence_model_forward.1} parent=0 // pred_check_branch
    %5314 = sbr.rel (0) target = $region65
  $region64: #{sequence_model_forward.1} parent=0 // pred_region
    _
  $region65: #{sequence_model_forward.1} parent=0 // pred_fallthru
    _

</llo_original>
